<compile_context>
chip_gen: v5e
topology: v5e:2x2
jax: 0.10.0
libtpu: 0.0.40
codegen_flags: <defaults>
</compile_context>

<pallas_src>
import jax
import jax.numpy as jnp
import numpy as np
from jax.experimental import pallas as pl
from jax.experimental.pallas import tpu as pltpu

# Small-but-representative sizes (module defaults are 512 / 2048 / 4 layers).
LATENT_DIM = 128
N_HIDDEN = 256
N_LAYER = 4            # -> 5 linear layers total
BATCH = 200            # padded to 256 inside the wrapper -> grid of 2 tiles
BM = 128               # batch tile: full MXU height, amortizes per-step overhead
OUT_LANES = 128        # lane-dense output slab width


def ebm_kernel(*refs):
    """refs = (x_ref, w0, b0, w1, b1, ..., wL, bL, o_ref).

    x_ref: (BM, D) bf16.  Hidden-layer weights are (in, out) bf16, biases
    (1, out) f32.  The last layer's weight is pre-transposed to a (1, n_hidden)
    f32 row (VPU path), its bias is (1, 1) f32.  o_ref is a (BM, 128) f32 slab.
    """
    x_ref, o_ref = refs[0], refs[-1]
    wb = refs[1:-1]
    n_linear = len(wb) // 2

    h = x_ref[...]                                   # bf16 in, f32 after layer 0
    # Hidden Linear layers on the MXU: bf16 x bf16 -> f32 accumulation.
    for l in range(n_linear - 1):
        w_ref, b_ref = wb[2 * l], wb[2 * l + 1]
        h = jnp.dot(h.astype(jnp.bfloat16), w_ref[...],
                    preferred_element_type=jnp.float32) + b_ref[...]
        h = jnp.maximum(h, 0.2 * h)                  # LeakyReLU(0.2), f32 VPU

    # Final Linear(n_hidden, 1): VPU multiply + lane (XLU) reduction; no MXU.
    w_last, b_last = wb[-2], wb[-1]                  # (1, n_hidden) f32, (1, 1) f32
    energy = jnp.sum(h.astype(jnp.float32) * w_last[...],
                     axis=-1, keepdims=True) + b_last[...]        # (BM, 1) f32
    # Lane-dense store: broadcast the per-row scalar across 128 lanes.
    o_ref[...] = jnp.broadcast_to(energy, o_ref.shape)


def latent_ebm_forward(x, params, *, bm=BM):
    """x: (B, latent_dim) f32; params: list of (W (in,out) f32, b (1,out) f32).

    Returns (B, 1) f32 energies, matching PyTorch nn.Linear semantics
    (W here is the transpose of PyTorch's weight, so y = x @ W + b).
    """
    B, D = x.shape
    n_linear = len(params)

    # Pad the batch to a multiple of the tile and cast activations to bf16
    # (halves input DMA bytes; matmuls accumulate in f32).
    num_tiles = pl.cdiv(B, bm)
    padded_b = num_tiles * bm
    if padded_b != B:
        x = jnp.pad(x, ((0, padded_b - B), (0, 0)))
    x_bf16 = x.astype(jnp.bfloat16)

    # Pre-convert parameters: bf16 weights for MXU layers, f32 row for the
    # final VPU layer, f32 biases everywhere.
    flat_args = []
    converted = []
    for idx, (w, b) in enumerate(params):
        if idx < n_linear - 1:
            wc = w.astype(jnp.bfloat16)              # MXU layer
        else:
            wc = w.astype(jnp.float32).T             # (1, n_hidden) row, VPU layer
        bc = b.astype(jnp.float32)
        converted.append((wc, bc))
        flat_args.extend([wc, bc])

    def _spec(shape, index_map, mode):
        if mode is None:
            return pl.BlockSpec(shape, index_map)
        return pl.BlockSpec(shape, index_map, pipeline_mode=mode)

    def run(weight_mode):
        in_specs = [pl.BlockSpec((bm, D), lambda i: (i, 0))]
        for (wc, bc) in converted:
            # Grid-invariant blocks: full tensor, same block index every step.
            in_specs.append(_spec(wc.shape, lambda i: (0, 0), weight_mode))
            in_specs.append(_spec(bc.shape, lambda i: (0, 0), weight_mode))
        return pl.pallas_call(
            ebm_kernel,
            out_shape=jax.ShapeDtypeStruct((padded_b, OUT_LANES), jnp.float32),
            grid_spec=pltpu.PrefetchScalarGridSpec(
                num_scalar_prefetch=0,
                grid=(padded_b // bm,),
                in_specs=in_specs,
                out_specs=pl.BlockSpec((bm, OUT_LANES), lambda i: (i, 0)),
            ),
            compiler_params=pltpu.CompilerParams(
                dimension_semantics=("parallel",),
                vmem_limit_bytes=32 * 1024 * 1024),
        )(x_bf16, *flat_args)

    try:
        # Weights never change block index -> single-buffer them (halves weight
        # VMEM; matters at real model sizes, free here).
        out = run(pl.Buffered(1))
    except Exception:
        # Fallback: default double-buffering (previously-verified-clean path).
        out = run(None)

    return out[:B, 0:1]


def init_params(key, latent_dim=LATENT_DIM, n_layer=N_LAYER, n_hidden=N_HIDDEN):
    """Deterministic PyTorch-default-style init (uniform +-1/sqrt(fan_in))."""
    if n_layer == 0:
        dims = [(latent_dim, 1)]
    else:
        dims = [(latent_dim, n_hidden)]
        dims += [(n_hidden, n_hidden)] * (n_layer - 1)
        dims += [(n_hidden, 1)]
    params = []
    for (fan_in, fan_out) in dims:
        key, kw, kb = jax.random.split(key, 3)
        bound = 1.0 / np.sqrt(fan_in)
        w = jax.random.uniform(kw, (fan_in, fan_out), jnp.float32, -bound, bound)
        b = jax.random.uniform(kb, (1, fan_out), jnp.float32, -bound, bound)
        params.append((w, b))
    return params


def reference_forward_f32(x, params):
    """Pure-f32 reference (mirrors the PyTorch module exactly)."""
    h = x
    n = len(params)
    for idx, (w, b) in enumerate(params):
        h = h @ w + b
        if idx < n - 1:
            h = jnp.maximum(h, 0.2 * h)
    return h


def reference_forward_bf16(x, params):
    """Reference that mirrors the kernel's numerics: bf16 dot inputs, f32 accum."""
    h = x.astype(jnp.float32)
    n = len(params)
    for idx, (w, b) in enumerate(params):
        if idx < n - 1:
            h = jnp.dot(h.astype(jnp.bfloat16), w.astype(jnp.bfloat16),
                        preferred_element_type=jnp.float32) + b
            h = jnp.maximum(h, 0.2 * h)
        else:
            h = h @ w + b          # final 1-wide layer stays f32
    return h


if __name__ == "__main__":
    key = jax.random.PRNGKey(0)
    kx, kp = jax.random.split(key)
    x = jax.random.normal(kx, (BATCH, LATENT_DIM), dtype=jnp.float32)
    params = init_params(kp)

    out = latent_ebm_forward(x, params)
    out = jax.block_until_ready(out)
    assert out.shape == (BATCH, 1)

    # Tight check against a reference with identical bf16-input / f32-accum math.
    ref_bf16 = reference_forward_bf16(x, params)
    np.testing.assert_allclose(np.asarray(out), np.asarray(ref_bf16),
                               rtol=1e-3, atol=1e-3)
    # Loose check against the exact f32 PyTorch-equivalent forward.
    ref_f32 = reference_forward_f32(x, params)
    np.testing.assert_allclose(np.asarray(out), np.asarray(ref_f32),
                               rtol=5e-2, atol=5e-2)
    print("KERNEL_OK")
</pallas_src>

<mosaic_0001>
module attributes {stable_mosaic.version = 11 : i64} {
  func.func @ebm_kernel(%arg0: i32, %arg1: memref<128x128xbf16, #tpu.memory_space<vmem>>, %arg2: memref<128x256xbf16, #tpu.memory_space<vmem>>, %arg3: memref<1x256xf32, #tpu.memory_space<vmem>>, %arg4: memref<256x256xbf16, #tpu.memory_space<vmem>>, %arg5: memref<1x256xf32, #tpu.memory_space<vmem>>, %arg6: memref<256x256xbf16, #tpu.memory_space<vmem>>, %arg7: memref<1x256xf32, #tpu.memory_space<vmem>>, %arg8: memref<256x256xbf16, #tpu.memory_space<vmem>>, %arg9: memref<1x256xf32, #tpu.memory_space<vmem>>, %arg10: memref<1x256xf32, #tpu.memory_space<vmem>>, %arg11: memref<1x1xf32, #tpu.memory_space<vmem>>, %arg12: memref<128x128xf32, #tpu.memory_space<vmem>>) attributes {dimension_semantics = [#tpu.dimension_semantics<parallel>], iteration_bounds = array<i64: 2>, scalar_prefetch = 0 : i64, scratch_operands = 0 : i64, tpu.core_type = #tpu.core_type<tc>, window_params = [{transform_indices = @transform_0, window_bounds = array<i64: 128, 128>}, {pipeline_mode = #tpu.pipeline_mode<synchronous>, transform_indices = @transform_1, window_bounds = array<i64: 128, 256>}, {pipeline_mode = #tpu.pipeline_mode<synchronous>, transform_indices = @transform_2, window_bounds = array<i64: 1, 256>}, {pipeline_mode = #tpu.pipeline_mode<synchronous>, transform_indices = @transform_3, window_bounds = array<i64: 256, 256>}, {pipeline_mode = #tpu.pipeline_mode<synchronous>, transform_indices = @transform_4, window_bounds = array<i64: 1, 256>}, {pipeline_mode = #tpu.pipeline_mode<synchronous>, transform_indices = @transform_5, window_bounds = array<i64: 256, 256>}, {pipeline_mode = #tpu.pipeline_mode<synchronous>, transform_indices = @transform_6, window_bounds = array<i64: 1, 256>}, {pipeline_mode = #tpu.pipeline_mode<synchronous>, transform_indices = @transform_7, window_bounds = array<i64: 256, 256>}, {pipeline_mode = #tpu.pipeline_mode<synchronous>, transform_indices = @transform_8, window_bounds = array<i64: 1, 256>}, {pipeline_mode = #tpu.pipeline_mode<synchronous>, transform_indices = @transform_9, window_bounds = array<i64: 1, 256>}, {pipeline_mode = #tpu.pipeline_mode<synchronous>, transform_indices = @transform_10, window_bounds = array<i64: 1, 1>}, {transform_indices = @transform_11, window_bounds = array<i64: 128, 128>}]} {
    %c0 = arith.constant 0 : index
    %c0_0 = arith.constant 0 : index
    %0 = vector.load %arg1[%c0, %c0_0] : memref<128x128xbf16, #tpu.memory_space<vmem>>, vector<128x128xbf16>
    %c0_1 = arith.constant 0 : index
    %c0_2 = arith.constant 0 : index
    %1 = vector.load %arg2[%c0_1, %c0_2] : memref<128x256xbf16, #tpu.memory_space<vmem>>, vector<128x256xbf16>
    %cst = arith.constant dense<0.000000e+00> : vector<128x256xf32>
    %2 = tpu.matmul %0, %1, %cst {dimension_numbers = #tpu.dot_dimension_numbers<[1], [0], [0], [1], [0, 0, 1, 1], [], []>} : vector<128x128xbf16>, vector<128x256xbf16>, vector<128x256xf32> -> vector<128x256xf32>
    %c0_3 = arith.constant 0 : index
    %c0_4 = arith.constant 0 : index
    %3 = vector.load %arg3[%c0_3, %c0_4] : memref<1x256xf32, #tpu.memory_space<vmem>>, vector<1x256xf32>
    %4 = vector.broadcast %3 : vector<1x256xf32> to vector<128x256xf32>
    %5 = arith.addf %2, %4 : vector<128x256xf32>
    %cst_5 = arith.constant 2.000000e-01 : f32
    %6 = vector.broadcast %cst_5 : f32 to vector<128x256xf32>
    %7 = arith.mulf %6, %5 : vector<128x256xf32>
    %8 = arith.maximumf %5, %7 : vector<128x256xf32>
    %9 = arith.truncf %8 : vector<128x256xf32> to vector<128x256xbf16>
    %c0_6 = arith.constant 0 : index
    %c0_7 = arith.constant 0 : index
    %10 = vector.load %arg4[%c0_6, %c0_7] : memref<256x256xbf16, #tpu.memory_space<vmem>>, vector<256x256xbf16>
    %cst_8 = arith.constant dense<0.000000e+00> : vector<128x256xf32>
    %11 = tpu.matmul %9, %10, %cst_8 {dimension_numbers = #tpu.dot_dimension_numbers<[1], [0], [0], [1], [0, 0, 1, 1], [], []>} : vector<128x256xbf16>, vector<256x256xbf16>, vector<128x256xf32> -> vector<128x256xf32>
    %c0_9 = arith.constant 0 : index
    %c0_10 = arith.constant 0 : index
    %12 = vector.load %arg5[%c0_9, %c0_10] : memref<1x256xf32, #tpu.memory_space<vmem>>, vector<1x256xf32>
    %13 = vector.broadcast %12 : vector<1x256xf32> to vector<128x256xf32>
    %14 = arith.addf %11, %13 : vector<128x256xf32>
    %cst_11 = arith.constant 2.000000e-01 : f32
    %15 = vector.broadcast %cst_11 : f32 to vector<128x256xf32>
    %16 = arith.mulf %15, %14 : vector<128x256xf32>
    %17 = arith.maximumf %14, %16 : vector<128x256xf32>
    %18 = arith.truncf %17 : vector<128x256xf32> to vector<128x256xbf16>
    %c0_12 = arith.constant 0 : index
    %c0_13 = arith.constant 0 : index
    %19 = vector.load %arg6[%c0_12, %c0_13] : memref<256x256xbf16, #tpu.memory_space<vmem>>, vector<256x256xbf16>
    %cst_14 = arith.constant dense<0.000000e+00> : vector<128x256xf32>
    %20 = tpu.matmul %18, %19, %cst_14 {dimension_numbers = #tpu.dot_dimension_numbers<[1], [0], [0], [1], [0, 0, 1, 1], [], []>} : vector<128x256xbf16>, vector<256x256xbf16>, vector<128x256xf32> -> vector<128x256xf32>
    %c0_15 = arith.constant 0 : index
    %c0_16 = arith.constant 0 : index
    %21 = vector.load %arg7[%c0_15, %c0_16] : memref<1x256xf32, #tpu.memory_space<vmem>>, vector<1x256xf32>
    %22 = vector.broadcast %21 : vector<1x256xf32> to vector<128x256xf32>
    %23 = arith.addf %20, %22 : vector<128x256xf32>
    %cst_17 = arith.constant 2.000000e-01 : f32
    %24 = vector.broadcast %cst_17 : f32 to vector<128x256xf32>
    %25 = arith.mulf %24, %23 : vector<128x256xf32>
    %26 = arith.maximumf %23, %25 : vector<128x256xf32>
    %27 = arith.truncf %26 : vector<128x256xf32> to vector<128x256xbf16>
    %c0_18 = arith.constant 0 : index
    %c0_19 = arith.constant 0 : index
    %28 = vector.load %arg8[%c0_18, %c0_19] : memref<256x256xbf16, #tpu.memory_space<vmem>>, vector<256x256xbf16>
    %cst_20 = arith.constant dense<0.000000e+00> : vector<128x256xf32>
    %29 = tpu.matmul %27, %28, %cst_20 {dimension_numbers = #tpu.dot_dimension_numbers<[1], [0], [0], [1], [0, 0, 1, 1], [], []>} : vector<128x256xbf16>, vector<256x256xbf16>, vector<128x256xf32> -> vector<128x256xf32>
    %c0_21 = arith.constant 0 : index
    %c0_22 = arith.constant 0 : index
    %30 = vector.load %arg9[%c0_21, %c0_22] : memref<1x256xf32, #tpu.memory_space<vmem>>, vector<1x256xf32>
    %31 = vector.broadcast %30 : vector<1x256xf32> to vector<128x256xf32>
    %32 = arith.addf %29, %31 : vector<128x256xf32>
    %cst_23 = arith.constant 2.000000e-01 : f32
    %33 = vector.broadcast %cst_23 : f32 to vector<128x256xf32>
    %34 = arith.mulf %33, %32 : vector<128x256xf32>
    %35 = arith.maximumf %32, %34 : vector<128x256xf32>
    %c0_24 = arith.constant 0 : index
    %c0_25 = arith.constant 0 : index
    %36 = vector.load %arg10[%c0_24, %c0_25] : memref<1x256xf32, #tpu.memory_space<vmem>>, vector<1x256xf32>
    %37 = vector.broadcast %36 : vector<1x256xf32> to vector<128x256xf32>
    %38 = arith.mulf %35, %37 : vector<128x256xf32>
    %cst_26 = arith.constant dense<0.000000e+00> : vector<128xf32>
    %39 = vector.multi_reduction <add>, %38, %cst_26 [1] : vector<128x256xf32> to vector<128xf32>
    %40 = vector.shape_cast %39 : vector<128xf32> to vector<128x1xf32>
    %c0_27 = arith.constant 0 : index
    %c0_28 = arith.constant 0 : index
    %41 = vector.load %arg11[%c0_27, %c0_28] : memref<1x1xf32, #tpu.memory_space<vmem>>, vector<1x1xf32>
    %42 = vector.broadcast %41 : vector<1x1xf32> to vector<128x1xf32>
    %43 = arith.addf %40, %42 : vector<128x1xf32>
    %44 = vector.shape_cast %43 : vector<128x1xf32> to vector<128x1xf32>
    %45 = vector.broadcast %44 : vector<128x1xf32> to vector<128x128xf32>
    %c0_29 = arith.constant 0 : index
    %c0_30 = arith.constant 0 : index
    %46 = vector.load %arg12[%c0_29, %c0_30] : memref<128x128xf32, #tpu.memory_space<vmem>>, vector<128x128xf32>
    tpu.vector_store %arg12[%c0_29, %c0_30], %45 {strides = array<i32>} : memref<128x128xf32, #tpu.memory_space<vmem>>, vector<128x128xf32>,
    return
  }
  func.func @transform_0(%arg0: i32) -> (i32, i32) {
    %c0_i32 = arith.constant 0 : i32
    %c0_i32_0 = arith.constant 0 : i32
    return %arg0, %c0_i32 : i32, i32
  }
  func.func @transform_1(%arg0: i32) -> (i32, i32) {
    %c0_i32 = arith.constant 0 : i32
    %c0_i32_0 = arith.constant 0 : i32
    %c0_i32_1 = arith.constant 0 : i32
    return %c0_i32, %c0_i32_0 : i32, i32
  }
  func.func @transform_2(%arg0: i32) -> (i32, i32) {
    %c0_i32 = arith.constant 0 : i32
    %c0_i32_0 = arith.constant 0 : i32
    %c0_i32_1 = arith.constant 0 : i32
    return %c0_i32, %c0_i32_0 : i32, i32
  }
  func.func @transform_3(%arg0: i32) -> (i32, i32) {
    %c0_i32 = arith.constant 0 : i32
    %c0_i32_0 = arith.constant 0 : i32
    %c0_i32_1 = arith.constant 0 : i32
    return %c0_i32, %c0_i32_0 : i32, i32
  }
  func.func @transform_4(%arg0: i32) -> (i32, i32) {
    %c0_i32 = arith.constant 0 : i32
    %c0_i32_0 = arith.constant 0 : i32
    %c0_i32_1 = arith.constant 0 : i32
    return %c0_i32, %c0_i32_0 : i32, i32
  }
  func.func @transform_5(%arg0: i32) -> (i32, i32) {
    %c0_i32 = arith.constant 0 : i32
    %c0_i32_0 = arith.constant 0 : i32
    %c0_i32_1 = arith.constant 0 : i32
    return %c0_i32, %c0_i32_0 : i32, i32
  }
  func.func @transform_6(%arg0: i32) -> (i32, i32) {
    %c0_i32 = arith.constant 0 : i32
    %c0_i32_0 = arith.constant 0 : i32
    %c0_i32_1 = arith.constant 0 : i32
    return %c0_i32, %c0_i32_0 : i32, i32
  }
  func.func @transform_7(%arg0: i32) -> (i32, i32) {
    %c0_i32 = arith.constant 0 : i32
    %c0_i32_0 = arith.constant 0 : i32
    %c0_i32_1 = arith.constant 0 : i32
    return %c0_i32, %c0_i32_0 : i32, i32
  }
  func.func @transform_8(%arg0: i32) -> (i32, i32) {
    %c0_i32 = arith.constant 0 : i32
    %c0_i32_0 = arith.constant 0 : i32
    %c0_i32_1 = arith.constant 0 : i32
    return %c0_i32, %c0_i32_0 : i32, i32
  }
  func.func @transform_9(%arg0: i32) -> (i32, i32) {
    %c0_i32 = arith.constant 0 : i32
    %c0_i32_0 = arith.constant 0 : i32
    %c0_i32_1 = arith.constant 0 : i32
    return %c0_i32, %c0_i32_0 : i32, i32
  }
  func.func @transform_10(%arg0: i32) -> (i32, i32) {
    %c0_i32 = arith.constant 0 : i32
    %c0_i32_0 = arith.constant 0 : i32
    %c0_i32_1 = arith.constant 0 : i32
    return %c0_i32, %c0_i32_0 : i32, i32
  }
  func.func @transform_11(%arg0: i32) -> (i32, i32) {
    %c0_i32 = arith.constant 0 : i32
    %c0_i32_0 = arith.constant 0 : i32
    return %arg0, %c0_i32 : i32, i32
  }
}

module attributes {stable_mosaic.version = 11 : i64} {
  func.func @ebm_kernel(%arg0: i32, %arg1: memref<128x128xbf16, #tpu.memory_space<vmem>>, %arg2: memref<128x256xbf16, #tpu.memory_space<vmem>>, %arg3: memref<1x256xf32, #tpu.memory_space<vmem>>, %arg4: memref<256x256xbf16, #tpu.memory_space<vmem>>, %arg5: memref<1x256xf32, #tpu.memory_space<vmem>>, %arg6: memref<256x256xbf16, #tpu.memory_space<vmem>>, %arg7: memref<1x256xf32, #tpu.memory_space<vmem>>, %arg8: memref<256x256xbf16, #tpu.memory_space<vmem>>, %arg9: memref<1x256xf32, #tpu.memory_space<vmem>>, %arg10: memref<1x256xf32, #tpu.memory_space<vmem>>, %arg11: memref<1x1xf32, #tpu.memory_space<vmem>>, %arg12: memref<128x128xf32, #tpu.memory_space<vmem>>) attributes {dimension_semantics = [#tpu.dimension_semantics<parallel>], iteration_bounds = array<i64: 2>, scalar_prefetch = 0 : i64, scratch_operands = 0 : i64, tpu.core_type = #tpu.core_type<tc>, window_params = [{transform_indices = @transform_0, window_bounds = array<i64: 128, 128>}, {pipeline_mode = #tpu.pipeline_mode<synchronous>, transform_indices = @transform_1, window_bounds = array<i64: 128, 256>}, {pipeline_mode = #tpu.pipeline_mode<synchronous>, transform_indices = @transform_2, window_bounds = array<i64: 1, 256>}, {pipeline_mode = #tpu.pipeline_mode<synchronous>, transform_indices = @transform_3, window_bounds = array<i64: 256, 256>}, {pipeline_mode = #tpu.pipeline_mode<synchronous>, transform_indices = @transform_4, window_bounds = array<i64: 1, 256>}, {pipeline_mode = #tpu.pipeline_mode<synchronous>, transform_indices = @transform_5, window_bounds = array<i64: 256, 256>}, {pipeline_mode = #tpu.pipeline_mode<synchronous>, transform_indices = @transform_6, window_bounds = array<i64: 1, 256>}, {pipeline_mode = #tpu.pipeline_mode<synchronous>, transform_indices = @transform_7, window_bounds = array<i64: 256, 256>}, {pipeline_mode = #tpu.pipeline_mode<synchronous>, transform_indices = @transform_8, window_bounds = array<i64: 1, 256>}, {pipeline_mode = #tpu.pipeline_mode<synchronous>, transform_indices = @transform_9, window_bounds = array<i64: 1, 256>}, {pipeline_mode = #tpu.pipeline_mode<synchronous>, transform_indices = @transform_10, window_bounds = array<i64: 1, 1>}, {transform_indices = @transform_11, window_bounds = array<i64: 128, 128>}]} {
    %c0 = arith.constant 0 : index
    %c0_0 = arith.constant 0 : index
    %0 = vector.load %arg1[%c0, %c0_0] : memref<128x128xbf16, #tpu.memory_space<vmem>>, vector<128x128xbf16>
    %c0_1 = arith.constant 0 : index
    %c0_2 = arith.constant 0 : index
    %1 = vector.load %arg2[%c0_1, %c0_2] : memref<128x256xbf16, #tpu.memory_space<vmem>>, vector<128x256xbf16>
    %cst = arith.constant dense<0.000000e+00> : vector<128x256xf32>
    %2 = tpu.matmul %0, %1, %cst {dimension_numbers = #tpu.dot_dimension_numbers<[1], [0], [0], [1], [0, 0, 1, 1], [], []>} : vector<128x128xbf16>, vector<128x256xbf16>, vector<128x256xf32> -> vector<128x256xf32>
    %c0_3 = arith.constant 0 : index
    %c0_4 = arith.constant 0 : index
    %3 = vector.load %arg3[%c0_3, %c0_4] : memref<1x256xf32, #tpu.memory_space<vmem>>, vector<1x256xf32>
    %4 = vector.broadcast %3 : vector<1x256xf32> to vector<128x256xf32>
    %5 = arith.addf %2, %4 : vector<128x256xf32>
    %cst_5 = arith.constant 2.000000e-01 : f32
    %6 = vector.broadcast %cst_5 : f32 to vector<128x256xf32>
    %7 = arith.mulf %6, %5 : vector<128x256xf32>
    %8 = arith.maximumf %5, %7 : vector<128x256xf32>
    %9 = arith.truncf %8 : vector<128x256xf32> to vector<128x256xbf16>
    %c0_6 = arith.constant 0 : index
    %c0_7 = arith.constant 0 : index
    %10 = vector.load %arg4[%c0_6, %c0_7] : memref<256x256xbf16, #tpu.memory_space<vmem>>, vector<256x256xbf16>
    %cst_8 = arith.constant dense<0.000000e+00> : vector<128x256xf32>
    %11 = tpu.matmul %9, %10, %cst_8 {dimension_numbers = #tpu.dot_dimension_numbers<[1], [0], [0], [1], [0, 0, 1, 1], [], []>} : vector<128x256xbf16>, vector<256x256xbf16>, vector<128x256xf32> -> vector<128x256xf32>
    %c0_9 = arith.constant 0 : index
    %c0_10 = arith.constant 0 : index
    %12 = vector.load %arg5[%c0_9, %c0_10] : memref<1x256xf32, #tpu.memory_space<vmem>>, vector<1x256xf32>
    %13 = vector.broadcast %12 : vector<1x256xf32> to vector<128x256xf32>
    %14 = arith.addf %11, %13 : vector<128x256xf32>
    %cst_11 = arith.constant 2.000000e-01 : f32
    %15 = vector.broadcast %cst_11 : f32 to vector<128x256xf32>
    %16 = arith.mulf %15, %14 : vector<128x256xf32>
    %17 = arith.maximumf %14, %16 : vector<128x256xf32>
    %18 = arith.truncf %17 : vector<128x256xf32> to vector<128x256xbf16>
    %c0_12 = arith.constant 0 : index
    %c0_13 = arith.constant 0 : index
    %19 = vector.load %arg6[%c0_12, %c0_13] : memref<256x256xbf16, #tpu.memory_space<vmem>>, vector<256x256xbf16>
    %cst_14 = arith.constant dense<0.000000e+00> : vector<128x256xf32>
    %20 = tpu.matmul %18, %19, %cst_14 {dimension_numbers = #tpu.dot_dimension_numbers<[1], [0], [0], [1], [0, 0, 1, 1], [], []>} : vector<128x256xbf16>, vector<256x256xbf16>, vector<128x256xf32> -> vector<128x256xf32>
    %c0_15 = arith.constant 0 : index
    %c0_16 = arith.constant 0 : index
    %21 = vector.load %arg7[%c0_15, %c0_16] : memref<1x256xf32, #tpu.memory_space<vmem>>, vector<1x256xf32>
    %22 = vector.broadcast %21 : vector<1x256xf32> to vector<128x256xf32>
    %23 = arith.addf %20, %22 : vector<128x256xf32>
    %cst_17 = arith.constant 2.000000e-01 : f32
    %24 = vector.broadcast %cst_17 : f32 to vector<128x256xf32>
    %25 = arith.mulf %24, %23 : vector<128x256xf32>
    %26 = arith.maximumf %23, %25 : vector<128x256xf32>
    %27 = arith.truncf %26 : vector<128x256xf32> to vector<128x256xbf16>
    %c0_18 = arith.constant 0 : index
    %c0_19 = arith.constant 0 : index
    %28 = vector.load %arg8[%c0_18, %c0_19] : memref<256x256xbf16, #tpu.memory_space<vmem>>, vector<256x256xbf16>
    %cst_20 = arith.constant dense<0.000000e+00> : vector<128x256xf32>
    %29 = tpu.matmul %27, %28, %cst_20 {dimension_numbers = #tpu.dot_dimension_numbers<[1], [0], [0], [1], [0, 0, 1, 1], [], []>} : vector<128x256xbf16>, vector<256x256xbf16>, vector<128x256xf32> -> vector<128x256xf32>
    %c0_21 = arith.constant 0 : index
    %c0_22 = arith.constant 0 : index
    %30 = vector.load %arg9[%c0_21, %c0_22] : memref<1x256xf32, #tpu.memory_space<vmem>>, vector<1x256xf32>
    %31 = vector.broadcast %30 : vector<1x256xf32> to vector<128x256xf32>
    %32 = arith.addf %29, %31 : vector<128x256xf32>
    %cst_23 = arith.constant 2.000000e-01 : f32
    %33 = vector.broadcast %cst_23 : f32 to vector<128x256xf32>
    %34 = arith.mulf %33, %32 : vector<128x256xf32>
    %35 = arith.maximumf %32, %34 : vector<128x256xf32>
    %c0_24 = arith.constant 0 : index
    %c0_25 = arith.constant 0 : index
    %36 = vector.load %arg10[%c0_24, %c0_25] : memref<1x256xf32, #tpu.memory_space<vmem>>, vector<1x256xf32>
    %37 = vector.broadcast %36 : vector<1x256xf32> to vector<128x256xf32>
    %38 = arith.mulf %35, %37 : vector<128x256xf32>
    %cst_26 = arith.constant dense<0.000000e+00> : vector<128xf32>
    %39 = vector.multi_reduction <add>, %38, %cst_26 [1] : vector<128x256xf32> to vector<128xf32>
    %40 = vector.shape_cast %39 : vector<128xf32> to vector<128x1xf32>
    %c0_27 = arith.constant 0 : index
    %c0_28 = arith.constant 0 : index
    %41 = vector.load %arg11[%c0_27, %c0_28] : memref<1x1xf32, #tpu.memory_space<vmem>>, vector<1x1xf32>
    %42 = vector.broadcast %41 : vector<1x1xf32> to vector<128x1xf32>
    %43 = arith.addf %40, %42 : vector<128x1xf32>
    %44 = vector.shape_cast %43 : vector<128x1xf32> to vector<128x1xf32>
    %45 = vector.broadcast %44 : vector<128x1xf32> to vector<128x128xf32>
    %c0_29 = arith.constant 0 : index
    %c0_30 = arith.constant 0 : index
    %46 = vector.load %arg12[%c0_29, %c0_30] : memref<128x128xf32, #tpu.memory_space<vmem>>, vector<128x128xf32>
    tpu.vector_store %arg12[%c0_29, %c0_30], %45 {strides = array<i32>} : memref<128x128xf32, #tpu.memory_space<vmem>>, vector<128x128xf32>,
    return
  }
  func.func @transform_0(%arg0: i32) -> (i32, i32) {
    %c0_i32 = arith.constant 0 : i32
    %c0_i32_0 = arith.constant 0 : i32
    return %arg0, %c0_i32 : i32, i32
  }
  func.func @transform_1(%arg0: i32) -> (i32, i32) {
    %c0_i32 = arith.constant 0 : i32
    %c0_i32_0 = arith.constant 0 : i32
    %c0_i32_1 = arith.constant 0 : i32
    return %c0_i32, %c0_i32_0 : i32, i32
  }
  func.func @transform_2(%arg0: i32) -> (i32, i32) {
    %c0_i32 = arith.constant 0 : i32
    %c0_i32_0 = arith.constant 0 : i32
    %c0_i32_1 = arith.constant 0 : i32
    return %c0_i32, %c0_i32_0 : i32, i32
  }
  func.func @transform_3(%arg0: i32) -> (i32, i32) {
    %c0_i32 = arith.constant 0 : i32
    %c0_i32_0 = arith.constant 0 : i32
    %c0_i32_1 = arith.constant 0 : i32
    return %c0_i32, %c0_i32_0 : i32, i32
  }
  func.func @transform_4(%arg0: i32) -> (i32, i32) {
    %c0_i32 = arith.constant 0 : i32
    %c0_i32_0 = arith.constant 0 : i32
    %c0_i32_1 = arith.constant 0 : i32
    return %c0_i32, %c0_i32_0 : i32, i32
  }
  func.func @transform_5(%arg0: i32) -> (i32, i32) {
    %c0_i32 = arith.constant 0 : i32
    %c0_i32_0 = arith.constant 0 : i32
    %c0_i32_1 = arith.constant 0 : i32
    return %c0_i32, %c0_i32_0 : i32, i32
  }
  func.func @transform_6(%arg0: i32) -> (i32, i32) {
    %c0_i32 = arith.constant 0 : i32
    %c0_i32_0 = arith.constant 0 : i32
    %c0_i32_1 = arith.constant 0 : i32
    return %c0_i32, %c0_i32_0 : i32, i32
  }
  func.func @transform_7(%arg0: i32) -> (i32, i32) {
    %c0_i32 = arith.constant 0 : i32
    %c0_i32_0 = arith.constant 0 : i32
    %c0_i32_1 = arith.constant 0 : i32
    return %c0_i32, %c0_i32_0 : i32, i32
  }
  func.func @transform_8(%arg0: i32) -> (i32, i32) {
    %c0_i32 = arith.constant 0 : i32
    %c0_i32_0 = arith.constant 0 : i32
    %c0_i32_1 = arith.constant 0 : i32
    return %c0_i32, %c0_i32_0 : i32, i32
  }
  func.func @transform_9(%arg0: i32) -> (i32, i32) {
    %c0_i32 = arith.constant 0 : i32
    %c0_i32_0 = arith.constant 0 : i32
    %c0_i32_1 = arith.constant 0 : i32
    return %c0_i32, %c0_i32_0 : i32, i32
  }
  func.func @transform_10(%arg0: i32) -> (i32, i32) {
    %c0_i32 = arith.constant 0 : i32
    %c0_i32_0 = arith.constant 0 : i32
    %c0_i32_1 = arith.constant 0 : i32
    return %c0_i32, %c0_i32_0 : i32, i32
  }
  func.func @transform_11(%arg0: i32) -> (i32, i32) {
    %c0_i32 = arith.constant 0 : i32
    %c0_i32_0 = arith.constant 0 : i32
    return %arg0, %c0_i32 : i32, i32
  }
}

</mosaic_0001>

<llo_original>
// kernel: tpu_custom_call.1
$region0: #{tpu_custom_call.1}
  #allocation0 [shape = 'u32[]', space=smem, size = 0x4, offset = 0x4, fixed_abs, tag = 'smem constant byte address 0x4 - core index']
  #allocation1 [shape = 'u32[72,128]{1,0:T(1,128)}', space=vmem, size = 0x9000, scoped, tag = 'internal scratch']
  #allocation2 [shape = 'f32[1,1]{1,0:T(1,128)S(1)}', space=vmem, size = 0x200, scoped, tag = 'scoped memory for tpu_custom_call.1']
  %s0 = inlined_call_operand.hbm [shape: bf16[256,128], index: 0, kind: input, shape index: {}]
  %s1 = inlined_call_operand.hbm [shape: bf16[128,256], index: 1, kind: input, shape index: {}]
  %s2 = inlined_call_operand.vmem [shape: f32[1,256], index: 2, kind: input, shape index: {}]
  %s3 = inlined_call_operand.hbm [shape: bf16[256,256], index: 3, kind: input, shape index: {}]
  %s4 = inlined_call_operand.vmem [shape: f32[1,256], index: 4, kind: input, shape index: {}]
  %s5 = inlined_call_operand.hbm [shape: bf16[256,256], index: 5, kind: input, shape index: {}]
  %s6 = inlined_call_operand.vmem [shape: f32[1,256], index: 6, kind: input, shape index: {}]
  %s7 = inlined_call_operand.hbm [shape: bf16[256,256], index: 7, kind: input, shape index: {}]
  %s8 = inlined_call_operand.vmem [shape: f32[1,256], index: 8, kind: input, shape index: {}]
  %s9 = inlined_call_operand.vmem [shape: f32[1,256], index: 9, kind: input, shape index: {}]
  %s10 = inlined_call_operand.<no memory space> [shape: f32[1,1], index: 10, kind: input, shape index: {}]
  %s11 = inlined_call_operand.hbm [shape: f32[256,128], index: 11, kind: output, shape index: {}]
  %s12 = sld [smem:[#allocation0]]
  $region97: #{tpu_custom_call.1} parent=0
    _
  %s14 = ssub.s32 1, %s12
  %s15 = scalar_select 0, %s14, %s12
  %v16 = vstv %s10
  %17 = vst [vmem:[#allocation2] sm:$0x1] %v16
  $region1: #{tpu_custom_call.1} parent=0
    #allocation3 [shape = 'u8[65536]{0}', space=vmem, size = 0x10000, scoped, tag = 'input window, operand 0']
    #allocation4 [shape = 's32[2]{0}', space=sflag, size = 0x8, scoped, tag = 'scoped memory for tpu_custom_call.1']
    #allocation5 [shape = 's32[2]{0}', space=sflag, size = 0x8, scoped, tag = 'scoped memory for tpu_custom_call.1']
    #allocation6 [shape = 'u8[65536]{0}', space=vmem, size = 0x10000, scoped, tag = 'input window, operand 1, single buffered']
    #allocation7 [shape = 's32[1]{0}', space=sflag, size = 0x4, scoped, tag = 'scoped memory for tpu_custom_call.1']
    #allocation8 [shape = 'u8[131072]{0}', space=vmem, size = 0x20000, scoped, tag = 'input window, operand 3, single buffered']
    #allocation9 [shape = 'u8[131072]{0}', space=vmem, size = 0x20000, scoped, tag = 'input window, operand 5, single buffered']
    #allocation10 [shape = 's32[1]{0}', space=sflag, size = 0x4, scoped, tag = 'scoped memory for tpu_custom_call.1']
    #allocation11 [shape = 'u8[131072]{0}', space=vmem, size = 0x20000, scoped, tag = 'input window, operand 7, single buffered']
    #allocation12 [shape = 'u8[131072]{0}', space=vmem, size = 0x20000, scoped, tag = 'output window, operand 0']
    %18 = vsyncpa [#allocation4], 0
    %s19 = scalar_lea.sflag [#allocation4], 1
    %20 = vsyncpa %s19, 0
    %21 = vsyncpa [#allocation7], 0
    %22 = vsyncpa [#allocation10], 0
    %23 = vsyncpa [#allocation5], 0
    %s24 = scalar_lea.sflag [#allocation5], 1
    %25 = vsyncpa %s24, 0
    loop: start=0, step=1, limit=4
    $region2: #{tpu_custom_call.1} parent=1 // loop_pre_header
      _
    $region3: #{tpu_custom_call.1} parent=1 // loop_header
      %s27 = sphi 0, %s31
      %p28 = scmp.ge.s32.totalorder %s27, 4
      %s37 = sphi 0, %s39
      %s40 = sphi 0, %s37
      %s41 = sphi 0, %s40
      %s57 = sphi 0, %s41
      %s61 = sphi 0, %s61
      %s63 = sphi 0, %s61
      %s64 = sphi 0, %s63
      %s78 = sphi 0, %s64
      %s82 = sphi 0, %s82
      %s84 = sphi 0, %s82
      %s85 = sphi 0, %s84
      %s99 = sphi 0, %s85
      %s103 = sphi 0, %s103
      %s105 = sphi 0, %s103
      %s106 = sphi 0, %s105
      %s120 = sphi 0, %s106
      %s124 = sphi 0, %s124
      %s126 = sphi 0, %s124
      %s127 = sphi 0, %s126
      %s141 = sphi 0, %s127
      %s145 = sphi 0, %s145
      %s147 = sphi 0, %s145
      %s148 = sphi 0, %s147
      %s162 = sphi 0, %s148
      %s166 = sphi 0, %s166
      %s168 = sphi 0, %s166
      %s169 = sphi 0, %s168
      %s183 = sphi 0, %s169
      %s187 = sphi 0, %s187
      %s189 = sphi 0, %s187
      %s190 = sphi 0, %s189
      %s204 = sphi 0, %s190
      %s208 = sphi 0, %s208
      %s210 = sphi 0, %s208
      %s211 = sphi 0, %s210
      %s225 = sphi 0, %s211
      %s229 = sphi 0, %s229
      %s231 = sphi 0, %s229
      %s232 = sphi 0, %s231
      %s246 = sphi 0, %s232
      %s250 = sphi 0, %s250
      %s252 = sphi 0, %s250
      %s253 = sphi 0, %s252
      %s267 = sphi 0, %s253
      %s273 = sphi 0, %s275
      %s276 = sphi 0, %s273
      %s277 = sphi 0, %s276
      %s293 = sphi 0, %s277
    $region4: #{tpu_custom_call.1} parent=1 // loop_header_branch
      %30 = sbr.rel (%p28) target = $region8
    $region5: #{tpu_custom_call.1} parent=1 // loop_body
      %s32 = ssub.s32 %s27, 1
      %s33 = ssub.s32 %s27, 2
      %s34 = sadd.s32 %s27, 1
      %s35 = ssub.s32 %s27, %s34
      %p36 = scmp.eq.s32.totalorder %s35, 0
      %s38 = sadd.s32 %s37, 1
      %s39 = scalar_select %p36, %s37, %s38
      %p42 = pneg %p36
      %p43 = scmp.eq.s32.totalorder %s27, 1
      %p44 = por %p42, %p43
      %p45 = scmp.ne.s32.totalorder %s37, %s40
      %p46 = scmp.eq.s32.totalorder %s27, 0
      %p47 = por %p45, %p46
      %p48 = scmp.ne.s32.totalorder %s37, %s40
      %p49 = scmp.eq.s32.totalorder %s32, 1
      %p50 = por %p48, %p49
      %p51 = scmp.ne.s32.totalorder %s40, %s41
      %p52 = scmp.eq.s32.totalorder %s32, 0
      %p53 = por %p51, %p52
      %p54 = scmp.ne.s32.totalorder %s40, %s41
      %p55 = scmp.eq.s32.totalorder %s33, 1
      %p56 = por %p54, %p55
      %p58 = scmp.ne.s32.totalorder %s41, %s57
      %p59 = scmp.eq.s32.totalorder %s33, 0
      %p60 = por %p58, %p59
      %s62 = sadd.s32 %s61, 1
      %p65 = scmp.eq.s32.totalorder %s27, 1
      %p66 = scmp.ne.s32.totalorder %s61, %s63
      %p67 = scmp.eq.s32.totalorder %s27, 0
      %p68 = por %p66, %p67
      %p69 = scmp.ne.s32.totalorder %s61, %s63
      %p70 = scmp.eq.s32.totalorder %s32, 1
      %p71 = por %p69, %p70
      %p72 = scmp.ne.s32.totalorder %s63, %s64
      %p73 = scmp.eq.s32.totalorder %s32, 0
      %p74 = por %p72, %p73
      %p75 = scmp.ne.s32.totalorder %s63, %s64
      %p76 = scmp.eq.s32.totalorder %s33, 1
      %p77 = por %p75, %p76
      %p79 = scmp.ne.s32.totalorder %s64, %s78
      %p80 = scmp.eq.s32.totalorder %s33, 0
      %p81 = por %p79, %p80
      %s83 = sadd.s32 %s82, 1
      %p86 = scmp.eq.s32.totalorder %s27, 1
      %p87 = scmp.ne.s32.totalorder %s82, %s84
      %p88 = scmp.eq.s32.totalorder %s27, 0
      %p89 = por %p87, %p88
      %p90 = scmp.ne.s32.totalorder %s82, %s84
      %p91 = scmp.eq.s32.totalorder %s32, 1
      %p92 = por %p90, %p91
      %p93 = scmp.ne.s32.totalorder %s84, %s85
      %p94 = scmp.eq.s32.totalorder %s32, 0
      %p95 = por %p93, %p94
      %p96 = scmp.ne.s32.totalorder %s84, %s85
      %p97 = scmp.eq.s32.totalorder %s33, 1
      %p98 = por %p96, %p97
      %p100 = scmp.ne.s32.totalorder %s85, %s99
      %p101 = scmp.eq.s32.totalorder %s33, 0
      %p102 = por %p100, %p101
      %s104 = sadd.s32 %s103, 1
      %p107 = scmp.eq.s32.totalorder %s27, 1
      %p108 = scmp.ne.s32.totalorder %s103, %s105
      %p109 = scmp.eq.s32.totalorder %s27, 0
      %p110 = por %p108, %p109
      %p111 = scmp.ne.s32.totalorder %s103, %s105
      %p112 = scmp.eq.s32.totalorder %s32, 1
      %p113 = por %p111, %p112
      %p114 = scmp.ne.s32.totalorder %s105, %s106
      %p115 = scmp.eq.s32.totalorder %s32, 0
      %p116 = por %p114, %p115
      %p117 = scmp.ne.s32.totalorder %s105, %s106
      %p118 = scmp.eq.s32.totalorder %s33, 1
      %p119 = por %p117, %p118
      %p121 = scmp.ne.s32.totalorder %s106, %s120
      %p122 = scmp.eq.s32.totalorder %s33, 0
      %p123 = por %p121, %p122
      %s125 = sadd.s32 %s124, 1
      %p128 = scmp.eq.s32.totalorder %s27, 1
      %p129 = scmp.ne.s32.totalorder %s124, %s126
      %p130 = scmp.eq.s32.totalorder %s27, 0
      %p131 = por %p129, %p130
      %p132 = scmp.ne.s32.totalorder %s124, %s126
      %p133 = scmp.eq.s32.totalorder %s32, 1
      %p134 = por %p132, %p133
      %p135 = scmp.ne.s32.totalorder %s126, %s127
      %p136 = scmp.eq.s32.totalorder %s32, 0
      %p137 = por %p135, %p136
      %p138 = scmp.ne.s32.totalorder %s126, %s127
      %p139 = scmp.eq.s32.totalorder %s33, 1
      %p140 = por %p138, %p139
      %p142 = scmp.ne.s32.totalorder %s127, %s141
      %p143 = scmp.eq.s32.totalorder %s33, 0
      %p144 = por %p142, %p143
      %s146 = sadd.s32 %s145, 1
      %p149 = scmp.eq.s32.totalorder %s27, 1
      %p150 = scmp.ne.s32.totalorder %s145, %s147
      %p151 = scmp.eq.s32.totalorder %s27, 0
      %p152 = por %p150, %p151
      %p153 = scmp.ne.s32.totalorder %s145, %s147
      %p154 = scmp.eq.s32.totalorder %s32, 1
      %p155 = por %p153, %p154
      %p156 = scmp.ne.s32.totalorder %s147, %s148
      %p157 = scmp.eq.s32.totalorder %s32, 0
      %p158 = por %p156, %p157
      %p159 = scmp.ne.s32.totalorder %s147, %s148
      %p160 = scmp.eq.s32.totalorder %s33, 1
      %p161 = por %p159, %p160
      %p163 = scmp.ne.s32.totalorder %s148, %s162
      %p164 = scmp.eq.s32.totalorder %s33, 0
      %p165 = por %p163, %p164
      %s167 = sadd.s32 %s166, 1
      %p170 = scmp.eq.s32.totalorder %s27, 1
      %p171 = scmp.ne.s32.totalorder %s166, %s168
      %p172 = scmp.eq.s32.totalorder %s27, 0
      %p173 = por %p171, %p172
      %p174 = scmp.ne.s32.totalorder %s166, %s168
      %p175 = scmp.eq.s32.totalorder %s32, 1
      %p176 = por %p174, %p175
      %p177 = scmp.ne.s32.totalorder %s168, %s169
      %p178 = scmp.eq.s32.totalorder %s32, 0
      %p179 = por %p177, %p178
      %p180 = scmp.ne.s32.totalorder %s168, %s169
      %p181 = scmp.eq.s32.totalorder %s33, 1
      %p182 = por %p180, %p181
      %p184 = scmp.ne.s32.totalorder %s169, %s183
      %p185 = scmp.eq.s32.totalorder %s33, 0
      %p186 = por %p184, %p185
      %s188 = sadd.s32 %s187, 1
      %p191 = scmp.eq.s32.totalorder %s27, 1
      %p192 = scmp.ne.s32.totalorder %s187, %s189
      %p193 = scmp.eq.s32.totalorder %s27, 0
      %p194 = por %p192, %p193
      %p195 = scmp.ne.s32.totalorder %s187, %s189
      %p196 = scmp.eq.s32.totalorder %s32, 1
      %p197 = por %p195, %p196
      %p198 = scmp.ne.s32.totalorder %s189, %s190
      %p199 = scmp.eq.s32.totalorder %s32, 0
      %p200 = por %p198, %p199
      %p201 = scmp.ne.s32.totalorder %s189, %s190
      %p202 = scmp.eq.s32.totalorder %s33, 1
      %p203 = por %p201, %p202
      %p205 = scmp.ne.s32.totalorder %s190, %s204
      %p206 = scmp.eq.s32.totalorder %s33, 0
      %p207 = por %p205, %p206
      %s209 = sadd.s32 %s208, 1
      %p212 = scmp.eq.s32.totalorder %s27, 1
      %p213 = scmp.ne.s32.totalorder %s208, %s210
      %p214 = scmp.eq.s32.totalorder %s27, 0
      %p215 = por %p213, %p214
      %p216 = scmp.ne.s32.totalorder %s208, %s210
      %p217 = scmp.eq.s32.totalorder %s32, 1
      %p218 = por %p216, %p217
      %p219 = scmp.ne.s32.totalorder %s210, %s211
      %p220 = scmp.eq.s32.totalorder %s32, 0
      %p221 = por %p219, %p220
      %p222 = scmp.ne.s32.totalorder %s210, %s211
      %p223 = scmp.eq.s32.totalorder %s33, 1
      %p224 = por %p222, %p223
      %p226 = scmp.ne.s32.totalorder %s211, %s225
      %p227 = scmp.eq.s32.totalorder %s33, 0
      %p228 = por %p226, %p227
      %s230 = sadd.s32 %s229, 1
      %p233 = scmp.eq.s32.totalorder %s27, 1
      %p234 = scmp.ne.s32.totalorder %s229, %s231
      %p235 = scmp.eq.s32.totalorder %s27, 0
      %p236 = por %p234, %p235
      %p237 = scmp.ne.s32.totalorder %s229, %s231
      %p238 = scmp.eq.s32.totalorder %s32, 1
      %p239 = por %p237, %p238
      %p240 = scmp.ne.s32.totalorder %s231, %s232
      %p241 = scmp.eq.s32.totalorder %s32, 0
      %p242 = por %p240, %p241
      %p243 = scmp.ne.s32.totalorder %s231, %s232
      %p244 = scmp.eq.s32.totalorder %s33, 1
      %p245 = por %p243, %p244
      %p247 = scmp.ne.s32.totalorder %s232, %s246
      %p248 = scmp.eq.s32.totalorder %s33, 0
      %p249 = por %p247, %p248
      %s251 = sadd.s32 %s250, 1
      %p254 = scmp.eq.s32.totalorder %s27, 1
      %p255 = scmp.ne.s32.totalorder %s250, %s252
      %p256 = scmp.eq.s32.totalorder %s27, 0
      %p257 = por %p255, %p256
      %p258 = scmp.ne.s32.totalorder %s250, %s252
      %p259 = scmp.eq.s32.totalorder %s32, 1
      %p260 = por %p258, %p259
      %p261 = scmp.ne.s32.totalorder %s252, %s253
      %p262 = scmp.eq.s32.totalorder %s32, 0
      %p263 = por %p261, %p262
      %p264 = scmp.ne.s32.totalorder %s252, %s253
      %p265 = scmp.eq.s32.totalorder %s33, 1
      %p266 = por %p264, %p265
      %p268 = scmp.ne.s32.totalorder %s253, %s267
      %p269 = scmp.eq.s32.totalorder %s33, 0
      %p270 = por %p268, %p269
      %s271 = ssub.s32 %s27, %s34
      %p272 = scmp.eq.s32.totalorder %s271, 0
      %s274 = sadd.s32 %s273, 1
      %s275 = scalar_select %p272, %s273, %s274
      %p278 = pneg %p272
      %p279 = scmp.eq.s32.totalorder %s27, 1
      %p280 = por %p278, %p279
      %p281 = scmp.ne.s32.totalorder %s273, %s276
      %p282 = scmp.eq.s32.totalorder %s27, 0
      %p283 = por %p281, %p282
      %p284 = scmp.ne.s32.totalorder %s273, %s276
      %p285 = scmp.eq.s32.totalorder %s32, 1
      %p286 = por %p284, %p285
      %p287 = scmp.ne.s32.totalorder %s276, %s277
      %p288 = scmp.eq.s32.totalorder %s32, 0
      %p289 = por %p287, %p288
      %p290 = scmp.ne.s32.totalorder %s276, %s277
      %p291 = scmp.eq.s32.totalorder %s33, 1
      %p292 = por %p290, %p291
      %p294 = scmp.ne.s32.totalorder %s277, %s293
      %p295 = scmp.eq.s32.totalorder %s33, 0
      %p296 = por %p294, %p295
      %p297 = scmp.le.s32.totalorder 1, %s27
      %p298 = scmp.lt.s32.totalorder %s27, 3
      %p299 = pnand %p297, %p298
      %p300 = pneg %p299
      // Predicated region
      $region9: #{tpu_custom_call.1} parent=5 // pred_check
        _
      $region10: #{tpu_custom_call.1} parent=5 // pred_check_branch
        %302 = sbr.rel (%p299) target = $region12
      $region11: #{tpu_custom_call.1} parent=5 // pred_region
        %s303 = ssub.s32 %s27, 1
        // Predicated region
        $region13: #{tpu_custom_call.1} parent=11 // pred_check
          %p304 = pneg %p74
        $region14: #{tpu_custom_call.1} parent=11 // pred_check_branch
          %306 = sbr.rel (%p304) target = $region16
        $region15: #{tpu_custom_call.1} parent=11 // pred_region
          %308 = vsyncadd [#allocation7], 0
          %s309 = sshll.u32 %s1, 4
          %s310 = int_to_ptr.hbm [resolvable:$true] %s309
          %s311 = sshll.u32 [#allocation6], 4
          %s312 = int_to_ptr.vmem [resolvable:$true] %s311
          %317 = dma.hbm_to_vmem [thread:$0]  %s310, 2048, %s312, [#allocation7], 128, 128, 8
        $region16: #{tpu_custom_call.1} parent=11 // pred_fallthru
          _
        // Predicated region
        $region17: #{tpu_custom_call.1} parent=11 // pred_check
          %p318 = pneg %p95
        $region18: #{tpu_custom_call.1} parent=11 // pred_check_branch
          %320 = sbr.rel (%p318) target = $region20
        $region19: #{tpu_custom_call.1} parent=11 // pred_region
          _
        $region20: #{tpu_custom_call.1} parent=11 // pred_fallthru
          _
        // Predicated region
        $region21: #{tpu_custom_call.1} parent=11 // pred_check
          %p321 = pneg %p116
        $region22: #{tpu_custom_call.1} parent=11 // pred_check_branch
          %323 = sbr.rel (%p321) target = $region24
        $region23: #{tpu_custom_call.1} parent=11 // pred_region
          %325 = vsyncadd [#allocation7], 0
          %s326 = sshll.u32 %s3, 4
          %s327 = int_to_ptr.hbm [resolvable:$true] %s326
          %s328 = sshll.u32 [#allocation8], 4
          %s329 = int_to_ptr.vmem [resolvable:$true] %s328
          %334 = dma.hbm_to_vmem [thread:$0]  %s327, 4096, %s329, [#allocation7], 128, 128, 8
        $region24: #{tpu_custom_call.1} parent=11 // pred_fallthru
          _
        // Predicated region
        $region25: #{tpu_custom_call.1} parent=11 // pred_check
          %p335 = pneg %p137
        $region26: #{tpu_custom_call.1} parent=11 // pred_check_branch
          %337 = sbr.rel (%p335) target = $region28
        $region27: #{tpu_custom_call.1} parent=11 // pred_region
          _
        $region28: #{tpu_custom_call.1} parent=11 // pred_fallthru
          _
        // Predicated region
        $region29: #{tpu_custom_call.1} parent=11 // pred_check
          %p338 = pneg %p158
        $region30: #{tpu_custom_call.1} parent=11 // pred_check_branch
          %340 = sbr.rel (%p338) target = $region32
        $region31: #{tpu_custom_call.1} parent=11 // pred_region
          %342 = vsyncadd [#allocation10], 0
          %s343 = sshll.u32 %s5, 4
          %s344 = int_to_ptr.hbm [resolvable:$true] %s343
          %s345 = sshll.u32 [#allocation9], 4
          %s346 = int_to_ptr.vmem [resolvable:$true] %s345
          %351 = dma.hbm_to_vmem [thread:$0]  %s344, 4096, %s346, [#allocation10], 128, 128, 8
        $region32: #{tpu_custom_call.1} parent=11 // pred_fallthru
          _
        // Predicated region
        $region33: #{tpu_custom_call.1} parent=11 // pred_check
          %p352 = pneg %p179
        $region34: #{tpu_custom_call.1} parent=11 // pred_check_branch
          %354 = sbr.rel (%p352) target = $region36
        $region35: #{tpu_custom_call.1} parent=11 // pred_region
          _
        $region36: #{tpu_custom_call.1} parent=11 // pred_fallthru
          _
        // Predicated region
        $region37: #{tpu_custom_call.1} parent=11 // pred_check
          %p355 = pneg %p200
        $region38: #{tpu_custom_call.1} parent=11 // pred_check_branch
          %357 = sbr.rel (%p355) target = $region40
        $region39: #{tpu_custom_call.1} parent=11 // pred_region
          %359 = vsyncadd [#allocation10], 0
          %s360 = sshll.u32 %s7, 4
          %s361 = int_to_ptr.hbm [resolvable:$true] %s360
          %s362 = sshll.u32 [#allocation11], 4
          %s363 = int_to_ptr.vmem [resolvable:$true] %s362
          %368 = dma.hbm_to_vmem [thread:$0]  %s361, 4096, %s363, [#allocation10], 128, 128, 8
        $region40: #{tpu_custom_call.1} parent=11 // pred_fallthru
          _
        // Predicated region
        $region41: #{tpu_custom_call.1} parent=11 // pred_check
          %p369 = pneg %p221
        $region42: #{tpu_custom_call.1} parent=11 // pred_check_branch
          %371 = sbr.rel (%p369) target = $region44
        $region43: #{tpu_custom_call.1} parent=11 // pred_region
          _
        $region44: #{tpu_custom_call.1} parent=11 // pred_fallthru
          _
        // Predicated region
        $region45: #{tpu_custom_call.1} parent=11 // pred_check
          %p372 = pneg %p242
        $region46: #{tpu_custom_call.1} parent=11 // pred_check_branch
          %374 = sbr.rel (%p372) target = $region48
        $region47: #{tpu_custom_call.1} parent=11 // pred_region
          _
        $region48: #{tpu_custom_call.1} parent=11 // pred_fallthru
          _
        // Predicated region
        $region49: #{tpu_custom_call.1} parent=11 // pred_check
          %p375 = pneg %p263
        $region50: #{tpu_custom_call.1} parent=11 // pred_check_branch
          %377 = sbr.rel (%p375) target = $region52
        $region51: #{tpu_custom_call.1} parent=11 // pred_region
          _
        $region52: #{tpu_custom_call.1} parent=11 // pred_fallthru
          _
      $region12: #{tpu_custom_call.1} parent=5 // pred_fallthru
        _
      %p378 = scmp.lt.s32.totalorder %s27, 2
      // Predicated region
      $region53: #{tpu_custom_call.1} parent=5 // pred_check
        %p379 = pneg %p378
      $region54: #{tpu_custom_call.1} parent=5 // pred_check_branch
        %381 = sbr.rel (%p379) target = $region56
      $region55: #{tpu_custom_call.1} parent=5 // pred_region
        // Predicated region
        $region57: #{tpu_custom_call.1} parent=55 // pred_check
          %p382 = pneg %p47
        $region58: #{tpu_custom_call.1} parent=55 // pred_check_branch
          %384 = sbr.rel (%p382) target = $region60
        $region59: #{tpu_custom_call.1} parent=55 // pred_region
          %s385 = sand.u32 %s37, 1
          %s386 = scalar_lea.sflag [#allocation4], %s385
          %s387 = sand.u32 %s37, 1
          %s388 = smul.addr %s387, 64
          %s389 = scalar_lea.vmem [#allocation3], %s388
          %s390 = smul.u32 16, %s27
          %392 = vsyncadd %s386, 0
          %s393 = smul.addr %s390, 4
          %s394 = scalar_lea.hbm %s0, %s393
          %s395 = sshll.u32 %s394, 4
          %s396 = int_to_ptr.hbm [resolvable:$true] %s395
          %s397 = sshll.u32 %s389, 4
          %s398 = int_to_ptr.vmem [resolvable:$true] %s397
          %403 = dma.hbm_to_vmem [thread:$0]  %s396, 1024, %s398, %s386, 64, 64, 4
        $region60: #{tpu_custom_call.1} parent=55 // pred_fallthru
          _
      $region56: #{tpu_custom_call.1} parent=5 // pred_fallthru
        _
      %p404 = scmp.le.s32.totalorder 1, %s27
      %p405 = scmp.lt.s32.totalorder %s27, 3
      %p406 = pnand %p404, %p405
      %p407 = pneg %p406
      // Predicated region
      $region61: #{tpu_custom_call.1} parent=5 // pred_check
        _
      $region62: #{tpu_custom_call.1} parent=5 // pred_check_branch
        %409 = sbr.rel (%p406) target = $region64
      $region63: #{tpu_custom_call.1} parent=5 // pred_region
        %s410 = ssub.s32 %s27, 1
        %s411 = sand.u32 %s40, 1
        %s412 = scalar_lea.sflag [#allocation4], %s411
        %s413 = sand.u32 %s40, 1
        %s414 = smul.addr %s413, 64
        %s415 = scalar_lea.vmem [#allocation3], %s414
        // Predicated region
        $region65: #{tpu_custom_call.1} parent=63 // pred_check
          %p416 = pneg %p53
        $region66: #{tpu_custom_call.1} parent=63 // pred_check_branch
          %418 = sbr.rel (%p416) target = $region68
        $region67: #{tpu_custom_call.1} parent=63 // pred_region
          %420 = dma.done %s412, 1024
        $region68: #{tpu_custom_call.1} parent=63 // pred_fallthru
          _
        // Predicated region
        $region69: #{tpu_custom_call.1} parent=63 // pred_check
          %p421 = pneg %p74
        $region70: #{tpu_custom_call.1} parent=63 // pred_check_branch
          %423 = sbr.rel (%p421) target = $region72
        $region71: #{tpu_custom_call.1} parent=63 // pred_region
          %425 = dma.done [#allocation7], 2048
        $region72: #{tpu_custom_call.1} parent=63 // pred_fallthru
          _
        // Predicated region
        $region73: #{tpu_custom_call.1} parent=63 // pred_check
          %p426 = pneg %p116
        $region74: #{tpu_custom_call.1} parent=63 // pred_check_branch
          %428 = sbr.rel (%p426) target = $region76
        $region75: #{tpu_custom_call.1} parent=63 // pred_region
          %430 = dma.done [#allocation7], 4096
        $region76: #{tpu_custom_call.1} parent=63 // pred_fallthru
          _
        // Predicated region
        $region77: #{tpu_custom_call.1} parent=63 // pred_check
          %p431 = pneg %p158
        $region78: #{tpu_custom_call.1} parent=63 // pred_check_branch
          %433 = sbr.rel (%p431) target = $region80
        $region79: #{tpu_custom_call.1} parent=63 // pred_region
          %435 = dma.done [#allocation10], 4096
        $region80: #{tpu_custom_call.1} parent=63 // pred_fallthru
          _
        // Predicated region
        $region81: #{tpu_custom_call.1} parent=63 // pred_check
          %p436 = pneg %p200
        $region82: #{tpu_custom_call.1} parent=63 // pred_check_branch
          %438 = sbr.rel (%p436) target = $region84
        $region83: #{tpu_custom_call.1} parent=63 // pred_region
          %440 = dma.done [#allocation10], 4096
        $region84: #{tpu_custom_call.1} parent=63 // pred_fallthru
          _
        %s441 = sand.u32 %s40, 1
        %s442 = scalar_lea.sflag [#allocation4], %s441
        %s443 = sand.u32 %s40, 1
        %s444 = smul.addr %s443, 64
        %s445 = scalar_lea.vmem [#allocation3], %s444
        %p446 = pneg %p53
        %p447 = pneg %p50
        %p448 = pneg %p74
        %p449 = pneg %p71
        %p450 = pneg %p95
        %p451 = pneg %p92
        %p452 = pneg %p116
        %p453 = pneg %p113
        %p454 = pneg %p137
        %p455 = pneg %p134
        %p456 = pneg %p158
        %p457 = pneg %p155
        %p458 = pneg %p179
        %p459 = pneg %p176
        %p460 = pneg %p200
        %p461 = pneg %p197
        %p462 = pneg %p221
        %p463 = pneg %p218
        %p464 = pneg %p242
        %p465 = pneg %p239
        %p466 = pneg %p263
        %p467 = pneg %p260
        %p468 = pneg %p289
        %p469 = pneg %p286
        %s470 = sand.u32 %s276, 1
        %s471 = scalar_lea.sflag [#allocation5], %s470
        %s472 = sand.u32 %s276, 1
        %s473 = smul.addr %s472, 128
        %s474 = scalar_lea.vmem [#allocation12], %s473
        %s475 = smul.u32 16, %s32
        %s476 = smul.u32 16, %s32
        %v477 = vld [vmem:[%s415] sm:$0xf]
        %v478 = vld [vmem:[%s415 + $0x4] sm:$0xf]
        %v479 = vld [vmem:[%s415 + $0x8] sm:$0xf]
        %v480 = vld [vmem:[%s415 + $0xc] sm:$0xf]
        %v481 = vld [vmem:[%s415 + $0x10] sm:$0xf]
        %v482 = vld [vmem:[%s415 + $0x14] sm:$0xf]
        %v483 = vld [vmem:[%s415 + $0x18] sm:$0xf]
        %v484 = vld [vmem:[%s415 + $0x1c] sm:$0xf]
        %v485 = vld [vmem:[%s415 + $0x20] sm:$0xf]
        %v486 = vld [vmem:[%s415 + $0x24] sm:$0xf]
        %v487 = vld [vmem:[%s415 + $0x28] sm:$0xf]
        %v488 = vld [vmem:[%s415 + $0x2c] sm:$0xf]
        %v489 = vld [vmem:[%s415 + $0x30] sm:$0xf]
        %v490 = vld [vmem:[%s415 + $0x34] sm:$0xf]
        %v491 = vld [vmem:[%s415 + $0x38] sm:$0xf]
        %v492 = vld [vmem:[%s415 + $0x3c] sm:$0xf]
        %v493 = vld [vmem:[#allocation6] sm:$0xff]
        %v494 = vld [vmem:[#allocation6 + $0x8] sm:$0xff]
        %v495 = vld [vmem:[#allocation6 + $0x10] sm:$0xff]
        %v496 = vld [vmem:[#allocation6 + $0x18] sm:$0xff]
        %v497 = vld [vmem:[#allocation6 + $0x20] sm:$0xff]
        %v498 = vld [vmem:[#allocation6 + $0x28] sm:$0xff]
        %v499 = vld [vmem:[#allocation6 + $0x30] sm:$0xff]
        %v500 = vld [vmem:[#allocation6 + $0x38] sm:$0xff]
        %v501 = vld [vmem:[#allocation6 + $0x40] sm:$0xff]
        %v502 = vld [vmem:[#allocation6 + $0x48] sm:$0xff]
        %v503 = vld [vmem:[#allocation6 + $0x50] sm:$0xff]
        %v504 = vld [vmem:[#allocation6 + $0x58] sm:$0xff]
        %v505 = vld [vmem:[#allocation6 + $0x60] sm:$0xff]
        %v506 = vld [vmem:[#allocation6 + $0x68] sm:$0xff]
        %v507 = vld [vmem:[#allocation6 + $0x70] sm:$0xff]
        %v508 = vld [vmem:[#allocation6 + $0x78] sm:$0xff]
        %v509 = vld [vmem:[%s2] sm:$0x3]
        %v511 = vperm.slane %v509, 0
        %v512 = vperm.slane %v509, 1
        %v531 = vunpack.c.l.b16 %v477
        %v532 = vunpack.c.l.b16 %v478
        %v533 = vunpack.c.l.b16 %v479
        %v534 = vunpack.c.l.b16 %v480
        %v535 = vunpack.c.l.b16 %v481
        %v536 = vunpack.c.l.b16 %v482
        %v537 = vunpack.c.l.b16 %v483
        %v538 = vunpack.c.l.b16 %v484
        %v539 = vunpack.c.l.b16 %v485
        %v540 = vunpack.c.l.b16 %v486
        %v541 = vunpack.c.l.b16 %v487
        %v542 = vunpack.c.l.b16 %v488
        %v543 = vunpack.c.l.b16 %v489
        %v544 = vunpack.c.l.b16 %v490
        %v545 = vunpack.c.l.b16 %v491
        %v546 = vunpack.c.l.b16 %v492
        %v547 = vpack.c.b16 %v532, %v531
        %v548 = vpack.c.b16 %v534, %v533
        %v549 = vpack.c.b16 %v536, %v535
        %v550 = vpack.c.b16 %v538, %v537
        %v551 = vpack.c.b16 %v540, %v539
        %v552 = vpack.c.b16 %v542, %v541
        %v553 = vpack.c.b16 %v544, %v543
        %v554 = vpack.c.b16 %v546, %v545
        %v579 = vunpack.c.l.b16 %v493
        %v580 = vunpack.c.h.b16 %v493
        %v581 = vunpack.c.l.b16 %v494
        %v582 = vunpack.c.h.b16 %v494
        %v583 = vunpack.c.l.b16 %v495
        %v584 = vunpack.c.h.b16 %v495
        %v585 = vunpack.c.l.b16 %v496
        %v586 = vunpack.c.h.b16 %v496
        %v587 = vunpack.c.l.b16 %v497
        %v588 = vunpack.c.h.b16 %v497
        %v589 = vunpack.c.l.b16 %v498
        %v590 = vunpack.c.h.b16 %v498
        %v591 = vunpack.c.l.b16 %v499
        %v592 = vunpack.c.h.b16 %v499
        %v593 = vunpack.c.l.b16 %v500
        %v594 = vunpack.c.h.b16 %v500
        %v595 = vunpack.c.l.b16 %v501
        %v596 = vunpack.c.h.b16 %v501
        %v597 = vunpack.c.l.b16 %v502
        %v598 = vunpack.c.h.b16 %v502
        %v599 = vunpack.c.l.b16 %v503
        %v600 = vunpack.c.h.b16 %v503
        %v601 = vunpack.c.l.b16 %v504
        %v602 = vunpack.c.h.b16 %v504
        %v603 = vunpack.c.l.b16 %v505
        %v604 = vunpack.c.h.b16 %v505
        %v605 = vunpack.c.l.b16 %v506
        %v606 = vunpack.c.h.b16 %v506
        %v607 = vunpack.c.l.b16 %v507
        %v608 = vunpack.c.h.b16 %v507
        %v609 = vunpack.c.l.b16 %v508
        %v610 = vunpack.c.h.b16 %v508
        %v611 = vpack.c.b16 %v581, %v579
        %v612 = vpack.c.b16 %v582, %v580
        %v613 = vpack.c.b16 %v585, %v583
        %v614 = vpack.c.b16 %v586, %v584
        %v615 = vpack.c.b16 %v589, %v587
        %v616 = vpack.c.b16 %v590, %v588
        %v617 = vpack.c.b16 %v593, %v591
        %v618 = vpack.c.b16 %v594, %v592
        %v619 = vpack.c.b16 %v597, %v595
        %v620 = vpack.c.b16 %v598, %v596
        %v621 = vpack.c.b16 %v601, %v599
        %v622 = vpack.c.b16 %v602, %v600
        %v623 = vpack.c.b16 %v605, %v603
        %v624 = vpack.c.b16 %v606, %v604
        %v625 = vpack.c.b16 %v609, %v607
        %v626 = vpack.c.b16 %v610, %v608
        %643 = vmatpush.bf16.msra.mxu0 %v625
        %644 = vmatpush.bf16.msra.mxu0 %v623
        %645 = vmatpush.bf16.msra.mxu0 %v621
        %646 = vmatpush.bf16.msra.mxu0 %v619
        %647 = vmatpush.bf16.msra.mxu0 %v617
        %648 = vmatpush.bf16.msra.mxu0 %v615
        %649 = vmatpush.bf16.msra.mxu0 %v613
        %650 = vmatpush.bf16.msra.mxu0 %v611
        %651 = vmatmul.bf16.gmra.mxu0 %v547
        %v652 = vpop.f32.mrf.mxu0
        %v653 = vadd.f32 %v511, %v652
        %v654 = vpop.f32.mrf.mxu0
        %v655 = vadd.f32 %v511, %v654
        %656 = vmatmul.bf16.gmra.mxu0 %v548
        %v657 = vpop.f32.mrf.mxu0
        %v658 = vadd.f32 %v511, %v657
        %v659 = vpop.f32.mrf.mxu0
        %v660 = vadd.f32 %v511, %v659
        %661 = vmatmul.bf16.gmra.mxu0 %v549
        %v662 = vpop.f32.mrf.mxu0
        %v663 = vadd.f32 %v511, %v662
        %v664 = vpop.f32.mrf.mxu0
        %v665 = vadd.f32 %v511, %v664
        %666 = vmatmul.bf16.gmra.mxu0 %v550
        %v667 = vpop.f32.mrf.mxu0
        %v668 = vadd.f32 %v511, %v667
        %v669 = vpop.f32.mrf.mxu0
        %v670 = vadd.f32 %v511, %v669
        %671 = vmatmul.bf16.gmra.mxu0 %v551
        %v672 = vpop.f32.mrf.mxu0
        %v673 = vadd.f32 %v511, %v672
        %v674 = vpop.f32.mrf.mxu0
        %v675 = vadd.f32 %v511, %v674
        %676 = vmatmul.bf16.gmra.mxu0 %v552
        %v677 = vpop.f32.mrf.mxu0
        %v678 = vadd.f32 %v511, %v677
        %v679 = vpop.f32.mrf.mxu0
        %v680 = vadd.f32 %v511, %v679
        %681 = vmatmul.bf16.gmra.mxu0 %v553
        %v682 = vpop.f32.mrf.mxu0
        %v683 = vadd.f32 %v511, %v682
        %v684 = vpop.f32.mrf.mxu0
        %v685 = vadd.f32 %v511, %v684
        %686 = vmatmul.bf16.gmra.mxu0 %v554
        %v687 = vpop.f32.mrf.mxu0
        %v688 = vadd.f32 %v511, %v687
        %v689 = vpop.f32.mrf.mxu0
        %v690 = vadd.f32 %v511, %v689
        %691 = vdwg.mxu0
        %692 = vmatpush.bf16.msra.mxu0 %v626
        %693 = vmatpush.bf16.msra.mxu0 %v624
        %694 = vmatpush.bf16.msra.mxu0 %v622
        %695 = vmatpush.bf16.msra.mxu0 %v620
        %696 = vmatpush.bf16.msra.mxu0 %v618
        %697 = vmatpush.bf16.msra.mxu0 %v616
        %698 = vmatpush.bf16.msra.mxu0 %v614
        %699 = vmatpush.bf16.msra.mxu0 %v612
        %700 = vmatmul.bf16.gmra.mxu0 %v547
        %v701 = vpop.f32.mrf.mxu0
        %v702 = vadd.f32 %v512, %v701
        %v703 = vpop.f32.mrf.mxu0
        %v704 = vadd.f32 %v512, %v703
        %705 = vmatmul.bf16.gmra.mxu0 %v548
        %v706 = vpop.f32.mrf.mxu0
        %v707 = vadd.f32 %v512, %v706
        %v708 = vpop.f32.mrf.mxu0
        %v709 = vadd.f32 %v512, %v708
        %710 = vmatmul.bf16.gmra.mxu0 %v549
        %v711 = vpop.f32.mrf.mxu0
        %v712 = vadd.f32 %v512, %v711
        %v713 = vpop.f32.mrf.mxu0
        %v714 = vadd.f32 %v512, %v713
        %715 = vmatmul.bf16.gmra.mxu0 %v550
        %v716 = vpop.f32.mrf.mxu0
        %v717 = vadd.f32 %v512, %v716
        %v718 = vpop.f32.mrf.mxu0
        %v719 = vadd.f32 %v512, %v718
        %720 = vmatmul.bf16.gmra.mxu0 %v551
        %v721 = vpop.f32.mrf.mxu0
        %v722 = vadd.f32 %v512, %v721
        %v723 = vpop.f32.mrf.mxu0
        %v724 = vadd.f32 %v512, %v723
        %725 = vmatmul.bf16.gmra.mxu0 %v552
        %v726 = vpop.f32.mrf.mxu0
        %v727 = vadd.f32 %v512, %v726
        %v728 = vpop.f32.mrf.mxu0
        %v729 = vadd.f32 %v512, %v728
        %730 = vmatmul.bf16.gmra.mxu0 %v553
        %v731 = vpop.f32.mrf.mxu0
        %v732 = vadd.f32 %v512, %v731
        %v733 = vpop.f32.mrf.mxu0
        %v734 = vadd.f32 %v512, %v733
        %735 = vmatmul.bf16.gmra.mxu0 %v554
        %v736 = vpop.f32.mrf.mxu0
        %v737 = vadd.f32 %v512, %v736
        %v738 = vpop.f32.mrf.mxu0
        %v739 = vadd.f32 %v512, %v738
        %740 = vdwg.mxu0
        %v741 = vmul.f32 %v653, 0.2
        %v742 = vmul.f32 %v702, 0.2
        %v743 = vmul.f32 %v655, 0.2
        %v744 = vmul.f32 %v704, 0.2
        %v745 = vmul.f32 %v658, 0.2
        %v746 = vmul.f32 %v707, 0.2
        %v747 = vmul.f32 %v660, 0.2
        %v748 = vmul.f32 %v709, 0.2
        %v749 = vmul.f32 %v663, 0.2
        %v750 = vmul.f32 %v712, 0.2
        %v751 = vmul.f32 %v665, 0.2
        %v752 = vmul.f32 %v714, 0.2
        %v753 = vmul.f32 %v668, 0.2
        %v754 = vmul.f32 %v717, 0.2
        %v755 = vmul.f32 %v670, 0.2
        %v756 = vmul.f32 %v719, 0.2
        %v757 = vmul.f32 %v673, 0.2
        %v758 = vmul.f32 %v722, 0.2
        %v759 = vmul.f32 %v675, 0.2
        %v760 = vmul.f32 %v724, 0.2
        %v761 = vmul.f32 %v678, 0.2
        %v762 = vmul.f32 %v727, 0.2
        %v763 = vmul.f32 %v680, 0.2
        %v764 = vmul.f32 %v729, 0.2
        %v765 = vmul.f32 %v683, 0.2
        %v766 = vmul.f32 %v732, 0.2
        %v767 = vmul.f32 %v685, 0.2
        %v768 = vmul.f32 %v734, 0.2
        %v769 = vmul.f32 %v688, 0.2
        %v770 = vmul.f32 %v737, 0.2
        %v771 = vmul.f32 %v690, 0.2
        %v772 = vmul.f32 %v739, 0.2
        %v773 = vmax.f32 %v653, %v741
        %v774 = vmax.f32 %v702, %v742
        %v775 = vmax.f32 %v655, %v743
        %v776 = vmax.f32 %v704, %v744
        %v777 = vmax.f32 %v658, %v745
        %v778 = vmax.f32 %v707, %v746
        %v779 = vmax.f32 %v660, %v747
        %v780 = vmax.f32 %v709, %v748
        %v781 = vmax.f32 %v663, %v749
        %v782 = vmax.f32 %v712, %v750
        %v783 = vmax.f32 %v665, %v751
        %v784 = vmax.f32 %v714, %v752
        %v785 = vmax.f32 %v668, %v753
        %v786 = vmax.f32 %v717, %v754
        %v787 = vmax.f32 %v670, %v755
        %v788 = vmax.f32 %v719, %v756
        %v789 = vmax.f32 %v673, %v757
        %v790 = vmax.f32 %v722, %v758
        %v791 = vmax.f32 %v675, %v759
        %v792 = vmax.f32 %v724, %v760
        %v793 = vmax.f32 %v678, %v761
        %v794 = vmax.f32 %v727, %v762
        %v795 = vmax.f32 %v680, %v763
        %v796 = vmax.f32 %v729, %v764
        %v797 = vmax.f32 %v683, %v765
        %v798 = vmax.f32 %v732, %v766
        %v799 = vmax.f32 %v685, %v767
        %v800 = vmax.f32 %v734, %v768
        %v801 = vmax.f32 %v688, %v769
        %v802 = vmax.f32 %v737, %v770
        %v803 = vmax.f32 %v690, %v771
        %v804 = vmax.f32 %v739, %v772
        %v805 = vpack.c.bf16 %v775, %v773
        %v806 = vpack.c.bf16 %v776, %v774
        %v807 = vpack.c.bf16 %v779, %v777
        %v808 = vpack.c.bf16 %v780, %v778
        %v809 = vpack.c.bf16 %v783, %v781
        %v810 = vpack.c.bf16 %v784, %v782
        %v811 = vpack.c.bf16 %v787, %v785
        %v812 = vpack.c.bf16 %v788, %v786
        %v813 = vpack.c.bf16 %v791, %v789
        %v814 = vpack.c.bf16 %v792, %v790
        %v815 = vpack.c.bf16 %v795, %v793
        %v816 = vpack.c.bf16 %v796, %v794
        %v817 = vpack.c.bf16 %v799, %v797
        %v818 = vpack.c.bf16 %v800, %v798
        %v819 = vpack.c.bf16 %v803, %v801
        %v820 = vpack.c.bf16 %v804, %v802
        %v821 = vld [vmem:[#allocation8] sm:$0xff]
        %v822 = vld [vmem:[#allocation8 + $0x8] sm:$0xff]
        %v823 = vld [vmem:[#allocation8 + $0x10] sm:$0xff]
        %v824 = vld [vmem:[#allocation8 + $0x18] sm:$0xff]
        %v825 = vld [vmem:[#allocation8 + $0x20] sm:$0xff]
        %v826 = vld [vmem:[#allocation8 + $0x28] sm:$0xff]
        %v827 = vld [vmem:[#allocation8 + $0x30] sm:$0xff]
        %v828 = vld [vmem:[#allocation8 + $0x38] sm:$0xff]
        %v829 = vld [vmem:[#allocation8 + $0x40] sm:$0xff]
        %v830 = vld [vmem:[#allocation8 + $0x48] sm:$0xff]
        %v831 = vld [vmem:[#allocation8 + $0x50] sm:$0xff]
        %v832 = vld [vmem:[#allocation8 + $0x58] sm:$0xff]
        %v833 = vld [vmem:[#allocation8 + $0x60] sm:$0xff]
        %v834 = vld [vmem:[#allocation8 + $0x68] sm:$0xff]
        %v835 = vld [vmem:[#allocation8 + $0x70] sm:$0xff]
        %v836 = vld [vmem:[#allocation8 + $0x78] sm:$0xff]
        %v837 = vld [vmem:[#allocation8 + $0x80] sm:$0xff]
        %v838 = vld [vmem:[#allocation8 + $0x88] sm:$0xff]
        %v839 = vld [vmem:[#allocation8 + $0x90] sm:$0xff]
        %v840 = vld [vmem:[#allocation8 + $0x98] sm:$0xff]
        %v841 = vld [vmem:[#allocation8 + $0xa0] sm:$0xff]
        %v842 = vld [vmem:[#allocation8 + $0xa8] sm:$0xff]
        %v843 = vld [vmem:[#allocation8 + $0xb0] sm:$0xff]
        %v844 = vld [vmem:[#allocation8 + $0xb8] sm:$0xff]
        %v845 = vld [vmem:[#allocation8 + $0xc0] sm:$0xff]
        %v846 = vld [vmem:[#allocation8 + $0xc8] sm:$0xff]
        %v847 = vld [vmem:[#allocation8 + $0xd0] sm:$0xff]
        %v848 = vld [vmem:[#allocation8 + $0xd8] sm:$0xff]
        %v849 = vld [vmem:[#allocation8 + $0xe0] sm:$0xff]
        %v850 = vld [vmem:[#allocation8 + $0xe8] sm:$0xff]
        %v851 = vld [vmem:[#allocation8 + $0xf0] sm:$0xff]
        %v852 = vld [vmem:[#allocation8 + $0xf8] sm:$0xff]
        %v853 = vld [vmem:[%s4] sm:$0x3]
        %v855 = vperm.slane %v853, 0
        %v856 = vperm.slane %v853, 1
        %v891 = vunpack.c.l.b16 %v821
        %v892 = vunpack.c.h.b16 %v821
        %v893 = vunpack.c.l.b16 %v822
        %v894 = vunpack.c.h.b16 %v822
        %v895 = vunpack.c.l.b16 %v823
        %v896 = vunpack.c.h.b16 %v823
        %v897 = vunpack.c.l.b16 %v824
        %v898 = vunpack.c.h.b16 %v824
        %v899 = vunpack.c.l.b16 %v825
        %v900 = vunpack.c.h.b16 %v825
        %v901 = vunpack.c.l.b16 %v826
        %v902 = vunpack.c.h.b16 %v826
        %v903 = vunpack.c.l.b16 %v827
        %v904 = vunpack.c.h.b16 %v827
        %v905 = vunpack.c.l.b16 %v828
        %v906 = vunpack.c.h.b16 %v828
        %v907 = vunpack.c.l.b16 %v829
        %v908 = vunpack.c.h.b16 %v829
        %v909 = vunpack.c.l.b16 %v830
        %v910 = vunpack.c.h.b16 %v830
        %v911 = vunpack.c.l.b16 %v831
        %v912 = vunpack.c.h.b16 %v831
        %v913 = vunpack.c.l.b16 %v832
        %v914 = vunpack.c.h.b16 %v832
        %v915 = vunpack.c.l.b16 %v833
        %v916 = vunpack.c.h.b16 %v833
        %v917 = vunpack.c.l.b16 %v834
        %v918 = vunpack.c.h.b16 %v834
        %v919 = vunpack.c.l.b16 %v835
        %v920 = vunpack.c.h.b16 %v835
        %v921 = vunpack.c.l.b16 %v836
        %v922 = vunpack.c.h.b16 %v836
        %v923 = vunpack.c.l.b16 %v837
        %v924 = vunpack.c.h.b16 %v837
        %v925 = vunpack.c.l.b16 %v838
        %v926 = vunpack.c.h.b16 %v838
        %v927 = vunpack.c.l.b16 %v839
        %v928 = vunpack.c.h.b16 %v839
        %v929 = vunpack.c.l.b16 %v840
        %v930 = vunpack.c.h.b16 %v840
        %v931 = vunpack.c.l.b16 %v841
        %v932 = vunpack.c.h.b16 %v841
        %v933 = vunpack.c.l.b16 %v842
        %v934 = vunpack.c.h.b16 %v842
        %v935 = vunpack.c.l.b16 %v843
        %v936 = vunpack.c.h.b16 %v843
        %v937 = vunpack.c.l.b16 %v844
        %v938 = vunpack.c.h.b16 %v844
        %v939 = vunpack.c.l.b16 %v845
        %v940 = vunpack.c.h.b16 %v845
        %v941 = vunpack.c.l.b16 %v846
        %v942 = vunpack.c.h.b16 %v846
        %v943 = vunpack.c.l.b16 %v847
        %v944 = vunpack.c.h.b16 %v847
        %v945 = vunpack.c.l.b16 %v848
        %v946 = vunpack.c.h.b16 %v848
        %v947 = vunpack.c.l.b16 %v849
        %v948 = vunpack.c.h.b16 %v849
        %v949 = vunpack.c.l.b16 %v850
        %v950 = vunpack.c.h.b16 %v850
        %v951 = vunpack.c.l.b16 %v851
        %v952 = vunpack.c.h.b16 %v851
        %v953 = vunpack.c.l.b16 %v852
        %v954 = vunpack.c.h.b16 %v852
        %v955 = vpack.c.b16 %v893, %v891
        %v956 = vpack.c.b16 %v894, %v892
        %v957 = vpack.c.b16 %v897, %v895
        %v958 = vpack.c.b16 %v898, %v896
        %v959 = vpack.c.b16 %v901, %v899
        %v960 = vpack.c.b16 %v902, %v900
        %v961 = vpack.c.b16 %v905, %v903
        %v962 = vpack.c.b16 %v906, %v904
        %v963 = vpack.c.b16 %v909, %v907
        %v964 = vpack.c.b16 %v910, %v908
        %v965 = vpack.c.b16 %v913, %v911
        %v966 = vpack.c.b16 %v914, %v912
        %v967 = vpack.c.b16 %v917, %v915
        %v968 = vpack.c.b16 %v918, %v916
        %v969 = vpack.c.b16 %v921, %v919
        %v970 = vpack.c.b16 %v922, %v920
        %v971 = vpack.c.b16 %v925, %v923
        %v972 = vpack.c.b16 %v926, %v924
        %v973 = vpack.c.b16 %v929, %v927
        %v974 = vpack.c.b16 %v930, %v928
        %v975 = vpack.c.b16 %v933, %v931
        %v976 = vpack.c.b16 %v934, %v932
        %v977 = vpack.c.b16 %v937, %v935
        %v978 = vpack.c.b16 %v938, %v936
        %v979 = vpack.c.b16 %v941, %v939
        %v980 = vpack.c.b16 %v942, %v940
        %v981 = vpack.c.b16 %v945, %v943
        %v982 = vpack.c.b16 %v946, %v944
        %v983 = vpack.c.b16 %v949, %v947
        %v984 = vpack.c.b16 %v950, %v948
        %v985 = vpack.c.b16 %v953, %v951
        %v986 = vpack.c.b16 %v954, %v952
        %1019 = vmatpush.bf16.msra.mxu0 %v969
        %1020 = vmatpush.bf16.msra.mxu0 %v967
        %1021 = vmatpush.bf16.msra.mxu0 %v965
        %1022 = vmatpush.bf16.msra.mxu0 %v963
        %1023 = vmatpush.bf16.msra.mxu0 %v961
        %1024 = vmatpush.bf16.msra.mxu0 %v959
        %1025 = vmatpush.bf16.msra.mxu0 %v957
        %1026 = vmatpush.bf16.msra.mxu0 %v955
        %1027 = vmatmul.bf16.gmra.mxu0 %v805
        %v1028 = vpop.f32.mrf.mxu0
        %v1029 = vadd.f32 %v855, %v1028
        %v1030 = vpop.f32.mrf.mxu0
        %v1031 = vadd.f32 %v855, %v1030
        %1032 = vmatmul.bf16.gmra.mxu0 %v807
        %v1033 = vpop.f32.mrf.mxu0
        %v1034 = vadd.f32 %v855, %v1033
        %v1035 = vpop.f32.mrf.mxu0
        %v1036 = vadd.f32 %v855, %v1035
        %1037 = vmatmul.bf16.gmra.mxu0 %v809
        %v1038 = vpop.f32.mrf.mxu0
        %v1039 = vadd.f32 %v855, %v1038
        %v1040 = vpop.f32.mrf.mxu0
        %v1041 = vadd.f32 %v855, %v1040
        %1042 = vmatmul.bf16.gmra.mxu0 %v811
        %v1043 = vpop.f32.mrf.mxu0
        %v1044 = vadd.f32 %v855, %v1043
        %v1045 = vpop.f32.mrf.mxu0
        %v1046 = vadd.f32 %v855, %v1045
        %1047 = vmatmul.bf16.gmra.mxu0 %v813
        %v1048 = vpop.f32.mrf.mxu0
        %v1049 = vadd.f32 %v855, %v1048
        %v1050 = vpop.f32.mrf.mxu0
        %v1051 = vadd.f32 %v855, %v1050
        %1052 = vmatmul.bf16.gmra.mxu0 %v815
        %v1053 = vpop.f32.mrf.mxu0
        %v1054 = vadd.f32 %v855, %v1053
        %v1055 = vpop.f32.mrf.mxu0
        %v1056 = vadd.f32 %v855, %v1055
        %1057 = vmatmul.bf16.gmra.mxu0 %v817
        %v1058 = vpop.f32.mrf.mxu0
        %v1059 = vadd.f32 %v855, %v1058
        %v1060 = vpop.f32.mrf.mxu0
        %v1061 = vadd.f32 %v855, %v1060
        %1062 = vmatmul.bf16.gmra.mxu0 %v819
        %v1063 = vpop.f32.mrf.mxu0
        %v1064 = vadd.f32 %v855, %v1063
        %v1065 = vpop.f32.mrf.mxu0
        %v1066 = vadd.f32 %v855, %v1065
        %1067 = vdwg.mxu0
        %1068 = vmatpush.bf16.msra.mxu0 %v985
        %1069 = vmatpush.bf16.msra.mxu0 %v983
        %1070 = vmatpush.bf16.msra.mxu0 %v981
        %1071 = vmatpush.bf16.msra.mxu0 %v979
        %1072 = vmatpush.bf16.msra.mxu0 %v977
        %1073 = vmatpush.bf16.msra.mxu0 %v975
        %1074 = vmatpush.bf16.msra.mxu0 %v973
        %1075 = vmatpush.bf16.msra.mxu0 %v971
        %1076 = vmatmul.bf16.gmra.mxu0 %v806
        %v1077 = vpop.f32.mrf.mxu0
        %v1078 = vadd.f32 %v1029, %v1077
        %v1079 = vpop.f32.mrf.mxu0
        %v1080 = vadd.f32 %v1031, %v1079
        %1081 = vmatmul.bf16.gmra.mxu0 %v808
        %v1082 = vpop.f32.mrf.mxu0
        %v1083 = vadd.f32 %v1034, %v1082
        %v1084 = vpop.f32.mrf.mxu0
        %v1085 = vadd.f32 %v1036, %v1084
        %1086 = vmatmul.bf16.gmra.mxu0 %v810
        %v1087 = vpop.f32.mrf.mxu0
        %v1088 = vadd.f32 %v1039, %v1087
        %v1089 = vpop.f32.mrf.mxu0
        %v1090 = vadd.f32 %v1041, %v1089
        %1091 = vmatmul.bf16.gmra.mxu0 %v812
        %v1092 = vpop.f32.mrf.mxu0
        %v1093 = vadd.f32 %v1044, %v1092
        %v1094 = vpop.f32.mrf.mxu0
        %v1095 = vadd.f32 %v1046, %v1094
        %1096 = vmatmul.bf16.gmra.mxu0 %v814
        %v1097 = vpop.f32.mrf.mxu0
        %v1098 = vadd.f32 %v1049, %v1097
        %v1099 = vpop.f32.mrf.mxu0
        %v1100 = vadd.f32 %v1051, %v1099
        %1101 = vmatmul.bf16.gmra.mxu0 %v816
        %v1102 = vpop.f32.mrf.mxu0
        %v1103 = vadd.f32 %v1054, %v1102
        %v1104 = vpop.f32.mrf.mxu0
        %v1105 = vadd.f32 %v1056, %v1104
        %1106 = vmatmul.bf16.gmra.mxu0 %v818
        %v1107 = vpop.f32.mrf.mxu0
        %v1108 = vadd.f32 %v1059, %v1107
        %v1109 = vpop.f32.mrf.mxu0
        %v1110 = vadd.f32 %v1061, %v1109
        %1111 = vmatmul.bf16.gmra.mxu0 %v820
        %v1112 = vpop.f32.mrf.mxu0
        %v1113 = vadd.f32 %v1064, %v1112
        %v1114 = vpop.f32.mrf.mxu0
        %v1115 = vadd.f32 %v1066, %v1114
        %1116 = vdwg.mxu0
        %1117 = vmatpush.bf16.msra.mxu0 %v970
        %1118 = vmatpush.bf16.msra.mxu0 %v968
        %1119 = vmatpush.bf16.msra.mxu0 %v966
        %1120 = vmatpush.bf16.msra.mxu0 %v964
        %1121 = vmatpush.bf16.msra.mxu0 %v962
        %1122 = vmatpush.bf16.msra.mxu0 %v960
        %1123 = vmatpush.bf16.msra.mxu0 %v958
        %1124 = vmatpush.bf16.msra.mxu0 %v956
        %1125 = vmatmul.bf16.gmra.mxu0 %v805
        %v1126 = vpop.f32.mrf.mxu0
        %v1127 = vadd.f32 %v856, %v1126
        %v1128 = vpop.f32.mrf.mxu0
        %v1129 = vadd.f32 %v856, %v1128
        %1130 = vmatmul.bf16.gmra.mxu0 %v807
        %v1131 = vpop.f32.mrf.mxu0
        %v1132 = vadd.f32 %v856, %v1131
        %v1133 = vpop.f32.mrf.mxu0
        %v1134 = vadd.f32 %v856, %v1133
        %1135 = vmatmul.bf16.gmra.mxu0 %v809
        %v1136 = vpop.f32.mrf.mxu0
        %v1137 = vadd.f32 %v856, %v1136
        %v1138 = vpop.f32.mrf.mxu0
        %v1139 = vadd.f32 %v856, %v1138
        %1140 = vmatmul.bf16.gmra.mxu0 %v811
        %v1141 = vpop.f32.mrf.mxu0
        %v1142 = vadd.f32 %v856, %v1141
        %v1143 = vpop.f32.mrf.mxu0
        %v1144 = vadd.f32 %v856, %v1143
        %1145 = vmatmul.bf16.gmra.mxu0 %v813
        %v1146 = vpop.f32.mrf.mxu0
        %v1147 = vadd.f32 %v856, %v1146
        %v1148 = vpop.f32.mrf.mxu0
        %v1149 = vadd.f32 %v856, %v1148
        %1150 = vmatmul.bf16.gmra.mxu0 %v815
        %v1151 = vpop.f32.mrf.mxu0
        %v1152 = vadd.f32 %v856, %v1151
        %v1153 = vpop.f32.mrf.mxu0
        %v1154 = vadd.f32 %v856, %v1153
        %1155 = vmatmul.bf16.gmra.mxu0 %v817
        %v1156 = vpop.f32.mrf.mxu0
        %v1157 = vadd.f32 %v856, %v1156
        %v1158 = vpop.f32.mrf.mxu0
        %v1159 = vadd.f32 %v856, %v1158
        %1160 = vmatmul.bf16.gmra.mxu0 %v819
        %v1161 = vpop.f32.mrf.mxu0
        %v1162 = vadd.f32 %v856, %v1161
        %v1163 = vpop.f32.mrf.mxu0
        %v1164 = vadd.f32 %v856, %v1163
        %1165 = vdwg.mxu0
        %1166 = vmatpush.bf16.msra.mxu0 %v986
        %1167 = vmatpush.bf16.msra.mxu0 %v984
        %1168 = vmatpush.bf16.msra.mxu0 %v982
        %1169 = vmatpush.bf16.msra.mxu0 %v980
        %1170 = vmatpush.bf16.msra.mxu0 %v978
        %1171 = vmatpush.bf16.msra.mxu0 %v976
        %1172 = vmatpush.bf16.msra.mxu0 %v974
        %1173 = vmatpush.bf16.msra.mxu0 %v972
        %1174 = vmatmul.bf16.gmra.mxu0 %v806
        %v1175 = vpop.f32.mrf.mxu0
        %v1176 = vadd.f32 %v1127, %v1175
        %v1177 = vpop.f32.mrf.mxu0
        %v1178 = vadd.f32 %v1129, %v1177
        %1179 = vmatmul.bf16.gmra.mxu0 %v808
        %v1180 = vpop.f32.mrf.mxu0
        %v1181 = vadd.f32 %v1132, %v1180
        %v1182 = vpop.f32.mrf.mxu0
        %v1183 = vadd.f32 %v1134, %v1182
        %1184 = vmatmul.bf16.gmra.mxu0 %v810
        %v1185 = vpop.f32.mrf.mxu0
        %v1186 = vadd.f32 %v1137, %v1185
        %v1187 = vpop.f32.mrf.mxu0
        %v1188 = vadd.f32 %v1139, %v1187
        %1189 = vmatmul.bf16.gmra.mxu0 %v812
        %v1190 = vpop.f32.mrf.mxu0
        %v1191 = vadd.f32 %v1142, %v1190
        %v1192 = vpop.f32.mrf.mxu0
        %v1193 = vadd.f32 %v1144, %v1192
        %1194 = vmatmul.bf16.gmra.mxu0 %v814
        %v1195 = vpop.f32.mrf.mxu0
        %v1196 = vadd.f32 %v1147, %v1195
        %v1197 = vpop.f32.mrf.mxu0
        %v1198 = vadd.f32 %v1149, %v1197
        %1199 = vmatmul.bf16.gmra.mxu0 %v816
        %v1200 = vpop.f32.mrf.mxu0
        %v1201 = vadd.f32 %v1152, %v1200
        %v1202 = vpop.f32.mrf.mxu0
        %v1203 = vadd.f32 %v1154, %v1202
        %1204 = vmatmul.bf16.gmra.mxu0 %v818
        %v1205 = vpop.f32.mrf.mxu0
        %v1206 = vadd.f32 %v1157, %v1205
        %v1207 = vpop.f32.mrf.mxu0
        %v1208 = vadd.f32 %v1159, %v1207
        %1209 = vmatmul.bf16.gmra.mxu0 %v820
        %v1210 = vpop.f32.mrf.mxu0
        %v1211 = vadd.f32 %v1162, %v1210
        %v1212 = vpop.f32.mrf.mxu0
        %v1213 = vadd.f32 %v1164, %v1212
        %1214 = vdwg.mxu0
        %v1215 = vmul.f32 %v1078, 0.2
        %v1216 = vmul.f32 %v1176, 0.2
        %v1217 = vmul.f32 %v1080, 0.2
        %v1218 = vmul.f32 %v1178, 0.2
        %v1219 = vmul.f32 %v1083, 0.2
        %v1220 = vmul.f32 %v1181, 0.2
        %v1221 = vmul.f32 %v1085, 0.2
        %v1222 = vmul.f32 %v1183, 0.2
        %v1223 = vmul.f32 %v1088, 0.2
        %v1224 = vmul.f32 %v1186, 0.2
        %v1225 = vmul.f32 %v1090, 0.2
        %v1226 = vmul.f32 %v1188, 0.2
        %v1227 = vmul.f32 %v1093, 0.2
        %v1228 = vmul.f32 %v1191, 0.2
        %v1229 = vmul.f32 %v1095, 0.2
        %v1230 = vmul.f32 %v1193, 0.2
        %v1231 = vmul.f32 %v1098, 0.2
        %v1232 = vmul.f32 %v1196, 0.2
        %v1233 = vmul.f32 %v1100, 0.2
        %v1234 = vmul.f32 %v1198, 0.2
        %v1235 = vmul.f32 %v1103, 0.2
        %v1236 = vmul.f32 %v1201, 0.2
        %v1237 = vmul.f32 %v1105, 0.2
        %v1238 = vmul.f32 %v1203, 0.2
        %v1239 = vmul.f32 %v1108, 0.2
        %v1240 = vmul.f32 %v1206, 0.2
        %v1241 = vmul.f32 %v1110, 0.2
        %v1242 = vmul.f32 %v1208, 0.2
        %v1243 = vmul.f32 %v1113, 0.2
        %v1244 = vmul.f32 %v1211, 0.2
        %v1245 = vmul.f32 %v1115, 0.2
        %v1246 = vmul.f32 %v1213, 0.2
        %v1247 = vmax.f32 %v1078, %v1215
        %v1248 = vmax.f32 %v1176, %v1216
        %v1249 = vmax.f32 %v1080, %v1217
        %v1250 = vmax.f32 %v1178, %v1218
        %v1251 = vmax.f32 %v1083, %v1219
        %v1252 = vmax.f32 %v1181, %v1220
        %v1253 = vmax.f32 %v1085, %v1221
        %v1254 = vmax.f32 %v1183, %v1222
        %v1255 = vmax.f32 %v1088, %v1223
        %v1256 = vmax.f32 %v1186, %v1224
        %v1257 = vmax.f32 %v1090, %v1225
        %v1258 = vmax.f32 %v1188, %v1226
        %v1259 = vmax.f32 %v1093, %v1227
        %v1260 = vmax.f32 %v1191, %v1228
        %v1261 = vmax.f32 %v1095, %v1229
        %v1262 = vmax.f32 %v1193, %v1230
        %v1263 = vmax.f32 %v1098, %v1231
        %v1264 = vmax.f32 %v1196, %v1232
        %v1265 = vmax.f32 %v1100, %v1233
        %v1266 = vmax.f32 %v1198, %v1234
        %v1267 = vmax.f32 %v1103, %v1235
        %v1268 = vmax.f32 %v1201, %v1236
        %v1269 = vmax.f32 %v1105, %v1237
        %v1270 = vmax.f32 %v1203, %v1238
        %v1271 = vmax.f32 %v1108, %v1239
        %v1272 = vmax.f32 %v1206, %v1240
        %v1273 = vmax.f32 %v1110, %v1241
        %v1274 = vmax.f32 %v1208, %v1242
        %v1275 = vmax.f32 %v1113, %v1243
        %v1276 = vmax.f32 %v1211, %v1244
        %v1277 = vmax.f32 %v1115, %v1245
        %v1278 = vmax.f32 %v1213, %v1246
        %v1279 = vpack.c.bf16 %v1249, %v1247
        %v1280 = vpack.c.bf16 %v1250, %v1248
        %v1281 = vpack.c.bf16 %v1253, %v1251
        %v1282 = vpack.c.bf16 %v1254, %v1252
        %v1283 = vpack.c.bf16 %v1257, %v1255
        %v1284 = vpack.c.bf16 %v1258, %v1256
        %v1285 = vpack.c.bf16 %v1261, %v1259
        %v1286 = vpack.c.bf16 %v1262, %v1260
        %v1287 = vpack.c.bf16 %v1265, %v1263
        %v1288 = vpack.c.bf16 %v1266, %v1264
        %v1289 = vpack.c.bf16 %v1269, %v1267
        %v1290 = vpack.c.bf16 %v1270, %v1268
        %v1291 = vpack.c.bf16 %v1273, %v1271
        %v1292 = vpack.c.bf16 %v1274, %v1272
        %v1293 = vpack.c.bf16 %v1277, %v1275
        %v1294 = vpack.c.bf16 %v1278, %v1276
        %v1295 = vld [vmem:[#allocation9] sm:$0xff]
        %v1296 = vld [vmem:[#allocation9 + $0x8] sm:$0xff]
        %v1297 = vld [vmem:[#allocation9 + $0x10] sm:$0xff]
        %v1298 = vld [vmem:[#allocation9 + $0x18] sm:$0xff]
        %v1299 = vld [vmem:[#allocation9 + $0x20] sm:$0xff]
        %v1300 = vld [vmem:[#allocation9 + $0x28] sm:$0xff]
        %v1301 = vld [vmem:[#allocation9 + $0x30] sm:$0xff]
        %v1302 = vld [vmem:[#allocation9 + $0x38] sm:$0xff]
        %v1303 = vld [vmem:[#allocation9 + $0x40] sm:$0xff]
        %v1304 = vld [vmem:[#allocation9 + $0x48] sm:$0xff]
        %v1305 = vld [vmem:[#allocation9 + $0x50] sm:$0xff]
        %v1306 = vld [vmem:[#allocation9 + $0x58] sm:$0xff]
        %v1307 = vld [vmem:[#allocation9 + $0x60] sm:$0xff]
        %v1308 = vld [vmem:[#allocation9 + $0x68] sm:$0xff]
        %v1309 = vld [vmem:[#allocation9 + $0x70] sm:$0xff]
        %v1310 = vld [vmem:[#allocation9 + $0x78] sm:$0xff]
        %v1311 = vld [vmem:[#allocation9 + $0x80] sm:$0xff]
        %v1312 = vld [vmem:[#allocation9 + $0x88] sm:$0xff]
        %v1313 = vld [vmem:[#allocation9 + $0x90] sm:$0xff]
        %v1314 = vld [vmem:[#allocation9 + $0x98] sm:$0xff]
        %v1315 = vld [vmem:[#allocation9 + $0xa0] sm:$0xff]
        %v1316 = vld [vmem:[#allocation9 + $0xa8] sm:$0xff]
        %v1317 = vld [vmem:[#allocation9 + $0xb0] sm:$0xff]
        %v1318 = vld [vmem:[#allocation9 + $0xb8] sm:$0xff]
        %v1319 = vld [vmem:[#allocation9 + $0xc0] sm:$0xff]
        %v1320 = vld [vmem:[#allocation9 + $0xc8] sm:$0xff]
        %v1321 = vld [vmem:[#allocation9 + $0xd0] sm:$0xff]
        %v1322 = vld [vmem:[#allocation9 + $0xd8] sm:$0xff]
        %v1323 = vld [vmem:[#allocation9 + $0xe0] sm:$0xff]
        %v1324 = vld [vmem:[#allocation9 + $0xe8] sm:$0xff]
        %v1325 = vld [vmem:[#allocation9 + $0xf0] sm:$0xff]
        %v1326 = vld [vmem:[#allocation9 + $0xf8] sm:$0xff]
        %v1327 = vld [vmem:[%s6] sm:$0x3]
        %v1329 = vperm.slane %v1327, 0
        %v1330 = vperm.slane %v1327, 1
        %v1365 = vunpack.c.l.b16 %v1295
        %v1366 = vunpack.c.h.b16 %v1295
        %v1367 = vunpack.c.l.b16 %v1296
        %v1368 = vunpack.c.h.b16 %v1296
        %v1369 = vunpack.c.l.b16 %v1297
        %v1370 = vunpack.c.h.b16 %v1297
        %v1371 = vunpack.c.l.b16 %v1298
        %v1372 = vunpack.c.h.b16 %v1298
        %v1373 = vunpack.c.l.b16 %v1299
        %v1374 = vunpack.c.h.b16 %v1299
        %v1375 = vunpack.c.l.b16 %v1300
        %v1376 = vunpack.c.h.b16 %v1300
        %v1377 = vunpack.c.l.b16 %v1301
        %v1378 = vunpack.c.h.b16 %v1301
        %v1379 = vunpack.c.l.b16 %v1302
        %v1380 = vunpack.c.h.b16 %v1302
        %v1381 = vunpack.c.l.b16 %v1303
        %v1382 = vunpack.c.h.b16 %v1303
        %v1383 = vunpack.c.l.b16 %v1304
        %v1384 = vunpack.c.h.b16 %v1304
        %v1385 = vunpack.c.l.b16 %v1305
        %v1386 = vunpack.c.h.b16 %v1305
        %v1387 = vunpack.c.l.b16 %v1306
        %v1388 = vunpack.c.h.b16 %v1306
        %v1389 = vunpack.c.l.b16 %v1307
        %v1390 = vunpack.c.h.b16 %v1307
        %v1391 = vunpack.c.l.b16 %v1308
        %v1392 = vunpack.c.h.b16 %v1308
        %v1393 = vunpack.c.l.b16 %v1309
        %v1394 = vunpack.c.h.b16 %v1309
        %v1395 = vunpack.c.l.b16 %v1310
        %v1396 = vunpack.c.h.b16 %v1310
        %v1397 = vunpack.c.l.b16 %v1311
        %v1398 = vunpack.c.h.b16 %v1311
        %v1399 = vunpack.c.l.b16 %v1312
        %v1400 = vunpack.c.h.b16 %v1312
        %v1401 = vunpack.c.l.b16 %v1313
        %v1402 = vunpack.c.h.b16 %v1313
        %v1403 = vunpack.c.l.b16 %v1314
        %v1404 = vunpack.c.h.b16 %v1314
        %v1405 = vunpack.c.l.b16 %v1315
        %v1406 = vunpack.c.h.b16 %v1315
        %v1407 = vunpack.c.l.b16 %v1316
        %v1408 = vunpack.c.h.b16 %v1316
        %v1409 = vunpack.c.l.b16 %v1317
        %v1410 = vunpack.c.h.b16 %v1317
        %v1411 = vunpack.c.l.b16 %v1318
        %v1412 = vunpack.c.h.b16 %v1318
        %v1413 = vunpack.c.l.b16 %v1319
        %v1414 = vunpack.c.h.b16 %v1319
        %v1415 = vunpack.c.l.b16 %v1320
        %v1416 = vunpack.c.h.b16 %v1320
        %v1417 = vunpack.c.l.b16 %v1321
        %v1418 = vunpack.c.h.b16 %v1321
        %v1419 = vunpack.c.l.b16 %v1322
        %v1420 = vunpack.c.h.b16 %v1322
        %v1421 = vunpack.c.l.b16 %v1323
        %v1422 = vunpack.c.h.b16 %v1323
        %v1423 = vunpack.c.l.b16 %v1324
        %v1424 = vunpack.c.h.b16 %v1324
        %v1425 = vunpack.c.l.b16 %v1325
        %v1426 = vunpack.c.h.b16 %v1325
        %v1427 = vunpack.c.l.b16 %v1326
        %v1428 = vunpack.c.h.b16 %v1326
        %v1429 = vpack.c.b16 %v1367, %v1365
        %v1430 = vpack.c.b16 %v1368, %v1366
        %v1431 = vpack.c.b16 %v1371, %v1369
        %v1432 = vpack.c.b16 %v1372, %v1370
        %v1433 = vpack.c.b16 %v1375, %v1373
        %v1434 = vpack.c.b16 %v1376, %v1374
        %v1435 = vpack.c.b16 %v1379, %v1377
        %v1436 = vpack.c.b16 %v1380, %v1378
        %v1437 = vpack.c.b16 %v1383, %v1381
        %v1438 = vpack.c.b16 %v1384, %v1382
        %v1439 = vpack.c.b16 %v1387, %v1385
        %v1440 = vpack.c.b16 %v1388, %v1386
        %v1441 = vpack.c.b16 %v1391, %v1389
        %v1442 = vpack.c.b16 %v1392, %v1390
        %v1443 = vpack.c.b16 %v1395, %v1393
        %v1444 = vpack.c.b16 %v1396, %v1394
        %v1445 = vpack.c.b16 %v1399, %v1397
        %v1446 = vpack.c.b16 %v1400, %v1398
        %v1447 = vpack.c.b16 %v1403, %v1401
        %v1448 = vpack.c.b16 %v1404, %v1402
        %v1449 = vpack.c.b16 %v1407, %v1405
        %v1450 = vpack.c.b16 %v1408, %v1406
        %v1451 = vpack.c.b16 %v1411, %v1409
        %v1452 = vpack.c.b16 %v1412, %v1410
        %v1453 = vpack.c.b16 %v1415, %v1413
        %v1454 = vpack.c.b16 %v1416, %v1414
        %v1455 = vpack.c.b16 %v1419, %v1417
        %v1456 = vpack.c.b16 %v1420, %v1418
        %v1457 = vpack.c.b16 %v1423, %v1421
        %v1458 = vpack.c.b16 %v1424, %v1422
        %v1459 = vpack.c.b16 %v1427, %v1425
        %v1460 = vpack.c.b16 %v1428, %v1426
        %1493 = vmatpush.bf16.msra.mxu0 %v1443
        %1494 = vmatpush.bf16.msra.mxu0 %v1441
        %1495 = vmatpush.bf16.msra.mxu0 %v1439
        %1496 = vmatpush.bf16.msra.mxu0 %v1437
        %1497 = vmatpush.bf16.msra.mxu0 %v1435
        %1498 = vmatpush.bf16.msra.mxu0 %v1433
        %1499 = vmatpush.bf16.msra.mxu0 %v1431
        %1500 = vmatpush.bf16.msra.mxu0 %v1429
        %1501 = vmatmul.bf16.gmra.mxu0 %v1279
        %v1502 = vpop.f32.mrf.mxu0
        %v1503 = vadd.f32 %v1329, %v1502
        %v1504 = vpop.f32.mrf.mxu0
        %v1505 = vadd.f32 %v1329, %v1504
        %1506 = vmatmul.bf16.gmra.mxu0 %v1281
        %v1507 = vpop.f32.mrf.mxu0
        %v1508 = vadd.f32 %v1329, %v1507
        %v1509 = vpop.f32.mrf.mxu0
        %v1510 = vadd.f32 %v1329, %v1509
        %1511 = vmatmul.bf16.gmra.mxu0 %v1283
        %v1512 = vpop.f32.mrf.mxu0
        %v1513 = vadd.f32 %v1329, %v1512
        %v1514 = vpop.f32.mrf.mxu0
        %v1515 = vadd.f32 %v1329, %v1514
        %1516 = vmatmul.bf16.gmra.mxu0 %v1285
        %v1517 = vpop.f32.mrf.mxu0
        %v1518 = vadd.f32 %v1329, %v1517
        %v1519 = vpop.f32.mrf.mxu0
        %v1520 = vadd.f32 %v1329, %v1519
        %1521 = vmatmul.bf16.gmra.mxu0 %v1287
        %v1522 = vpop.f32.mrf.mxu0
        %v1523 = vadd.f32 %v1329, %v1522
        %v1524 = vpop.f32.mrf.mxu0
        %v1525 = vadd.f32 %v1329, %v1524
        %1526 = vmatmul.bf16.gmra.mxu0 %v1289
        %v1527 = vpop.f32.mrf.mxu0
        %v1528 = vadd.f32 %v1329, %v1527
        %v1529 = vpop.f32.mrf.mxu0
        %v1530 = vadd.f32 %v1329, %v1529
        %1531 = vmatmul.bf16.gmra.mxu0 %v1291
        %v1532 = vpop.f32.mrf.mxu0
        %v1533 = vadd.f32 %v1329, %v1532
        %v1534 = vpop.f32.mrf.mxu0
        %v1535 = vadd.f32 %v1329, %v1534
        %1536 = vmatmul.bf16.gmra.mxu0 %v1293
        %v1537 = vpop.f32.mrf.mxu0
        %v1538 = vadd.f32 %v1329, %v1537
        %v1539 = vpop.f32.mrf.mxu0
        %v1540 = vadd.f32 %v1329, %v1539
        %1541 = vdwg.mxu0
        %1542 = vmatpush.bf16.msra.mxu0 %v1459
        %1543 = vmatpush.bf16.msra.mxu0 %v1457
        %1544 = vmatpush.bf16.msra.mxu0 %v1455
        %1545 = vmatpush.bf16.msra.mxu0 %v1453
        %1546 = vmatpush.bf16.msra.mxu0 %v1451
        %1547 = vmatpush.bf16.msra.mxu0 %v1449
        %1548 = vmatpush.bf16.msra.mxu0 %v1447
        %1549 = vmatpush.bf16.msra.mxu0 %v1445
        %1550 = vmatmul.bf16.gmra.mxu0 %v1280
        %v1551 = vpop.f32.mrf.mxu0
        %v1552 = vadd.f32 %v1503, %v1551
        %v1553 = vpop.f32.mrf.mxu0
        %v1554 = vadd.f32 %v1505, %v1553
        %1555 = vmatmul.bf16.gmra.mxu0 %v1282
        %v1556 = vpop.f32.mrf.mxu0
        %v1557 = vadd.f32 %v1508, %v1556
        %v1558 = vpop.f32.mrf.mxu0
        %v1559 = vadd.f32 %v1510, %v1558
        %1560 = vmatmul.bf16.gmra.mxu0 %v1284
        %v1561 = vpop.f32.mrf.mxu0
        %v1562 = vadd.f32 %v1513, %v1561
        %v1563 = vpop.f32.mrf.mxu0
        %v1564 = vadd.f32 %v1515, %v1563
        %1565 = vmatmul.bf16.gmra.mxu0 %v1286
        %v1566 = vpop.f32.mrf.mxu0
        %v1567 = vadd.f32 %v1518, %v1566
        %v1568 = vpop.f32.mrf.mxu0
        %v1569 = vadd.f32 %v1520, %v1568
        %1570 = vmatmul.bf16.gmra.mxu0 %v1288
        %v1571 = vpop.f32.mrf.mxu0
        %v1572 = vadd.f32 %v1523, %v1571
        %v1573 = vpop.f32.mrf.mxu0
        %v1574 = vadd.f32 %v1525, %v1573
        %1575 = vmatmul.bf16.gmra.mxu0 %v1290
        %v1576 = vpop.f32.mrf.mxu0
        %v1577 = vadd.f32 %v1528, %v1576
        %v1578 = vpop.f32.mrf.mxu0
        %v1579 = vadd.f32 %v1530, %v1578
        %1580 = vmatmul.bf16.gmra.mxu0 %v1292
        %v1581 = vpop.f32.mrf.mxu0
        %v1582 = vadd.f32 %v1533, %v1581
        %v1583 = vpop.f32.mrf.mxu0
        %v1584 = vadd.f32 %v1535, %v1583
        %1585 = vmatmul.bf16.gmra.mxu0 %v1294
        %v1586 = vpop.f32.mrf.mxu0
        %v1587 = vadd.f32 %v1538, %v1586
        %v1588 = vpop.f32.mrf.mxu0
        %v1589 = vadd.f32 %v1540, %v1588
        %1590 = vdwg.mxu0
        %1591 = vmatpush.bf16.msra.mxu0 %v1444
        %1592 = vmatpush.bf16.msra.mxu0 %v1442
        %1593 = vmatpush.bf16.msra.mxu0 %v1440
        %1594 = vmatpush.bf16.msra.mxu0 %v1438
        %1595 = vmatpush.bf16.msra.mxu0 %v1436
        %1596 = vmatpush.bf16.msra.mxu0 %v1434
        %1597 = vmatpush.bf16.msra.mxu0 %v1432
        %1598 = vmatpush.bf16.msra.mxu0 %v1430
        %1599 = vmatmul.bf16.gmra.mxu0 %v1279
        %v1600 = vpop.f32.mrf.mxu0
        %v1601 = vadd.f32 %v1330, %v1600
        %v1602 = vpop.f32.mrf.mxu0
        %v1603 = vadd.f32 %v1330, %v1602
        %1604 = vmatmul.bf16.gmra.mxu0 %v1281
        %v1605 = vpop.f32.mrf.mxu0
        %v1606 = vadd.f32 %v1330, %v1605
        %v1607 = vpop.f32.mrf.mxu0
        %v1608 = vadd.f32 %v1330, %v1607
        %1609 = vmatmul.bf16.gmra.mxu0 %v1283
        %v1610 = vpop.f32.mrf.mxu0
        %v1611 = vadd.f32 %v1330, %v1610
        %v1612 = vpop.f32.mrf.mxu0
        %v1613 = vadd.f32 %v1330, %v1612
        %1614 = vmatmul.bf16.gmra.mxu0 %v1285
        %v1615 = vpop.f32.mrf.mxu0
        %v1616 = vadd.f32 %v1330, %v1615
        %v1617 = vpop.f32.mrf.mxu0
        %v1618 = vadd.f32 %v1330, %v1617
        %1619 = vmatmul.bf16.gmra.mxu0 %v1287
        %v1620 = vpop.f32.mrf.mxu0
        %v1621 = vadd.f32 %v1330, %v1620
        %v1622 = vpop.f32.mrf.mxu0
        %v1623 = vadd.f32 %v1330, %v1622
        %1624 = vmatmul.bf16.gmra.mxu0 %v1289
        %v1625 = vpop.f32.mrf.mxu0
        %v1626 = vadd.f32 %v1330, %v1625
        %v1627 = vpop.f32.mrf.mxu0
        %v1628 = vadd.f32 %v1330, %v1627
        %1629 = vmatmul.bf16.gmra.mxu0 %v1291
        %v1630 = vpop.f32.mrf.mxu0
        %v1631 = vadd.f32 %v1330, %v1630
        %v1632 = vpop.f32.mrf.mxu0
        %v1633 = vadd.f32 %v1330, %v1632
        %1634 = vmatmul.bf16.gmra.mxu0 %v1293
        %v1635 = vpop.f32.mrf.mxu0
        %v1636 = vadd.f32 %v1330, %v1635
        %v1637 = vpop.f32.mrf.mxu0
        %v1638 = vadd.f32 %v1330, %v1637
        %1639 = vdwg.mxu0
        %1640 = vmatpush.bf16.msra.mxu0 %v1460
        %1641 = vmatpush.bf16.msra.mxu0 %v1458
        %1642 = vmatpush.bf16.msra.mxu0 %v1456
        %1643 = vmatpush.bf16.msra.mxu0 %v1454
        %1644 = vmatpush.bf16.msra.mxu0 %v1452
        %1645 = vmatpush.bf16.msra.mxu0 %v1450
        %1646 = vmatpush.bf16.msra.mxu0 %v1448
        %1647 = vmatpush.bf16.msra.mxu0 %v1446
        %1648 = vmatmul.bf16.gmra.mxu0 %v1280
        %v1649 = vpop.f32.mrf.mxu0
        %v1650 = vadd.f32 %v1601, %v1649
        %v1651 = vpop.f32.mrf.mxu0
        %v1652 = vadd.f32 %v1603, %v1651
        %1653 = vmatmul.bf16.gmra.mxu0 %v1282
        %v1654 = vpop.f32.mrf.mxu0
        %v1655 = vadd.f32 %v1606, %v1654
        %v1656 = vpop.f32.mrf.mxu0
        %v1657 = vadd.f32 %v1608, %v1656
        %1658 = vmatmul.bf16.gmra.mxu0 %v1284
        %v1659 = vpop.f32.mrf.mxu0
        %v1660 = vadd.f32 %v1611, %v1659
        %v1661 = vpop.f32.mrf.mxu0
        %v1662 = vadd.f32 %v1613, %v1661
        %1663 = vmatmul.bf16.gmra.mxu0 %v1286
        %v1664 = vpop.f32.mrf.mxu0
        %v1665 = vadd.f32 %v1616, %v1664
        %v1666 = vpop.f32.mrf.mxu0
        %v1667 = vadd.f32 %v1618, %v1666
        %1668 = vmatmul.bf16.gmra.mxu0 %v1288
        %v1669 = vpop.f32.mrf.mxu0
        %v1670 = vadd.f32 %v1621, %v1669
        %v1671 = vpop.f32.mrf.mxu0
        %v1672 = vadd.f32 %v1623, %v1671
        %1673 = vmatmul.bf16.gmra.mxu0 %v1290
        %v1674 = vpop.f32.mrf.mxu0
        %v1675 = vadd.f32 %v1626, %v1674
        %v1676 = vpop.f32.mrf.mxu0
        %v1677 = vadd.f32 %v1628, %v1676
        %1678 = vmatmul.bf16.gmra.mxu0 %v1292
        %v1679 = vpop.f32.mrf.mxu0
        %v1680 = vadd.f32 %v1631, %v1679
        %v1681 = vpop.f32.mrf.mxu0
        %v1682 = vadd.f32 %v1633, %v1681
        %1683 = vmatmul.bf16.gmra.mxu0 %v1294
        %v1684 = vpop.f32.mrf.mxu0
        %v1685 = vadd.f32 %v1636, %v1684
        %v1686 = vpop.f32.mrf.mxu0
        %v1687 = vadd.f32 %v1638, %v1686
        %1688 = vdwg.mxu0
        %v1689 = vmul.f32 %v1552, 0.2
        %v1690 = vmul.f32 %v1650, 0.2
        %v1691 = vmul.f32 %v1554, 0.2
        %v1692 = vmul.f32 %v1652, 0.2
        %v1693 = vmul.f32 %v1557, 0.2
        %v1694 = vmul.f32 %v1655, 0.2
        %v1695 = vmul.f32 %v1559, 0.2
        %v1696 = vmul.f32 %v1657, 0.2
        %v1697 = vmul.f32 %v1562, 0.2
        %v1698 = vmul.f32 %v1660, 0.2
        %v1699 = vmul.f32 %v1564, 0.2
        %v1700 = vmul.f32 %v1662, 0.2
        %v1701 = vmul.f32 %v1567, 0.2
        %v1702 = vmul.f32 %v1665, 0.2
        %v1703 = vmul.f32 %v1569, 0.2
        %v1704 = vmul.f32 %v1667, 0.2
        %v1705 = vmul.f32 %v1572, 0.2
        %v1706 = vmul.f32 %v1670, 0.2
        %v1707 = vmul.f32 %v1574, 0.2
        %v1708 = vmul.f32 %v1672, 0.2
        %v1709 = vmul.f32 %v1577, 0.2
        %v1710 = vmul.f32 %v1675, 0.2
        %v1711 = vmul.f32 %v1579, 0.2
        %v1712 = vmul.f32 %v1677, 0.2
        %v1713 = vmul.f32 %v1582, 0.2
        %v1714 = vmul.f32 %v1680, 0.2
        %v1715 = vmul.f32 %v1584, 0.2
        %v1716 = vmul.f32 %v1682, 0.2
        %v1717 = vmul.f32 %v1587, 0.2
        %v1718 = vmul.f32 %v1685, 0.2
        %v1719 = vmul.f32 %v1589, 0.2
        %v1720 = vmul.f32 %v1687, 0.2
        %v1721 = vmax.f32 %v1552, %v1689
        %v1722 = vmax.f32 %v1650, %v1690
        %v1723 = vmax.f32 %v1554, %v1691
        %v1724 = vmax.f32 %v1652, %v1692
        %v1725 = vmax.f32 %v1557, %v1693
        %v1726 = vmax.f32 %v1655, %v1694
        %v1727 = vmax.f32 %v1559, %v1695
        %v1728 = vmax.f32 %v1657, %v1696
        %v1729 = vmax.f32 %v1562, %v1697
        %v1730 = vmax.f32 %v1660, %v1698
        %v1731 = vmax.f32 %v1564, %v1699
        %v1732 = vmax.f32 %v1662, %v1700
        %v1733 = vmax.f32 %v1567, %v1701
        %v1734 = vmax.f32 %v1665, %v1702
        %v1735 = vmax.f32 %v1569, %v1703
        %v1736 = vmax.f32 %v1667, %v1704
        %v1737 = vmax.f32 %v1572, %v1705
        %v1738 = vmax.f32 %v1670, %v1706
        %v1739 = vmax.f32 %v1574, %v1707
        %v1740 = vmax.f32 %v1672, %v1708
        %v1741 = vmax.f32 %v1577, %v1709
        %v1742 = vmax.f32 %v1675, %v1710
        %v1743 = vmax.f32 %v1579, %v1711
        %v1744 = vmax.f32 %v1677, %v1712
        %v1745 = vmax.f32 %v1582, %v1713
        %v1746 = vmax.f32 %v1680, %v1714
        %v1747 = vmax.f32 %v1584, %v1715
        %v1748 = vmax.f32 %v1682, %v1716
        %v1749 = vmax.f32 %v1587, %v1717
        %v1750 = vmax.f32 %v1685, %v1718
        %v1751 = vmax.f32 %v1589, %v1719
        %v1752 = vmax.f32 %v1687, %v1720
        %v1753 = vpack.c.bf16 %v1723, %v1721
        %v1754 = vpack.c.bf16 %v1724, %v1722
        %v1755 = vpack.c.bf16 %v1727, %v1725
        %v1756 = vpack.c.bf16 %v1728, %v1726
        %v1757 = vpack.c.bf16 %v1731, %v1729
        %v1758 = vpack.c.bf16 %v1732, %v1730
        %v1759 = vpack.c.bf16 %v1735, %v1733
        %v1760 = vpack.c.bf16 %v1736, %v1734
        %v1761 = vpack.c.bf16 %v1739, %v1737
        %v1762 = vpack.c.bf16 %v1740, %v1738
        %v1763 = vpack.c.bf16 %v1743, %v1741
        %v1764 = vpack.c.bf16 %v1744, %v1742
        %v1765 = vpack.c.bf16 %v1747, %v1745
        %v1766 = vpack.c.bf16 %v1748, %v1746
        %v1767 = vpack.c.bf16 %v1751, %v1749
        %v1768 = vpack.c.bf16 %v1752, %v1750
        %v1769 = vld [vmem:[#allocation11] sm:$0xff]
        %v1770 = vld [vmem:[#allocation11 + $0x8] sm:$0xff]
        %v1771 = vld [vmem:[#allocation11 + $0x10] sm:$0xff]
        %v1772 = vld [vmem:[#allocation11 + $0x18] sm:$0xff]
        %v1773 = vld [vmem:[#allocation11 + $0x20] sm:$0xff]
        %v1774 = vld [vmem:[#allocation11 + $0x28] sm:$0xff]
        %v1775 = vld [vmem:[#allocation11 + $0x30] sm:$0xff]
        %v1776 = vld [vmem:[#allocation11 + $0x38] sm:$0xff]
        %v1777 = vld [vmem:[#allocation11 + $0x40] sm:$0xff]
        %v1778 = vld [vmem:[#allocation11 + $0x48] sm:$0xff]
        %v1779 = vld [vmem:[#allocation11 + $0x50] sm:$0xff]
        %v1780 = vld [vmem:[#allocation11 + $0x58] sm:$0xff]
        %v1781 = vld [vmem:[#allocation11 + $0x60] sm:$0xff]
        %v1782 = vld [vmem:[#allocation11 + $0x68] sm:$0xff]
        %v1783 = vld [vmem:[#allocation11 + $0x70] sm:$0xff]
        %v1784 = vld [vmem:[#allocation11 + $0x78] sm:$0xff]
        %v1785 = vld [vmem:[#allocation11 + $0x80] sm:$0xff]
        %v1786 = vld [vmem:[#allocation11 + $0x88] sm:$0xff]
        %v1787 = vld [vmem:[#allocation11 + $0x90] sm:$0xff]
        %v1788 = vld [vmem:[#allocation11 + $0x98] sm:$0xff]
        %v1789 = vld [vmem:[#allocation11 + $0xa0] sm:$0xff]
        %v1790 = vld [vmem:[#allocation11 + $0xa8] sm:$0xff]
        %v1791 = vld [vmem:[#allocation11 + $0xb0] sm:$0xff]
        %v1792 = vld [vmem:[#allocation11 + $0xb8] sm:$0xff]
        %v1793 = vld [vmem:[#allocation11 + $0xc0] sm:$0xff]
        %v1794 = vld [vmem:[#allocation11 + $0xc8] sm:$0xff]
        %v1795 = vld [vmem:[#allocation11 + $0xd0] sm:$0xff]
        %v1796 = vld [vmem:[#allocation11 + $0xd8] sm:$0xff]
        %v1797 = vld [vmem:[#allocation11 + $0xe0] sm:$0xff]
        %v1798 = vld [vmem:[#allocation11 + $0xe8] sm:$0xff]
        %v1799 = vld [vmem:[#allocation11 + $0xf0] sm:$0xff]
        %v1800 = vld [vmem:[#allocation11 + $0xf8] sm:$0xff]
        %v1801 = vld [vmem:[%s8] sm:$0x3]
        %v1803 = vperm.slane %v1801, 0
        %v1804 = vperm.slane %v1801, 1
        %v1839 = vunpack.c.l.b16 %v1769
        %v1840 = vunpack.c.h.b16 %v1769
        %v1841 = vunpack.c.l.b16 %v1770
        %v1842 = vunpack.c.h.b16 %v1770
        %v1843 = vunpack.c.l.b16 %v1771
        %v1844 = vunpack.c.h.b16 %v1771
        %v1845 = vunpack.c.l.b16 %v1772
        %v1846 = vunpack.c.h.b16 %v1772
        %v1847 = vunpack.c.l.b16 %v1773
        %v1848 = vunpack.c.h.b16 %v1773
        %v1849 = vunpack.c.l.b16 %v1774
        %v1850 = vunpack.c.h.b16 %v1774
        %v1851 = vunpack.c.l.b16 %v1775
        %v1852 = vunpack.c.h.b16 %v1775
        %v1853 = vunpack.c.l.b16 %v1776
        %v1854 = vunpack.c.h.b16 %v1776
        %v1855 = vunpack.c.l.b16 %v1777
        %v1856 = vunpack.c.h.b16 %v1777
        %v1857 = vunpack.c.l.b16 %v1778
        %v1858 = vunpack.c.h.b16 %v1778
        %v1859 = vunpack.c.l.b16 %v1779
        %v1860 = vunpack.c.h.b16 %v1779
        %v1861 = vunpack.c.l.b16 %v1780
        %v1862 = vunpack.c.h.b16 %v1780
        %v1863 = vunpack.c.l.b16 %v1781
        %v1864 = vunpack.c.h.b16 %v1781
        %v1865 = vunpack.c.l.b16 %v1782
        %v1866 = vunpack.c.h.b16 %v1782
        %v1867 = vunpack.c.l.b16 %v1783
        %v1868 = vunpack.c.h.b16 %v1783
        %v1869 = vunpack.c.l.b16 %v1784
        %v1870 = vunpack.c.h.b16 %v1784
        %v1871 = vunpack.c.l.b16 %v1785
        %v1872 = vunpack.c.h.b16 %v1785
        %v1873 = vunpack.c.l.b16 %v1786
        %v1874 = vunpack.c.h.b16 %v1786
        %v1875 = vunpack.c.l.b16 %v1787
        %v1876 = vunpack.c.h.b16 %v1787
        %v1877 = vunpack.c.l.b16 %v1788
        %v1878 = vunpack.c.h.b16 %v1788
        %v1879 = vunpack.c.l.b16 %v1789
        %v1880 = vunpack.c.h.b16 %v1789
        %v1881 = vunpack.c.l.b16 %v1790
        %v1882 = vunpack.c.h.b16 %v1790
        %v1883 = vunpack.c.l.b16 %v1791
        %v1884 = vunpack.c.h.b16 %v1791
        %v1885 = vunpack.c.l.b16 %v1792
        %v1886 = vunpack.c.h.b16 %v1792
        %v1887 = vunpack.c.l.b16 %v1793
        %v1888 = vunpack.c.h.b16 %v1793
        %v1889 = vunpack.c.l.b16 %v1794
        %v1890 = vunpack.c.h.b16 %v1794
        %v1891 = vunpack.c.l.b16 %v1795
        %v1892 = vunpack.c.h.b16 %v1795
        %v1893 = vunpack.c.l.b16 %v1796
        %v1894 = vunpack.c.h.b16 %v1796
        %v1895 = vunpack.c.l.b16 %v1797
        %v1896 = vunpack.c.h.b16 %v1797
        %v1897 = vunpack.c.l.b16 %v1798
        %v1898 = vunpack.c.h.b16 %v1798
        %v1899 = vunpack.c.l.b16 %v1799
        %v1900 = vunpack.c.h.b16 %v1799
        %v1901 = vunpack.c.l.b16 %v1800
        %v1902 = vunpack.c.h.b16 %v1800
        %v1903 = vpack.c.b16 %v1841, %v1839
        %v1904 = vpack.c.b16 %v1842, %v1840
        %v1905 = vpack.c.b16 %v1845, %v1843
        %v1906 = vpack.c.b16 %v1846, %v1844
        %v1907 = vpack.c.b16 %v1849, %v1847
        %v1908 = vpack.c.b16 %v1850, %v1848
        %v1909 = vpack.c.b16 %v1853, %v1851
        %v1910 = vpack.c.b16 %v1854, %v1852
        %v1911 = vpack.c.b16 %v1857, %v1855
        %v1912 = vpack.c.b16 %v1858, %v1856
        %v1913 = vpack.c.b16 %v1861, %v1859
        %v1914 = vpack.c.b16 %v1862, %v1860
        %v1915 = vpack.c.b16 %v1865, %v1863
        %v1916 = vpack.c.b16 %v1866, %v1864
        %v1917 = vpack.c.b16 %v1869, %v1867
        %v1918 = vpack.c.b16 %v1870, %v1868
        %v1919 = vpack.c.b16 %v1873, %v1871
        %v1920 = vpack.c.b16 %v1874, %v1872
        %v1921 = vpack.c.b16 %v1877, %v1875
        %v1922 = vpack.c.b16 %v1878, %v1876
        %v1923 = vpack.c.b16 %v1881, %v1879
        %v1924 = vpack.c.b16 %v1882, %v1880
        %v1925 = vpack.c.b16 %v1885, %v1883
        %v1926 = vpack.c.b16 %v1886, %v1884
        %v1927 = vpack.c.b16 %v1889, %v1887
        %v1928 = vpack.c.b16 %v1890, %v1888
        %v1929 = vpack.c.b16 %v1893, %v1891
        %v1930 = vpack.c.b16 %v1894, %v1892
        %v1931 = vpack.c.b16 %v1897, %v1895
        %v1932 = vpack.c.b16 %v1898, %v1896
        %v1933 = vpack.c.b16 %v1901, %v1899
        %v1934 = vpack.c.b16 %v1902, %v1900
        %1967 = vmatpush.bf16.msra.mxu0 %v1917
        %1968 = vmatpush.bf16.msra.mxu0 %v1915
        %1969 = vmatpush.bf16.msra.mxu0 %v1913
        %1970 = vmatpush.bf16.msra.mxu0 %v1911
        %1971 = vmatpush.bf16.msra.mxu0 %v1909
        %1972 = vmatpush.bf16.msra.mxu0 %v1907
        %1973 = vmatpush.bf16.msra.mxu0 %v1905
        %1974 = vmatpush.bf16.msra.mxu0 %v1903
        %1975 = vmatmul.bf16.gmra.mxu0 %v1753
        %v1976 = vpop.f32.mrf.mxu0
        %v1977 = vadd.f32 %v1803, %v1976
        %v1978 = vpop.f32.mrf.mxu0
        %v1979 = vadd.f32 %v1803, %v1978
        %1980 = vmatmul.bf16.gmra.mxu0 %v1755
        %v1981 = vpop.f32.mrf.mxu0
        %v1982 = vadd.f32 %v1803, %v1981
        %v1983 = vpop.f32.mrf.mxu0
        %v1984 = vadd.f32 %v1803, %v1983
        %1985 = vmatmul.bf16.gmra.mxu0 %v1757
        %v1986 = vpop.f32.mrf.mxu0
        %v1987 = vadd.f32 %v1803, %v1986
        %v1988 = vpop.f32.mrf.mxu0
        %v1989 = vadd.f32 %v1803, %v1988
        %1990 = vmatmul.bf16.gmra.mxu0 %v1759
        %v1991 = vpop.f32.mrf.mxu0
        %v1992 = vadd.f32 %v1803, %v1991
        %v1993 = vpop.f32.mrf.mxu0
        %v1994 = vadd.f32 %v1803, %v1993
        %1995 = vmatmul.bf16.gmra.mxu0 %v1761
        %v1996 = vpop.f32.mrf.mxu0
        %v1997 = vadd.f32 %v1803, %v1996
        %v1998 = vpop.f32.mrf.mxu0
        %v1999 = vadd.f32 %v1803, %v1998
        %2000 = vmatmul.bf16.gmra.mxu0 %v1763
        %v2001 = vpop.f32.mrf.mxu0
        %v2002 = vadd.f32 %v1803, %v2001
        %v2003 = vpop.f32.mrf.mxu0
        %v2004 = vadd.f32 %v1803, %v2003
        %2005 = vmatmul.bf16.gmra.mxu0 %v1765
        %v2006 = vpop.f32.mrf.mxu0
        %v2007 = vadd.f32 %v1803, %v2006
        %v2008 = vpop.f32.mrf.mxu0
        %v2009 = vadd.f32 %v1803, %v2008
        %2010 = vmatmul.bf16.gmra.mxu0 %v1767
        %v2011 = vpop.f32.mrf.mxu0
        %v2012 = vadd.f32 %v1803, %v2011
        %v2013 = vpop.f32.mrf.mxu0
        %v2014 = vadd.f32 %v1803, %v2013
        %2015 = vdwg.mxu0
        %2016 = vmatpush.bf16.msra.mxu0 %v1933
        %2017 = vmatpush.bf16.msra.mxu0 %v1931
        %2018 = vmatpush.bf16.msra.mxu0 %v1929
        %2019 = vmatpush.bf16.msra.mxu0 %v1927
        %2020 = vmatpush.bf16.msra.mxu0 %v1925
        %2021 = vmatpush.bf16.msra.mxu0 %v1923
        %2022 = vmatpush.bf16.msra.mxu0 %v1921
        %2023 = vmatpush.bf16.msra.mxu0 %v1919
        %2024 = vmatmul.bf16.gmra.mxu0 %v1754
        %v2025 = vpop.f32.mrf.mxu0
        %v2026 = vadd.f32 %v1977, %v2025
        %v2027 = vpop.f32.mrf.mxu0
        %v2028 = vadd.f32 %v1979, %v2027
        %2029 = vmatmul.bf16.gmra.mxu0 %v1756
        %v2030 = vpop.f32.mrf.mxu0
        %v2031 = vadd.f32 %v1982, %v2030
        %v2032 = vpop.f32.mrf.mxu0
        %v2033 = vadd.f32 %v1984, %v2032
        %2034 = vmatmul.bf16.gmra.mxu0 %v1758
        %v2035 = vpop.f32.mrf.mxu0
        %v2036 = vadd.f32 %v1987, %v2035
        %v2037 = vpop.f32.mrf.mxu0
        %v2038 = vadd.f32 %v1989, %v2037
        %2039 = vmatmul.bf16.gmra.mxu0 %v1760
        %v2040 = vpop.f32.mrf.mxu0
        %v2041 = vadd.f32 %v1992, %v2040
        %v2042 = vpop.f32.mrf.mxu0
        %v2043 = vadd.f32 %v1994, %v2042
        %2044 = vmatmul.bf16.gmra.mxu0 %v1762
        %v2045 = vpop.f32.mrf.mxu0
        %v2046 = vadd.f32 %v1997, %v2045
        %v2047 = vpop.f32.mrf.mxu0
        %v2048 = vadd.f32 %v1999, %v2047
        %2049 = vmatmul.bf16.gmra.mxu0 %v1764
        %v2050 = vpop.f32.mrf.mxu0
        %v2051 = vadd.f32 %v2002, %v2050
        %v2052 = vpop.f32.mrf.mxu0
        %v2053 = vadd.f32 %v2004, %v2052
        %2054 = vmatmul.bf16.gmra.mxu0 %v1766
        %v2055 = vpop.f32.mrf.mxu0
        %v2056 = vadd.f32 %v2007, %v2055
        %v2057 = vpop.f32.mrf.mxu0
        %v2058 = vadd.f32 %v2009, %v2057
        %2059 = vmatmul.bf16.gmra.mxu0 %v1768
        %v2060 = vpop.f32.mrf.mxu0
        %v2061 = vadd.f32 %v2012, %v2060
        %v2062 = vpop.f32.mrf.mxu0
        %v2063 = vadd.f32 %v2014, %v2062
        %2064 = vdwg.mxu0
        %2065 = vmatpush.bf16.msra.mxu0 %v1918
        %2066 = vmatpush.bf16.msra.mxu0 %v1916
        %2067 = vmatpush.bf16.msra.mxu0 %v1914
        %2068 = vmatpush.bf16.msra.mxu0 %v1912
        %2069 = vmatpush.bf16.msra.mxu0 %v1910
        %2070 = vmatpush.bf16.msra.mxu0 %v1908
        %2071 = vmatpush.bf16.msra.mxu0 %v1906
        %2072 = vmatpush.bf16.msra.mxu0 %v1904
        %2073 = vmatmul.bf16.gmra.mxu0 %v1753
        %v2074 = vpop.f32.mrf.mxu0
        %v2075 = vadd.f32 %v1804, %v2074
        %v2076 = vpop.f32.mrf.mxu0
        %v2077 = vadd.f32 %v1804, %v2076
        %2078 = vmatmul.bf16.gmra.mxu0 %v1755
        %v2079 = vpop.f32.mrf.mxu0
        %v2080 = vadd.f32 %v1804, %v2079
        %v2081 = vpop.f32.mrf.mxu0
        %v2082 = vadd.f32 %v1804, %v2081
        %2083 = vmatmul.bf16.gmra.mxu0 %v1757
        %v2084 = vpop.f32.mrf.mxu0
        %v2085 = vadd.f32 %v1804, %v2084
        %v2086 = vpop.f32.mrf.mxu0
        %v2087 = vadd.f32 %v1804, %v2086
        %2088 = vmatmul.bf16.gmra.mxu0 %v1759
        %v2089 = vpop.f32.mrf.mxu0
        %v2090 = vadd.f32 %v1804, %v2089
        %v2091 = vpop.f32.mrf.mxu0
        %v2092 = vadd.f32 %v1804, %v2091
        %2093 = vmatmul.bf16.gmra.mxu0 %v1761
        %v2094 = vpop.f32.mrf.mxu0
        %v2095 = vadd.f32 %v1804, %v2094
        %v2096 = vpop.f32.mrf.mxu0
        %v2097 = vadd.f32 %v1804, %v2096
        %2098 = vmatmul.bf16.gmra.mxu0 %v1763
        %v2099 = vpop.f32.mrf.mxu0
        %v2100 = vadd.f32 %v1804, %v2099
        %v2101 = vpop.f32.mrf.mxu0
        %v2102 = vadd.f32 %v1804, %v2101
        %2103 = vmatmul.bf16.gmra.mxu0 %v1765
        %v2104 = vpop.f32.mrf.mxu0
        %v2105 = vadd.f32 %v1804, %v2104
        %v2106 = vpop.f32.mrf.mxu0
        %v2107 = vadd.f32 %v1804, %v2106
        %2108 = vmatmul.bf16.gmra.mxu0 %v1767
        %v2109 = vpop.f32.mrf.mxu0
        %v2110 = vadd.f32 %v1804, %v2109
        %v2111 = vpop.f32.mrf.mxu0
        %v2112 = vadd.f32 %v1804, %v2111
        %2113 = vdwg.mxu0
        %2114 = vmatpush.bf16.msra.mxu0 %v1934
        %2115 = vmatpush.bf16.msra.mxu0 %v1932
        %2116 = vmatpush.bf16.msra.mxu0 %v1930
        %2117 = vmatpush.bf16.msra.mxu0 %v1928
        %2118 = vmatpush.bf16.msra.mxu0 %v1926
        %2119 = vmatpush.bf16.msra.mxu0 %v1924
        %2120 = vmatpush.bf16.msra.mxu0 %v1922
        %2121 = vmatpush.bf16.msra.mxu0 %v1920
        %2122 = vmatmul.bf16.gmra.mxu0 %v1754
        %v2123 = vpop.f32.mrf.mxu0
        %v2124 = vadd.f32 %v2075, %v2123
        %v2125 = vpop.f32.mrf.mxu0
        %v2126 = vadd.f32 %v2077, %v2125
        %2127 = vmatmul.bf16.gmra.mxu0 %v1756
        %v2128 = vpop.f32.mrf.mxu0
        %v2129 = vadd.f32 %v2080, %v2128
        %v2130 = vpop.f32.mrf.mxu0
        %v2131 = vadd.f32 %v2082, %v2130
        %2132 = vmatmul.bf16.gmra.mxu0 %v1758
        %v2133 = vpop.f32.mrf.mxu0
        %v2134 = vadd.f32 %v2085, %v2133
        %v2135 = vpop.f32.mrf.mxu0
        %v2136 = vadd.f32 %v2087, %v2135
        %2137 = vmatmul.bf16.gmra.mxu0 %v1760
        %v2138 = vpop.f32.mrf.mxu0
        %v2139 = vadd.f32 %v2090, %v2138
        %v2140 = vpop.f32.mrf.mxu0
        %v2141 = vadd.f32 %v2092, %v2140
        %2142 = vmatmul.bf16.gmra.mxu0 %v1762
        %v2143 = vpop.f32.mrf.mxu0
        %v2144 = vadd.f32 %v2095, %v2143
        %v2145 = vpop.f32.mrf.mxu0
        %v2146 = vadd.f32 %v2097, %v2145
        %2147 = vmatmul.bf16.gmra.mxu0 %v1764
        %v2148 = vpop.f32.mrf.mxu0
        %v2149 = vadd.f32 %v2100, %v2148
        %v2150 = vpop.f32.mrf.mxu0
        %v2151 = vadd.f32 %v2102, %v2150
        %2152 = vmatmul.bf16.gmra.mxu0 %v1766
        %v2153 = vpop.f32.mrf.mxu0
        %v2154 = vadd.f32 %v2105, %v2153
        %v2155 = vpop.f32.mrf.mxu0
        %v2156 = vadd.f32 %v2107, %v2155
        %2157 = vmatmul.bf16.gmra.mxu0 %v1768
        %v2158 = vpop.f32.mrf.mxu0
        %v2159 = vadd.f32 %v2110, %v2158
        %v2160 = vpop.f32.mrf.mxu0
        %v2161 = vadd.f32 %v2112, %v2160
        %2162 = vdwg.mxu0
        %v2163 = vmul.f32 %v2026, 0.2
        %v2164 = vmul.f32 %v2124, 0.2
        %v2165 = vmul.f32 %v2028, 0.2
        %v2166 = vmul.f32 %v2126, 0.2
        %v2167 = vmul.f32 %v2031, 0.2
        %v2168 = vmul.f32 %v2129, 0.2
        %v2169 = vmul.f32 %v2033, 0.2
        %v2170 = vmul.f32 %v2131, 0.2
        %v2171 = vmul.f32 %v2036, 0.2
        %v2172 = vmul.f32 %v2134, 0.2
        %v2173 = vmul.f32 %v2038, 0.2
        %v2174 = vmul.f32 %v2136, 0.2
        %v2175 = vmul.f32 %v2041, 0.2
        %v2176 = vmul.f32 %v2139, 0.2
        %v2177 = vmul.f32 %v2043, 0.2
        %v2178 = vmul.f32 %v2141, 0.2
        %v2179 = vmul.f32 %v2046, 0.2
        %v2180 = vmul.f32 %v2144, 0.2
        %v2181 = vmul.f32 %v2048, 0.2
        %v2182 = vmul.f32 %v2146, 0.2
        %v2183 = vmul.f32 %v2051, 0.2
        %v2184 = vmul.f32 %v2149, 0.2
        %v2185 = vmul.f32 %v2053, 0.2
        %v2186 = vmul.f32 %v2151, 0.2
        %v2187 = vmul.f32 %v2056, 0.2
        %v2188 = vmul.f32 %v2154, 0.2
        %v2189 = vmul.f32 %v2058, 0.2
        %v2190 = vmul.f32 %v2156, 0.2
        %v2191 = vmul.f32 %v2061, 0.2
        %v2192 = vmul.f32 %v2159, 0.2
        %v2193 = vmul.f32 %v2063, 0.2
        %v2194 = vmul.f32 %v2161, 0.2
        %v2195 = vmax.f32 %v2026, %v2163
        %v2196 = vmax.f32 %v2124, %v2164
        %v2197 = vmax.f32 %v2028, %v2165
        %v2198 = vmax.f32 %v2126, %v2166
        %v2199 = vmax.f32 %v2031, %v2167
        %v2200 = vmax.f32 %v2129, %v2168
        %v2201 = vmax.f32 %v2033, %v2169
        %v2202 = vmax.f32 %v2131, %v2170
        %v2203 = vmax.f32 %v2036, %v2171
        %v2204 = vmax.f32 %v2134, %v2172
        %v2205 = vmax.f32 %v2038, %v2173
        %v2206 = vmax.f32 %v2136, %v2174
        %v2207 = vmax.f32 %v2041, %v2175
        %v2208 = vmax.f32 %v2139, %v2176
        %v2209 = vmax.f32 %v2043, %v2177
        %v2210 = vmax.f32 %v2141, %v2178
        %v2211 = vmax.f32 %v2046, %v2179
        %v2212 = vmax.f32 %v2144, %v2180
        %v2213 = vmax.f32 %v2048, %v2181
        %v2214 = vmax.f32 %v2146, %v2182
        %v2215 = vmax.f32 %v2051, %v2183
        %v2216 = vmax.f32 %v2149, %v2184
        %v2217 = vmax.f32 %v2053, %v2185
        %v2218 = vmax.f32 %v2151, %v2186
        %v2219 = vmax.f32 %v2056, %v2187
        %v2220 = vmax.f32 %v2154, %v2188
        %v2221 = vmax.f32 %v2058, %v2189
        %v2222 = vmax.f32 %v2156, %v2190
        %v2223 = vmax.f32 %v2061, %v2191
        %v2224 = vmax.f32 %v2159, %v2192
        %v2225 = vmax.f32 %v2063, %v2193
        %v2226 = vmax.f32 %v2161, %v2194
        %v2227 = vld [vmem:[%s9] sm:$0x3]
        %v2229 = vperm.slane %v2227, 0
        %v2230 = vperm.slane %v2227, 1
        %v2233 = vmul.f32 %v2195, %v2229
        %v2234 = vmul.f32 %v2196, %v2230
        %v2235 = vmul.f32 %v2197, %v2229
        %v2236 = vmul.f32 %v2198, %v2230
        %v2237 = vmul.f32 %v2199, %v2229
        %v2238 = vmul.f32 %v2200, %v2230
        %v2239 = vmul.f32 %v2201, %v2229
        %v2240 = vmul.f32 %v2202, %v2230
        %v2241 = vmul.f32 %v2203, %v2229
        %v2242 = vmul.f32 %v2204, %v2230
        %v2243 = vmul.f32 %v2205, %v2229
        %v2244 = vmul.f32 %v2206, %v2230
        %v2245 = vmul.f32 %v2207, %v2229
        %v2246 = vmul.f32 %v2208, %v2230
        %v2247 = vmul.f32 %v2209, %v2229
        %v2248 = vmul.f32 %v2210, %v2230
        %v2249 = vmul.f32 %v2211, %v2229
        %v2250 = vmul.f32 %v2212, %v2230
        %v2251 = vmul.f32 %v2213, %v2229
        %v2252 = vmul.f32 %v2214, %v2230
        %v2253 = vmul.f32 %v2215, %v2229
        %v2254 = vmul.f32 %v2216, %v2230
        %v2255 = vmul.f32 %v2217, %v2229
        %v2256 = vmul.f32 %v2218, %v2230
        %v2257 = vmul.f32 %v2219, %v2229
        %v2258 = vmul.f32 %v2220, %v2230
        %v2259 = vmul.f32 %v2221, %v2229
        %v2260 = vmul.f32 %v2222, %v2230
        %v2261 = vmul.f32 %v2223, %v2229
        %v2262 = vmul.f32 %v2224, %v2230
        %v2263 = vmul.f32 %v2225, %v2229
        %v2264 = vmul.f32 %v2226, %v2230
        %v2265 = vadd.f32 %v2233, %v2234
        %2266 = vadd.xlane.f32.xlu0 %v2265
        %v2267 = vpop.xlane.xlu0 %2266
        %v2268 = vadd.f32 %v2235, %v2236
        %2269 = vadd.xlane.f32.xlu0 %v2268
        %v2270 = vpop.xlane.xlu0 %2269
        %v2271 = vadd.f32 %v2237, %v2238
        %2272 = vadd.xlane.f32.xlu0 %v2271
        %v2273 = vpop.xlane.xlu0 %2272
        %v2274 = vadd.f32 %v2239, %v2240
        %2275 = vadd.xlane.f32.xlu0 %v2274
        %v2276 = vpop.xlane.xlu0 %2275
        %v2277 = vadd.f32 %v2241, %v2242
        %2278 = vadd.xlane.f32.xlu0 %v2277
        %v2279 = vpop.xlane.xlu0 %2278
        %v2280 = vadd.f32 %v2243, %v2244
        %2281 = vadd.xlane.f32.xlu0 %v2280
        %v2282 = vpop.xlane.xlu0 %2281
        %v2283 = vadd.f32 %v2245, %v2246
        %2284 = vadd.xlane.f32.xlu0 %v2283
        %v2285 = vpop.xlane.xlu0 %2284
        %v2286 = vadd.f32 %v2247, %v2248
        %2287 = vadd.xlane.f32.xlu0 %v2286
        %v2288 = vpop.xlane.xlu0 %2287
        %v2289 = vadd.f32 %v2249, %v2250
        %2290 = vadd.xlane.f32.xlu0 %v2289
        %v2291 = vpop.xlane.xlu0 %2290
        %v2292 = vadd.f32 %v2251, %v2252
        %2293 = vadd.xlane.f32.xlu0 %v2292
        %v2294 = vpop.xlane.xlu0 %2293
        %v2295 = vadd.f32 %v2253, %v2254
        %2296 = vadd.xlane.f32.xlu0 %v2295
        %v2297 = vpop.xlane.xlu0 %2296
        %v2298 = vadd.f32 %v2255, %v2256
        %2299 = vadd.xlane.f32.xlu0 %v2298
        %v2300 = vpop.xlane.xlu0 %2299
        %v2301 = vadd.f32 %v2257, %v2258
        %2302 = vadd.xlane.f32.xlu0 %v2301
        %v2303 = vpop.xlane.xlu0 %2302
        %v2304 = vadd.f32 %v2259, %v2260
        %2305 = vadd.xlane.f32.xlu0 %v2304
        %v2306 = vpop.xlane.xlu0 %2305
        %v2307 = vadd.f32 %v2261, %v2262
        %2308 = vadd.xlane.f32.xlu0 %v2307
        %v2309 = vpop.xlane.xlu0 %2308
        %v2310 = vadd.f32 %v2263, %v2264
        %2311 = vadd.xlane.f32.xlu0 %v2310
        %v2312 = vpop.xlane.xlu0 %2311
        %v2313 = vld [vmem:[#allocation2] sm:$0x1]
        %v2315 = vperm.slane %v2313, 0
        %v2317 = vadd.f32 %v2267, %v2315
        %v2318 = vadd.f32 %v2270, %v2315
        %v2319 = vadd.f32 %v2273, %v2315
        %v2320 = vadd.f32 %v2276, %v2315
        %v2321 = vadd.f32 %v2279, %v2315
        %v2322 = vadd.f32 %v2282, %v2315
        %v2323 = vadd.f32 %v2285, %v2315
        %v2324 = vadd.f32 %v2288, %v2315
        %v2325 = vadd.f32 %v2291, %v2315
        %v2326 = vadd.f32 %v2294, %v2315
        %v2327 = vadd.f32 %v2297, %v2315
        %v2328 = vadd.f32 %v2300, %v2315
        %v2329 = vadd.f32 %v2303, %v2315
        %v2330 = vadd.f32 %v2306, %v2315
        %v2331 = vadd.f32 %v2309, %v2315
        %v2332 = vadd.f32 %v2312, %v2315
        %2334 = vset.pattern.permute.xlu0 0
        %2335 = vperm.xlu0 %2334, %v2317
        %v2336 = vpop.permute.xlu0 %2335
        %2339 = vset.pattern.permute.xlu0 0
        %2340 = vperm.xlu0 %2339, %v2318
        %v2341 = vpop.permute.xlu0 %2340
        %2344 = vset.pattern.permute.xlu0 0
        %2345 = vperm.xlu0 %2344, %v2319
        %v2346 = vpop.permute.xlu0 %2345
        %2349 = vset.pattern.permute.xlu0 0
        %2350 = vperm.xlu0 %2349, %v2320
        %v2351 = vpop.permute.xlu0 %2350
        %2354 = vset.pattern.permute.xlu0 0
        %2355 = vperm.xlu0 %2354, %v2321
        %v2356 = vpop.permute.xlu0 %2355
        %2359 = vset.pattern.permute.xlu0 0
        %2360 = vperm.xlu0 %2359, %v2322
        %v2361 = vpop.permute.xlu0 %2360
        %2364 = vset.pattern.permute.xlu0 0
        %2365 = vperm.xlu0 %2364, %v2323
        %v2366 = vpop.permute.xlu0 %2365
        %2369 = vset.pattern.permute.xlu0 0
        %2370 = vperm.xlu0 %2369, %v2324
        %v2371 = vpop.permute.xlu0 %2370
        %2374 = vset.pattern.permute.xlu0 0
        %2375 = vperm.xlu0 %2374, %v2325
        %v2376 = vpop.permute.xlu0 %2375
        %2379 = vset.pattern.permute.xlu0 0
        %2380 = vperm.xlu0 %2379, %v2326
        %v2381 = vpop.permute.xlu0 %2380
        %2384 = vset.pattern.permute.xlu0 0
        %2385 = vperm.xlu0 %2384, %v2327
        %v2386 = vpop.permute.xlu0 %2385
        %2389 = vset.pattern.permute.xlu0 0
        %2390 = vperm.xlu0 %2389, %v2328
        %v2391 = vpop.permute.xlu0 %2390
        %2394 = vset.pattern.permute.xlu0 0
        %2395 = vperm.xlu0 %2394, %v2329
        %v2396 = vpop.permute.xlu0 %2395
        %2399 = vset.pattern.permute.xlu0 0
        %2400 = vperm.xlu0 %2399, %v2330
        %v2401 = vpop.permute.xlu0 %2400
        %2404 = vset.pattern.permute.xlu0 0
        %2405 = vperm.xlu0 %2404, %v2331
        %v2406 = vpop.permute.xlu0 %2405
        %2409 = vset.pattern.permute.xlu0 0
        %2410 = vperm.xlu0 %2409, %v2332
        %v2411 = vpop.permute.xlu0 %2410
        %2413 = vst [vmem:[%s474] sm:$0xff] %v2336
        %2414 = vst [vmem:[%s474 + $0x8] sm:$0xff] %v2341
        %2415 = vst [vmem:[%s474 + $0x10] sm:$0xff] %v2346
        %2416 = vst [vmem:[%s474 + $0x18] sm:$0xff] %v2351
        %2417 = vst [vmem:[%s474 + $0x20] sm:$0xff] %v2356
        %2418 = vst [vmem:[%s474 + $0x28] sm:$0xff] %v2361
        %2419 = vst [vmem:[%s474 + $0x30] sm:$0xff] %v2366
        %2420 = vst [vmem:[%s474 + $0x38] sm:$0xff] %v2371
        %2421 = vst [vmem:[%s474 + $0x40] sm:$0xff] %v2376
        %2422 = vst [vmem:[%s474 + $0x48] sm:$0xff] %v2381
        %2423 = vst [vmem:[%s474 + $0x50] sm:$0xff] %v2386
        %2424 = vst [vmem:[%s474 + $0x58] sm:$0xff] %v2391
        %2425 = vst [vmem:[%s474 + $0x60] sm:$0xff] %v2396
        %2426 = vst [vmem:[%s474 + $0x68] sm:$0xff] %v2401
        %2427 = vst [vmem:[%s474 + $0x70] sm:$0xff] %v2406
        %2428 = vst [vmem:[%s474 + $0x78] sm:$0xff] %v2411
        %s2429 = sand.u32 %s276, 1
        %s2430 = scalar_lea.sflag [#allocation5], %s2429
        %s2431 = sand.u32 %s276, 1
        %s2432 = smul.addr %s2431, 128
        %s2433 = scalar_lea.vmem [#allocation12], %s2432
        // Predicated region
        $region85: #{tpu_custom_call.1} parent=63 // pred_check
          %p2434 = pneg %p286
        $region86: #{tpu_custom_call.1} parent=63 // pred_check_branch
          %2436 = sbr.rel (%p2434) target = $region88
        $region87: #{tpu_custom_call.1} parent=63 // pred_region
          %s2437 = smul.u32 16, %s32
          %2439 = vsyncadd %s2430, 0
          %s2440 = smul.addr %s2437, 8
          %s2441 = scalar_lea.hbm %s11, %s2440
          %s2442 = sshll.u32 %s2433, 4
          %s2443 = int_to_ptr.vmem [resolvable:$true] %s2442
          %s2444 = sshll.u32 %s2441, 4
          %s2445 = int_to_ptr.hbm [resolvable:$true] %s2444
          %2450 = dma.vmem_to_hbm [thread:$0]  %s2443, 2048, %s2445, %s2430, 128, 128, 8
        $region88: #{tpu_custom_call.1} parent=63 // pred_fallthru
          _
      $region64: #{tpu_custom_call.1} parent=5 // pred_fallthru
        _
      %p2451 = scmp.le.s32.totalorder 2, %s27
      // Predicated region
      $region89: #{tpu_custom_call.1} parent=5 // pred_check
        %p2452 = pneg %p2451
      $region90: #{tpu_custom_call.1} parent=5 // pred_check_branch
        %2454 = sbr.rel (%p2452) target = $region92
      $region91: #{tpu_custom_call.1} parent=5 // pred_region
        %s2455 = ssub.s32 %s27, 2
        // Predicated region
        $region93: #{tpu_custom_call.1} parent=91 // pred_check
          %p2456 = pneg %p292
        $region94: #{tpu_custom_call.1} parent=91 // pred_check_branch
          %2458 = sbr.rel (%p2456) target = $region96
        $region95: #{tpu_custom_call.1} parent=91 // pred_region
          %s2459 = sand.u32 %s277, 1
          %s2460 = scalar_lea.sflag [#allocation5], %s2459
          %s2461 = sand.u32 %s277, 1
          %s2462 = smul.addr %s2461, 128
          %s2463 = scalar_lea.vmem [#allocation12], %s2462
          %2465 = dma.done %s2460, 2048
        $region96: #{tpu_custom_call.1} parent=91 // pred_fallthru
          _
      $region92: #{tpu_custom_call.1} parent=5 // pred_fallthru
        _
    $region6: #{tpu_custom_call.1} parent=1 // loop_footer
      %s31 = sadd.s32 1, %s27
    $region7: #{tpu_custom_call.1} parent=1 // loop_footer_branch
      %26 = sbr.rel target = $region3
    $region8: #{tpu_custom_call.1} parent=1 // loop_exit
      _
    %2466 = vsyncpa [#allocation4], 1
    %s2467 = scalar_lea.sflag [#allocation4], 1
    %2468 = vsyncpa %s2467, 1
    %2469 = vsyncpa [#allocation7], 1
    %2470 = vsyncpa [#allocation10], 1
    %2471 = vsyncpa [#allocation5], 1
    %s2472 = scalar_lea.sflag [#allocation5], 1
    %2473 = vsyncpa %s2472, 1

// kernel: tpu_custom_call.1
$region0: #{tpu_custom_call.1}
  #allocation0 [shape = 'u32[]', space=smem, size = 0x4, offset = 0x4, fixed_abs, tag = 'smem constant byte address 0x4 - core index']
  #allocation1 [shape = 'u32[72,128]{1,0:T(1,128)}', space=vmem, size = 0x9000, scoped, tag = 'internal scratch']
  #allocation2 [shape = 'f32[1,1]{1,0:T(1,128)S(1)}', space=vmem, size = 0x200, scoped, tag = 'scoped memory for tpu_custom_call.1']
  %s0 = inlined_call_operand.hbm [shape: bf16[256,128], index: 0, kind: input, shape index: {}]
  %s1 = inlined_call_operand.hbm [shape: bf16[128,256], index: 1, kind: input, shape index: {}]
  %s2 = inlined_call_operand.vmem [shape: f32[1,256], index: 2, kind: input, shape index: {}]
  %s3 = inlined_call_operand.hbm [shape: bf16[256,256], index: 3, kind: input, shape index: {}]
  %s4 = inlined_call_operand.vmem [shape: f32[1,256], index: 4, kind: input, shape index: {}]
  %s5 = inlined_call_operand.hbm [shape: bf16[256,256], index: 5, kind: input, shape index: {}]
  %s6 = inlined_call_operand.vmem [shape: f32[1,256], index: 6, kind: input, shape index: {}]
  %s7 = inlined_call_operand.hbm [shape: bf16[256,256], index: 7, kind: input, shape index: {}]
  %s8 = inlined_call_operand.vmem [shape: f32[1,256], index: 8, kind: input, shape index: {}]
  %s9 = inlined_call_operand.vmem [shape: f32[1,256], index: 9, kind: input, shape index: {}]
  %s10 = inlined_call_operand.<no memory space> [shape: f32[1,1], index: 10, kind: input, shape index: {}]
  %s11 = inlined_call_operand.hbm [shape: f32[256,128], index: 11, kind: output, shape index: {}]
  %s12 = sld [smem:[#allocation0]]
  $region97: #{tpu_custom_call.1} parent=0
    _
  %s14 = ssub.s32 1, %s12
  %s15 = scalar_select 0, %s14, %s12
  %v16 = vstv %s10
  %17 = vst [vmem:[#allocation2] sm:$0x1] %v16
  $region1: #{tpu_custom_call.1} parent=0
    #allocation3 [shape = 'u8[65536]{0}', space=vmem, size = 0x10000, scoped, tag = 'input window, operand 0']
    #allocation4 [shape = 's32[2]{0}', space=sflag, size = 0x8, scoped, tag = 'scoped memory for tpu_custom_call.1']
    #allocation5 [shape = 's32[2]{0}', space=sflag, size = 0x8, scoped, tag = 'scoped memory for tpu_custom_call.1']
    #allocation6 [shape = 'u8[65536]{0}', space=vmem, size = 0x10000, scoped, tag = 'input window, operand 1, single buffered']
    #allocation7 [shape = 's32[1]{0}', space=sflag, size = 0x4, scoped, tag = 'scoped memory for tpu_custom_call.1']
    #allocation8 [shape = 'u8[131072]{0}', space=vmem, size = 0x20000, scoped, tag = 'input window, operand 3, single buffered']
    #allocation9 [shape = 'u8[131072]{0}', space=vmem, size = 0x20000, scoped, tag = 'input window, operand 5, single buffered']
    #allocation10 [shape = 's32[1]{0}', space=sflag, size = 0x4, scoped, tag = 'scoped memory for tpu_custom_call.1']
    #allocation11 [shape = 'u8[131072]{0}', space=vmem, size = 0x20000, scoped, tag = 'input window, operand 7, single buffered']
    #allocation12 [shape = 'u8[131072]{0}', space=vmem, size = 0x20000, scoped, tag = 'output window, operand 0']
    %18 = vsyncpa [#allocation4], 0
    %s19 = scalar_lea.sflag [#allocation4], 1
    %20 = vsyncpa %s19, 0
    %21 = vsyncpa [#allocation7], 0
    %22 = vsyncpa [#allocation10], 0
    %23 = vsyncpa [#allocation5], 0
    %s24 = scalar_lea.sflag [#allocation5], 1
    %25 = vsyncpa %s24, 0
    loop: start=0, step=1, limit=4
    $region2: #{tpu_custom_call.1} parent=1 // loop_pre_header
      _
    $region3: #{tpu_custom_call.1} parent=1 // loop_header
      %s27 = sphi 0, %s31
      %p28 = scmp.ge.s32.totalorder %s27, 4
      %s37 = sphi 0, %s39
      %s40 = sphi 0, %s37
      %s41 = sphi 0, %s40
      %s57 = sphi 0, %s41
      %s61 = sphi 0, %s61
      %s63 = sphi 0, %s61
      %s64 = sphi 0, %s63
      %s78 = sphi 0, %s64
      %s82 = sphi 0, %s82
      %s84 = sphi 0, %s82
      %s85 = sphi 0, %s84
      %s99 = sphi 0, %s85
      %s103 = sphi 0, %s103
      %s105 = sphi 0, %s103
      %s106 = sphi 0, %s105
      %s120 = sphi 0, %s106
      %s124 = sphi 0, %s124
      %s126 = sphi 0, %s124
      %s127 = sphi 0, %s126
      %s141 = sphi 0, %s127
      %s145 = sphi 0, %s145
      %s147 = sphi 0, %s145
      %s148 = sphi 0, %s147
      %s162 = sphi 0, %s148
      %s166 = sphi 0, %s166
      %s168 = sphi 0, %s166
      %s169 = sphi 0, %s168
      %s183 = sphi 0, %s169
      %s187 = sphi 0, %s187
      %s189 = sphi 0, %s187
      %s190 = sphi 0, %s189
      %s204 = sphi 0, %s190
      %s208 = sphi 0, %s208
      %s210 = sphi 0, %s208
      %s211 = sphi 0, %s210
      %s225 = sphi 0, %s211
      %s229 = sphi 0, %s229
      %s231 = sphi 0, %s229
      %s232 = sphi 0, %s231
      %s246 = sphi 0, %s232
      %s250 = sphi 0, %s250
      %s252 = sphi 0, %s250
      %s253 = sphi 0, %s252
      %s267 = sphi 0, %s253
      %s273 = sphi 0, %s275
      %s276 = sphi 0, %s273
      %s277 = sphi 0, %s276
      %s293 = sphi 0, %s277
    $region4: #{tpu_custom_call.1} parent=1 // loop_header_branch
      %30 = sbr.rel (%p28) target = $region8
    $region5: #{tpu_custom_call.1} parent=1 // loop_body
      %s32 = ssub.s32 %s27, 1
      %s33 = ssub.s32 %s27, 2
      %s34 = sadd.s32 %s27, 1
      %s35 = ssub.s32 %s27, %s34
      %p36 = scmp.eq.s32.totalorder %s35, 0
      %s38 = sadd.s32 %s37, 1
      %s39 = scalar_select %p36, %s37, %s38
      %p42 = pneg %p36
      %p43 = scmp.eq.s32.totalorder %s27, 1
      %p44 = por %p42, %p43
      %p45 = scmp.ne.s32.totalorder %s37, %s40
      %p46 = scmp.eq.s32.totalorder %s27, 0
      %p47 = por %p45, %p46
      %p48 = scmp.ne.s32.totalorder %s37, %s40
      %p49 = scmp.eq.s32.totalorder %s32, 1
      %p50 = por %p48, %p49
      %p51 = scmp.ne.s32.totalorder %s40, %s41
      %p52 = scmp.eq.s32.totalorder %s32, 0
      %p53 = por %p51, %p52
      %p54 = scmp.ne.s32.totalorder %s40, %s41
      %p55 = scmp.eq.s32.totalorder %s33, 1
      %p56 = por %p54, %p55
      %p58 = scmp.ne.s32.totalorder %s41, %s57
      %p59 = scmp.eq.s32.totalorder %s33, 0
      %p60 = por %p58, %p59
      %s62 = sadd.s32 %s61, 1
      %p65 = scmp.eq.s32.totalorder %s27, 1
      %p66 = scmp.ne.s32.totalorder %s61, %s63
      %p67 = scmp.eq.s32.totalorder %s27, 0
      %p68 = por %p66, %p67
      %p69 = scmp.ne.s32.totalorder %s61, %s63
      %p70 = scmp.eq.s32.totalorder %s32, 1
      %p71 = por %p69, %p70
      %p72 = scmp.ne.s32.totalorder %s63, %s64
      %p73 = scmp.eq.s32.totalorder %s32, 0
      %p74 = por %p72, %p73
      %p75 = scmp.ne.s32.totalorder %s63, %s64
      %p76 = scmp.eq.s32.totalorder %s33, 1
      %p77 = por %p75, %p76
      %p79 = scmp.ne.s32.totalorder %s64, %s78
      %p80 = scmp.eq.s32.totalorder %s33, 0
      %p81 = por %p79, %p80
      %s83 = sadd.s32 %s82, 1
      %p86 = scmp.eq.s32.totalorder %s27, 1
      %p87 = scmp.ne.s32.totalorder %s82, %s84
      %p88 = scmp.eq.s32.totalorder %s27, 0
      %p89 = por %p87, %p88
      %p90 = scmp.ne.s32.totalorder %s82, %s84
      %p91 = scmp.eq.s32.totalorder %s32, 1
      %p92 = por %p90, %p91
      %p93 = scmp.ne.s32.totalorder %s84, %s85
      %p94 = scmp.eq.s32.totalorder %s32, 0
      %p95 = por %p93, %p94
      %p96 = scmp.ne.s32.totalorder %s84, %s85
      %p97 = scmp.eq.s32.totalorder %s33, 1
      %p98 = por %p96, %p97
      %p100 = scmp.ne.s32.totalorder %s85, %s99
      %p101 = scmp.eq.s32.totalorder %s33, 0
      %p102 = por %p100, %p101
      %s104 = sadd.s32 %s103, 1
      %p107 = scmp.eq.s32.totalorder %s27, 1
      %p108 = scmp.ne.s32.totalorder %s103, %s105
      %p109 = scmp.eq.s32.totalorder %s27, 0
      %p110 = por %p108, %p109
      %p111 = scmp.ne.s32.totalorder %s103, %s105
      %p112 = scmp.eq.s32.totalorder %s32, 1
      %p113 = por %p111, %p112
      %p114 = scmp.ne.s32.totalorder %s105, %s106
      %p115 = scmp.eq.s32.totalorder %s32, 0
      %p116 = por %p114, %p115
      %p117 = scmp.ne.s32.totalorder %s105, %s106
      %p118 = scmp.eq.s32.totalorder %s33, 1
      %p119 = por %p117, %p118
      %p121 = scmp.ne.s32.totalorder %s106, %s120
      %p122 = scmp.eq.s32.totalorder %s33, 0
      %p123 = por %p121, %p122
      %s125 = sadd.s32 %s124, 1
      %p128 = scmp.eq.s32.totalorder %s27, 1
      %p129 = scmp.ne.s32.totalorder %s124, %s126
      %p130 = scmp.eq.s32.totalorder %s27, 0
      %p131 = por %p129, %p130
      %p132 = scmp.ne.s32.totalorder %s124, %s126
      %p133 = scmp.eq.s32.totalorder %s32, 1
      %p134 = por %p132, %p133
      %p135 = scmp.ne.s32.totalorder %s126, %s127
      %p136 = scmp.eq.s32.totalorder %s32, 0
      %p137 = por %p135, %p136
      %p138 = scmp.ne.s32.totalorder %s126, %s127
      %p139 = scmp.eq.s32.totalorder %s33, 1
      %p140 = por %p138, %p139
      %p142 = scmp.ne.s32.totalorder %s127, %s141
      %p143 = scmp.eq.s32.totalorder %s33, 0
      %p144 = por %p142, %p143
      %s146 = sadd.s32 %s145, 1
      %p149 = scmp.eq.s32.totalorder %s27, 1
      %p150 = scmp.ne.s32.totalorder %s145, %s147
      %p151 = scmp.eq.s32.totalorder %s27, 0
      %p152 = por %p150, %p151
      %p153 = scmp.ne.s32.totalorder %s145, %s147
      %p154 = scmp.eq.s32.totalorder %s32, 1
      %p155 = por %p153, %p154
      %p156 = scmp.ne.s32.totalorder %s147, %s148
      %p157 = scmp.eq.s32.totalorder %s32, 0
      %p158 = por %p156, %p157
      %p159 = scmp.ne.s32.totalorder %s147, %s148
      %p160 = scmp.eq.s32.totalorder %s33, 1
      %p161 = por %p159, %p160
      %p163 = scmp.ne.s32.totalorder %s148, %s162
      %p164 = scmp.eq.s32.totalorder %s33, 0
      %p165 = por %p163, %p164
      %s167 = sadd.s32 %s166, 1
      %p170 = scmp.eq.s32.totalorder %s27, 1
      %p171 = scmp.ne.s32.totalorder %s166, %s168
      %p172 = scmp.eq.s32.totalorder %s27, 0
      %p173 = por %p171, %p172
      %p174 = scmp.ne.s32.totalorder %s166, %s168
      %p175 = scmp.eq.s32.totalorder %s32, 1
      %p176 = por %p174, %p175
      %p177 = scmp.ne.s32.totalorder %s168, %s169
      %p178 = scmp.eq.s32.totalorder %s32, 0
      %p179 = por %p177, %p178
      %p180 = scmp.ne.s32.totalorder %s168, %s169
      %p181 = scmp.eq.s32.totalorder %s33, 1
      %p182 = por %p180, %p181
      %p184 = scmp.ne.s32.totalorder %s169, %s183
      %p185 = scmp.eq.s32.totalorder %s33, 0
      %p186 = por %p184, %p185
      %s188 = sadd.s32 %s187, 1
      %p191 = scmp.eq.s32.totalorder %s27, 1
      %p192 = scmp.ne.s32.totalorder %s187, %s189
      %p193 = scmp.eq.s32.totalorder %s27, 0
      %p194 = por %p192, %p193
      %p195 = scmp.ne.s32.totalorder %s187, %s189
      %p196 = scmp.eq.s32.totalorder %s32, 1
      %p197 = por %p195, %p196
      %p198 = scmp.ne.s32.totalorder %s189, %s190
      %p199 = scmp.eq.s32.totalorder %s32, 0
      %p200 = por %p198, %p199
      %p201 = scmp.ne.s32.totalorder %s189, %s190
      %p202 = scmp.eq.s32.totalorder %s33, 1
      %p203 = por %p201, %p202
      %p205 = scmp.ne.s32.totalorder %s190, %s204
      %p206 = scmp.eq.s32.totalorder %s33, 0
      %p207 = por %p205, %p206
      %s209 = sadd.s32 %s208, 1
      %p212 = scmp.eq.s32.totalorder %s27, 1
      %p213 = scmp.ne.s32.totalorder %s208, %s210
      %p214 = scmp.eq.s32.totalorder %s27, 0
      %p215 = por %p213, %p214
      %p216 = scmp.ne.s32.totalorder %s208, %s210
      %p217 = scmp.eq.s32.totalorder %s32, 1
      %p218 = por %p216, %p217
      %p219 = scmp.ne.s32.totalorder %s210, %s211
      %p220 = scmp.eq.s32.totalorder %s32, 0
      %p221 = por %p219, %p220
      %p222 = scmp.ne.s32.totalorder %s210, %s211
      %p223 = scmp.eq.s32.totalorder %s33, 1
      %p224 = por %p222, %p223
      %p226 = scmp.ne.s32.totalorder %s211, %s225
      %p227 = scmp.eq.s32.totalorder %s33, 0
      %p228 = por %p226, %p227
      %s230 = sadd.s32 %s229, 1
      %p233 = scmp.eq.s32.totalorder %s27, 1
      %p234 = scmp.ne.s32.totalorder %s229, %s231
      %p235 = scmp.eq.s32.totalorder %s27, 0
      %p236 = por %p234, %p235
      %p237 = scmp.ne.s32.totalorder %s229, %s231
      %p238 = scmp.eq.s32.totalorder %s32, 1
      %p239 = por %p237, %p238
      %p240 = scmp.ne.s32.totalorder %s231, %s232
      %p241 = scmp.eq.s32.totalorder %s32, 0
      %p242 = por %p240, %p241
      %p243 = scmp.ne.s32.totalorder %s231, %s232
      %p244 = scmp.eq.s32.totalorder %s33, 1
      %p245 = por %p243, %p244
      %p247 = scmp.ne.s32.totalorder %s232, %s246
      %p248 = scmp.eq.s32.totalorder %s33, 0
      %p249 = por %p247, %p248
      %s251 = sadd.s32 %s250, 1
      %p254 = scmp.eq.s32.totalorder %s27, 1
      %p255 = scmp.ne.s32.totalorder %s250, %s252
      %p256 = scmp.eq.s32.totalorder %s27, 0
      %p257 = por %p255, %p256
      %p258 = scmp.ne.s32.totalorder %s250, %s252
      %p259 = scmp.eq.s32.totalorder %s32, 1
      %p260 = por %p258, %p259
      %p261 = scmp.ne.s32.totalorder %s252, %s253
      %p262 = scmp.eq.s32.totalorder %s32, 0
      %p263 = por %p261, %p262
      %p264 = scmp.ne.s32.totalorder %s252, %s253
      %p265 = scmp.eq.s32.totalorder %s33, 1
      %p266 = por %p264, %p265
      %p268 = scmp.ne.s32.totalorder %s253, %s267
      %p269 = scmp.eq.s32.totalorder %s33, 0
      %p270 = por %p268, %p269
      %s271 = ssub.s32 %s27, %s34
      %p272 = scmp.eq.s32.totalorder %s271, 0
      %s274 = sadd.s32 %s273, 1
      %s275 = scalar_select %p272, %s273, %s274
      %p278 = pneg %p272
      %p279 = scmp.eq.s32.totalorder %s27, 1
      %p280 = por %p278, %p279
      %p281 = scmp.ne.s32.totalorder %s273, %s276
      %p282 = scmp.eq.s32.totalorder %s27, 0
      %p283 = por %p281, %p282
      %p284 = scmp.ne.s32.totalorder %s273, %s276
      %p285 = scmp.eq.s32.totalorder %s32, 1
      %p286 = por %p284, %p285
      %p287 = scmp.ne.s32.totalorder %s276, %s277
      %p288 = scmp.eq.s32.totalorder %s32, 0
      %p289 = por %p287, %p288
      %p290 = scmp.ne.s32.totalorder %s276, %s277
      %p291 = scmp.eq.s32.totalorder %s33, 1
      %p292 = por %p290, %p291
      %p294 = scmp.ne.s32.totalorder %s277, %s293
      %p295 = scmp.eq.s32.totalorder %s33, 0
      %p296 = por %p294, %p295
      %p297 = scmp.le.s32.totalorder 1, %s27
      %p298 = scmp.lt.s32.totalorder %s27, 3
      %p299 = pnand %p297, %p298
      %p300 = pneg %p299
      // Predicated region
      $region9: #{tpu_custom_call.1} parent=5 // pred_check
        _
      $region10: #{tpu_custom_call.1} parent=5 // pred_check_branch
        %302 = sbr.rel (%p299) target = $region12
      $region11: #{tpu_custom_call.1} parent=5 // pred_region
        %s303 = ssub.s32 %s27, 1
        // Predicated region
        $region13: #{tpu_custom_call.1} parent=11 // pred_check
          %p304 = pneg %p74
        $region14: #{tpu_custom_call.1} parent=11 // pred_check_branch
          %306 = sbr.rel (%p304) target = $region16
        $region15: #{tpu_custom_call.1} parent=11 // pred_region
          %308 = vsyncadd [#allocation7], 0
          %s309 = sshll.u32 %s1, 4
          %s310 = int_to_ptr.hbm [resolvable:$true] %s309
          %s311 = sshll.u32 [#allocation6], 4
          %s312 = int_to_ptr.vmem [resolvable:$true] %s311
          %317 = dma.hbm_to_vmem [thread:$0]  %s310, 2048, %s312, [#allocation7], 128, 128, 8
        $region16: #{tpu_custom_call.1} parent=11 // pred_fallthru
          _
        // Predicated region
        $region17: #{tpu_custom_call.1} parent=11 // pred_check
          %p318 = pneg %p95
        $region18: #{tpu_custom_call.1} parent=11 // pred_check_branch
          %320 = sbr.rel (%p318) target = $region20
        $region19: #{tpu_custom_call.1} parent=11 // pred_region
          _
        $region20: #{tpu_custom_call.1} parent=11 // pred_fallthru
          _
        // Predicated region
        $region21: #{tpu_custom_call.1} parent=11 // pred_check
          %p321 = pneg %p116
        $region22: #{tpu_custom_call.1} parent=11 // pred_check_branch
          %323 = sbr.rel (%p321) target = $region24
        $region23: #{tpu_custom_call.1} parent=11 // pred_region
          %325 = vsyncadd [#allocation7], 0
          %s326 = sshll.u32 %s3, 4
          %s327 = int_to_ptr.hbm [resolvable:$true] %s326
          %s328 = sshll.u32 [#allocation8], 4
          %s329 = int_to_ptr.vmem [resolvable:$true] %s328
          %334 = dma.hbm_to_vmem [thread:$0]  %s327, 4096, %s329, [#allocation7], 128, 128, 8
        $region24: #{tpu_custom_call.1} parent=11 // pred_fallthru
          _
        // Predicated region
        $region25: #{tpu_custom_call.1} parent=11 // pred_check
          %p335 = pneg %p137
        $region26: #{tpu_custom_call.1} parent=11 // pred_check_branch
          %337 = sbr.rel (%p335) target = $region28
        $region27: #{tpu_custom_call.1} parent=11 // pred_region
          _
        $region28: #{tpu_custom_call.1} parent=11 // pred_fallthru
          _
        // Predicated region
        $region29: #{tpu_custom_call.1} parent=11 // pred_check
          %p338 = pneg %p158
        $region30: #{tpu_custom_call.1} parent=11 // pred_check_branch
          %340 = sbr.rel (%p338) target = $region32
        $region31: #{tpu_custom_call.1} parent=11 // pred_region
          %342 = vsyncadd [#allocation10], 0
          %s343 = sshll.u32 %s5, 4
          %s344 = int_to_ptr.hbm [resolvable:$true] %s343
          %s345 = sshll.u32 [#allocation9], 4
          %s346 = int_to_ptr.vmem [resolvable:$true] %s345
          %351 = dma.hbm_to_vmem [thread:$0]  %s344, 4096, %s346, [#allocation10], 128, 128, 8
        $region32: #{tpu_custom_call.1} parent=11 // pred_fallthru
          _
        // Predicated region
        $region33: #{tpu_custom_call.1} parent=11 // pred_check
          %p352 = pneg %p179
        $region34: #{tpu_custom_call.1} parent=11 // pred_check_branch
          %354 = sbr.rel (%p352) target = $region36
        $region35: #{tpu_custom_call.1} parent=11 // pred_region
          _
        $region36: #{tpu_custom_call.1} parent=11 // pred_fallthru
          _
        // Predicated region
        $region37: #{tpu_custom_call.1} parent=11 // pred_check
          %p355 = pneg %p200
        $region38: #{tpu_custom_call.1} parent=11 // pred_check_branch
          %357 = sbr.rel (%p355) target = $region40
        $region39: #{tpu_custom_call.1} parent=11 // pred_region
          %359 = vsyncadd [#allocation10], 0
          %s360 = sshll.u32 %s7, 4
          %s361 = int_to_ptr.hbm [resolvable:$true] %s360
          %s362 = sshll.u32 [#allocation11], 4
          %s363 = int_to_ptr.vmem [resolvable:$true] %s362
          %368 = dma.hbm_to_vmem [thread:$0]  %s361, 4096, %s363, [#allocation10], 128, 128, 8
        $region40: #{tpu_custom_call.1} parent=11 // pred_fallthru
          _
        // Predicated region
        $region41: #{tpu_custom_call.1} parent=11 // pred_check
          %p369 = pneg %p221
        $region42: #{tpu_custom_call.1} parent=11 // pred_check_branch
          %371 = sbr.rel (%p369) target = $region44
        $region43: #{tpu_custom_call.1} parent=11 // pred_region
          _
        $region44: #{tpu_custom_call.1} parent=11 // pred_fallthru
          _
        // Predicated region
        $region45: #{tpu_custom_call.1} parent=11 // pred_check
          %p372 = pneg %p242
        $region46: #{tpu_custom_call.1} parent=11 // pred_check_branch
          %374 = sbr.rel (%p372) target = $region48
        $region47: #{tpu_custom_call.1} parent=11 // pred_region
          _
        $region48: #{tpu_custom_call.1} parent=11 // pred_fallthru
          _
        // Predicated region
        $region49: #{tpu_custom_call.1} parent=11 // pred_check
          %p375 = pneg %p263
        $region50: #{tpu_custom_call.1} parent=11 // pred_check_branch
          %377 = sbr.rel (%p375) target = $region52
        $region51: #{tpu_custom_call.1} parent=11 // pred_region
          _
        $region52: #{tpu_custom_call.1} parent=11 // pred_fallthru
          _
      $region12: #{tpu_custom_call.1} parent=5 // pred_fallthru
        _
      %p378 = scmp.lt.s32.totalorder %s27, 2
      // Predicated region
      $region53: #{tpu_custom_call.1} parent=5 // pred_check
        %p379 = pneg %p378
      $region54: #{tpu_custom_call.1} parent=5 // pred_check_branch
        %381 = sbr.rel (%p379) target = $region56
      $region55: #{tpu_custom_call.1} parent=5 // pred_region
        // Predicated region
        $region57: #{tpu_custom_call.1} parent=55 // pred_check
          %p382 = pneg %p47
        $region58: #{tpu_custom_call.1} parent=55 // pred_check_branch
          %384 = sbr.rel (%p382) target = $region60
        $region59: #{tpu_custom_call.1} parent=55 // pred_region
          %s385 = sand.u32 %s37, 1
          %s386 = scalar_lea.sflag [#allocation4], %s385
          %s387 = sand.u32 %s37, 1
          %s388 = smul.addr %s387, 64
          %s389 = scalar_lea.vmem [#allocation3], %s388
          %s390 = smul.u32 16, %s27
          %392 = vsyncadd %s386, 0
          %s393 = smul.addr %s390, 4
          %s394 = scalar_lea.hbm %s0, %s393
          %s395 = sshll.u32 %s394, 4
          %s396 = int_to_ptr.hbm [resolvable:$true] %s395
          %s397 = sshll.u32 %s389, 4
          %s398 = int_to_ptr.vmem [resolvable:$true] %s397
          %403 = dma.hbm_to_vmem [thread:$0]  %s396, 1024, %s398, %s386, 64, 64, 4
        $region60: #{tpu_custom_call.1} parent=55 // pred_fallthru
          _
      $region56: #{tpu_custom_call.1} parent=5 // pred_fallthru
        _
      %p404 = scmp.le.s32.totalorder 1, %s27
      %p405 = scmp.lt.s32.totalorder %s27, 3
      %p406 = pnand %p404, %p405
      %p407 = pneg %p406
      // Predicated region
      $region61: #{tpu_custom_call.1} parent=5 // pred_check
        _
      $region62: #{tpu_custom_call.1} parent=5 // pred_check_branch
        %409 = sbr.rel (%p406) target = $region64
      $region63: #{tpu_custom_call.1} parent=5 // pred_region
        %s410 = ssub.s32 %s27, 1
        %s411 = sand.u32 %s40, 1
        %s412 = scalar_lea.sflag [#allocation4], %s411
        %s413 = sand.u32 %s40, 1
        %s414 = smul.addr %s413, 64
        %s415 = scalar_lea.vmem [#allocation3], %s414
        // Predicated region
        $region65: #{tpu_custom_call.1} parent=63 // pred_check
          %p416 = pneg %p53
        $region66: #{tpu_custom_call.1} parent=63 // pred_check_branch
          %418 = sbr.rel (%p416) target = $region68
        $region67: #{tpu_custom_call.1} parent=63 // pred_region
          %420 = dma.done %s412, 1024
        $region68: #{tpu_custom_call.1} parent=63 // pred_fallthru
          _
        // Predicated region
        $region69: #{tpu_custom_call.1} parent=63 // pred_check
          %p421 = pneg %p74
        $region70: #{tpu_custom_call.1} parent=63 // pred_check_branch
          %423 = sbr.rel (%p421) target = $region72
        $region71: #{tpu_custom_call.1} parent=63 // pred_region
          %425 = dma.done [#allocation7], 2048
        $region72: #{tpu_custom_call.1} parent=63 // pred_fallthru
          _
        // Predicated region
        $region73: #{tpu_custom_call.1} parent=63 // pred_check
          %p426 = pneg %p116
        $region74: #{tpu_custom_call.1} parent=63 // pred_check_branch
          %428 = sbr.rel (%p426) target = $region76
        $region75: #{tpu_custom_call.1} parent=63 // pred_region
          %430 = dma.done [#allocation7], 4096
        $region76: #{tpu_custom_call.1} parent=63 // pred_fallthru
          _
        // Predicated region
        $region77: #{tpu_custom_call.1} parent=63 // pred_check
          %p431 = pneg %p158
        $region78: #{tpu_custom_call.1} parent=63 // pred_check_branch
          %433 = sbr.rel (%p431) target = $region80
        $region79: #{tpu_custom_call.1} parent=63 // pred_region
          %435 = dma.done [#allocation10], 4096
        $region80: #{tpu_custom_call.1} parent=63 // pred_fallthru
          _
        // Predicated region
        $region81: #{tpu_custom_call.1} parent=63 // pred_check
          %p436 = pneg %p200
        $region82: #{tpu_custom_call.1} parent=63 // pred_check_branch
          %438 = sbr.rel (%p436) target = $region84
        $region83: #{tpu_custom_call.1} parent=63 // pred_region
          %440 = dma.done [#allocation10], 4096
        $region84: #{tpu_custom_call.1} parent=63 // pred_fallthru
          _
        %s441 = sand.u32 %s40, 1
        %s442 = scalar_lea.sflag [#allocation4], %s441
        %s443 = sand.u32 %s40, 1
        %s444 = smul.addr %s443, 64
        %s445 = scalar_lea.vmem [#allocation3], %s444
        %p446 = pneg %p53
        %p447 = pneg %p50
        %p448 = pneg %p74
        %p449 = pneg %p71
        %p450 = pneg %p95
        %p451 = pneg %p92
        %p452 = pneg %p116
        %p453 = pneg %p113
        %p454 = pneg %p137
        %p455 = pneg %p134
        %p456 = pneg %p158
        %p457 = pneg %p155
        %p458 = pneg %p179
        %p459 = pneg %p176
        %p460 = pneg %p200
        %p461 = pneg %p197
        %p462 = pneg %p221
        %p463 = pneg %p218
        %p464 = pneg %p242
        %p465 = pneg %p239
        %p466 = pneg %p263
        %p467 = pneg %p260
        %p468 = pneg %p289
        %p469 = pneg %p286
        %s470 = sand.u32 %s276, 1
        %s471 = scalar_lea.sflag [#allocation5], %s470
        %s472 = sand.u32 %s276, 1
        %s473 = smul.addr %s472, 128
        %s474 = scalar_lea.vmem [#allocation12], %s473
        %s475 = smul.u32 16, %s32
        %s476 = smul.u32 16, %s32
        %v477 = vld [vmem:[%s415] sm:$0xf]
        %v478 = vld [vmem:[%s415 + $0x4] sm:$0xf]
        %v479 = vld [vmem:[%s415 + $0x8] sm:$0xf]
        %v480 = vld [vmem:[%s415 + $0xc] sm:$0xf]
        %v481 = vld [vmem:[%s415 + $0x10] sm:$0xf]
        %v482 = vld [vmem:[%s415 + $0x14] sm:$0xf]
        %v483 = vld [vmem:[%s415 + $0x18] sm:$0xf]
        %v484 = vld [vmem:[%s415 + $0x1c] sm:$0xf]
        %v485 = vld [vmem:[%s415 + $0x20] sm:$0xf]
        %v486 = vld [vmem:[%s415 + $0x24] sm:$0xf]
        %v487 = vld [vmem:[%s415 + $0x28] sm:$0xf]
        %v488 = vld [vmem:[%s415 + $0x2c] sm:$0xf]
        %v489 = vld [vmem:[%s415 + $0x30] sm:$0xf]
        %v490 = vld [vmem:[%s415 + $0x34] sm:$0xf]
        %v491 = vld [vmem:[%s415 + $0x38] sm:$0xf]
        %v492 = vld [vmem:[%s415 + $0x3c] sm:$0xf]
        %v493 = vld [vmem:[#allocation6] sm:$0xff]
        %v494 = vld [vmem:[#allocation6 + $0x8] sm:$0xff]
        %v495 = vld [vmem:[#allocation6 + $0x10] sm:$0xff]
        %v496 = vld [vmem:[#allocation6 + $0x18] sm:$0xff]
        %v497 = vld [vmem:[#allocation6 + $0x20] sm:$0xff]
        %v498 = vld [vmem:[#allocation6 + $0x28] sm:$0xff]
        %v499 = vld [vmem:[#allocation6 + $0x30] sm:$0xff]
        %v500 = vld [vmem:[#allocation6 + $0x38] sm:$0xff]
        %v501 = vld [vmem:[#allocation6 + $0x40] sm:$0xff]
        %v502 = vld [vmem:[#allocation6 + $0x48] sm:$0xff]
        %v503 = vld [vmem:[#allocation6 + $0x50] sm:$0xff]
        %v504 = vld [vmem:[#allocation6 + $0x58] sm:$0xff]
        %v505 = vld [vmem:[#allocation6 + $0x60] sm:$0xff]
        %v506 = vld [vmem:[#allocation6 + $0x68] sm:$0xff]
        %v507 = vld [vmem:[#allocation6 + $0x70] sm:$0xff]
        %v508 = vld [vmem:[#allocation6 + $0x78] sm:$0xff]
        %v509 = vld [vmem:[%s2] sm:$0x3]
        %v511 = vperm.slane %v509, 0
        %v512 = vperm.slane %v509, 1
        %v531 = vunpack.c.l.b16 %v477
        %v532 = vunpack.c.l.b16 %v478
        %v533 = vunpack.c.l.b16 %v479
        %v534 = vunpack.c.l.b16 %v480
        %v535 = vunpack.c.l.b16 %v481
        %v536 = vunpack.c.l.b16 %v482
        %v537 = vunpack.c.l.b16 %v483
        %v538 = vunpack.c.l.b16 %v484
        %v539 = vunpack.c.l.b16 %v485
        %v540 = vunpack.c.l.b16 %v486
        %v541 = vunpack.c.l.b16 %v487
        %v542 = vunpack.c.l.b16 %v488
        %v543 = vunpack.c.l.b16 %v489
        %v544 = vunpack.c.l.b16 %v490
        %v545 = vunpack.c.l.b16 %v491
        %v546 = vunpack.c.l.b16 %v492
        %v547 = vpack.c.b16 %v532, %v531
        %v548 = vpack.c.b16 %v534, %v533
        %v549 = vpack.c.b16 %v536, %v535
        %v550 = vpack.c.b16 %v538, %v537
        %v551 = vpack.c.b16 %v540, %v539
        %v552 = vpack.c.b16 %v542, %v541
        %v553 = vpack.c.b16 %v544, %v543
        %v554 = vpack.c.b16 %v546, %v545
        %v579 = vunpack.c.l.b16 %v493
        %v580 = vunpack.c.h.b16 %v493
        %v581 = vunpack.c.l.b16 %v494
        %v582 = vunpack.c.h.b16 %v494
        %v583 = vunpack.c.l.b16 %v495
        %v584 = vunpack.c.h.b16 %v495
        %v585 = vunpack.c.l.b16 %v496
        %v586 = vunpack.c.h.b16 %v496
        %v587 = vunpack.c.l.b16 %v497
        %v588 = vunpack.c.h.b16 %v497
        %v589 = vunpack.c.l.b16 %v498
        %v590 = vunpack.c.h.b16 %v498
        %v591 = vunpack.c.l.b16 %v499
        %v592 = vunpack.c.h.b16 %v499
        %v593 = vunpack.c.l.b16 %v500
        %v594 = vunpack.c.h.b16 %v500
        %v595 = vunpack.c.l.b16 %v501
        %v596 = vunpack.c.h.b16 %v501
        %v597 = vunpack.c.l.b16 %v502
        %v598 = vunpack.c.h.b16 %v502
        %v599 = vunpack.c.l.b16 %v503
        %v600 = vunpack.c.h.b16 %v503
        %v601 = vunpack.c.l.b16 %v504
        %v602 = vunpack.c.h.b16 %v504
        %v603 = vunpack.c.l.b16 %v505
        %v604 = vunpack.c.h.b16 %v505
        %v605 = vunpack.c.l.b16 %v506
        %v606 = vunpack.c.h.b16 %v506
        %v607 = vunpack.c.l.b16 %v507
        %v608 = vunpack.c.h.b16 %v507
        %v609 = vunpack.c.l.b16 %v508
        %v610 = vunpack.c.h.b16 %v508
        %v611 = vpack.c.b16 %v581, %v579
        %v612 = vpack.c.b16 %v582, %v580
        %v613 = vpack.c.b16 %v585, %v583
        %v614 = vpack.c.b16 %v586, %v584
        %v615 = vpack.c.b16 %v589, %v587
        %v616 = vpack.c.b16 %v590, %v588
        %v617 = vpack.c.b16 %v593, %v591
        %v618 = vpack.c.b16 %v594, %v592
        %v619 = vpack.c.b16 %v597, %v595
        %v620 = vpack.c.b16 %v598, %v596
        %v621 = vpack.c.b16 %v601, %v599
        %v622 = vpack.c.b16 %v602, %v600
        %v623 = vpack.c.b16 %v605, %v603
        %v624 = vpack.c.b16 %v606, %v604
        %v625 = vpack.c.b16 %v609, %v607
        %v626 = vpack.c.b16 %v610, %v608
        %643 = vmatpush.bf16.msra.mxu0 %v625
        %644 = vmatpush.bf16.msra.mxu0 %v623
        %645 = vmatpush.bf16.msra.mxu0 %v621
        %646 = vmatpush.bf16.msra.mxu0 %v619
        %647 = vmatpush.bf16.msra.mxu0 %v617
        %648 = vmatpush.bf16.msra.mxu0 %v615
        %649 = vmatpush.bf16.msra.mxu0 %v613
        %650 = vmatpush.bf16.msra.mxu0 %v611
        %651 = vmatmul.bf16.gmra.mxu0 %v547
        %v652 = vpop.f32.mrf.mxu0
        %v653 = vadd.f32 %v511, %v652
        %v654 = vpop.f32.mrf.mxu0
        %v655 = vadd.f32 %v511, %v654
        %656 = vmatmul.bf16.gmra.mxu0 %v548
        %v657 = vpop.f32.mrf.mxu0
        %v658 = vadd.f32 %v511, %v657
        %v659 = vpop.f32.mrf.mxu0
        %v660 = vadd.f32 %v511, %v659
        %661 = vmatmul.bf16.gmra.mxu0 %v549
        %v662 = vpop.f32.mrf.mxu0
        %v663 = vadd.f32 %v511, %v662
        %v664 = vpop.f32.mrf.mxu0
        %v665 = vadd.f32 %v511, %v664
        %666 = vmatmul.bf16.gmra.mxu0 %v550
        %v667 = vpop.f32.mrf.mxu0
        %v668 = vadd.f32 %v511, %v667
        %v669 = vpop.f32.mrf.mxu0
        %v670 = vadd.f32 %v511, %v669
        %671 = vmatmul.bf16.gmra.mxu0 %v551
        %v672 = vpop.f32.mrf.mxu0
        %v673 = vadd.f32 %v511, %v672
        %v674 = vpop.f32.mrf.mxu0
        %v675 = vadd.f32 %v511, %v674
        %676 = vmatmul.bf16.gmra.mxu0 %v552
        %v677 = vpop.f32.mrf.mxu0
        %v678 = vadd.f32 %v511, %v677
        %v679 = vpop.f32.mrf.mxu0
        %v680 = vadd.f32 %v511, %v679
        %681 = vmatmul.bf16.gmra.mxu0 %v553
        %v682 = vpop.f32.mrf.mxu0
        %v683 = vadd.f32 %v511, %v682
        %v684 = vpop.f32.mrf.mxu0
        %v685 = vadd.f32 %v511, %v684
        %686 = vmatmul.bf16.gmra.mxu0 %v554
        %v687 = vpop.f32.mrf.mxu0
        %v688 = vadd.f32 %v511, %v687
        %v689 = vpop.f32.mrf.mxu0
        %v690 = vadd.f32 %v511, %v689
        %691 = vdwg.mxu0
        %692 = vmatpush.bf16.msra.mxu0 %v626
        %693 = vmatpush.bf16.msra.mxu0 %v624
        %694 = vmatpush.bf16.msra.mxu0 %v622
        %695 = vmatpush.bf16.msra.mxu0 %v620
        %696 = vmatpush.bf16.msra.mxu0 %v618
        %697 = vmatpush.bf16.msra.mxu0 %v616
        %698 = vmatpush.bf16.msra.mxu0 %v614
        %699 = vmatpush.bf16.msra.mxu0 %v612
        %700 = vmatmul.bf16.gmra.mxu0 %v547
        %v701 = vpop.f32.mrf.mxu0
        %v702 = vadd.f32 %v512, %v701
        %v703 = vpop.f32.mrf.mxu0
        %v704 = vadd.f32 %v512, %v703
        %705 = vmatmul.bf16.gmra.mxu0 %v548
        %v706 = vpop.f32.mrf.mxu0
        %v707 = vadd.f32 %v512, %v706
        %v708 = vpop.f32.mrf.mxu0
        %v709 = vadd.f32 %v512, %v708
        %710 = vmatmul.bf16.gmra.mxu0 %v549
        %v711 = vpop.f32.mrf.mxu0
        %v712 = vadd.f32 %v512, %v711
        %v713 = vpop.f32.mrf.mxu0
        %v714 = vadd.f32 %v512, %v713
        %715 = vmatmul.bf16.gmra.mxu0 %v550
        %v716 = vpop.f32.mrf.mxu0
        %v717 = vadd.f32 %v512, %v716
        %v718 = vpop.f32.mrf.mxu0
        %v719 = vadd.f32 %v512, %v718
        %720 = vmatmul.bf16.gmra.mxu0 %v551
        %v721 = vpop.f32.mrf.mxu0
        %v722 = vadd.f32 %v512, %v721
        %v723 = vpop.f32.mrf.mxu0
        %v724 = vadd.f32 %v512, %v723
        %725 = vmatmul.bf16.gmra.mxu0 %v552
        %v726 = vpop.f32.mrf.mxu0
        %v727 = vadd.f32 %v512, %v726
        %v728 = vpop.f32.mrf.mxu0
        %v729 = vadd.f32 %v512, %v728
        %730 = vmatmul.bf16.gmra.mxu0 %v553
        %v731 = vpop.f32.mrf.mxu0
        %v732 = vadd.f32 %v512, %v731
        %v733 = vpop.f32.mrf.mxu0
        %v734 = vadd.f32 %v512, %v733
        %735 = vmatmul.bf16.gmra.mxu0 %v554
        %v736 = vpop.f32.mrf.mxu0
        %v737 = vadd.f32 %v512, %v736
        %v738 = vpop.f32.mrf.mxu0
        %v739 = vadd.f32 %v512, %v738
        %740 = vdwg.mxu0
        %v741 = vmul.f32 %v653, 0.2
        %v742 = vmul.f32 %v702, 0.2
        %v743 = vmul.f32 %v655, 0.2
        %v744 = vmul.f32 %v704, 0.2
        %v745 = vmul.f32 %v658, 0.2
        %v746 = vmul.f32 %v707, 0.2
        %v747 = vmul.f32 %v660, 0.2
        %v748 = vmul.f32 %v709, 0.2
        %v749 = vmul.f32 %v663, 0.2
        %v750 = vmul.f32 %v712, 0.2
        %v751 = vmul.f32 %v665, 0.2
        %v752 = vmul.f32 %v714, 0.2
        %v753 = vmul.f32 %v668, 0.2
        %v754 = vmul.f32 %v717, 0.2
        %v755 = vmul.f32 %v670, 0.2
        %v756 = vmul.f32 %v719, 0.2
        %v757 = vmul.f32 %v673, 0.2
        %v758 = vmul.f32 %v722, 0.2
        %v759 = vmul.f32 %v675, 0.2
        %v760 = vmul.f32 %v724, 0.2
        %v761 = vmul.f32 %v678, 0.2
        %v762 = vmul.f32 %v727, 0.2
        %v763 = vmul.f32 %v680, 0.2
        %v764 = vmul.f32 %v729, 0.2
        %v765 = vmul.f32 %v683, 0.2
        %v766 = vmul.f32 %v732, 0.2
        %v767 = vmul.f32 %v685, 0.2
        %v768 = vmul.f32 %v734, 0.2
        %v769 = vmul.f32 %v688, 0.2
        %v770 = vmul.f32 %v737, 0.2
        %v771 = vmul.f32 %v690, 0.2
        %v772 = vmul.f32 %v739, 0.2
        %v773 = vmax.f32 %v653, %v741
        %v774 = vmax.f32 %v702, %v742
        %v775 = vmax.f32 %v655, %v743
        %v776 = vmax.f32 %v704, %v744
        %v777 = vmax.f32 %v658, %v745
        %v778 = vmax.f32 %v707, %v746
        %v779 = vmax.f32 %v660, %v747
        %v780 = vmax.f32 %v709, %v748
        %v781 = vmax.f32 %v663, %v749
        %v782 = vmax.f32 %v712, %v750
        %v783 = vmax.f32 %v665, %v751
        %v784 = vmax.f32 %v714, %v752
        %v785 = vmax.f32 %v668, %v753
        %v786 = vmax.f32 %v717, %v754
        %v787 = vmax.f32 %v670, %v755
        %v788 = vmax.f32 %v719, %v756
        %v789 = vmax.f32 %v673, %v757
        %v790 = vmax.f32 %v722, %v758
        %v791 = vmax.f32 %v675, %v759
        %v792 = vmax.f32 %v724, %v760
        %v793 = vmax.f32 %v678, %v761
        %v794 = vmax.f32 %v727, %v762
        %v795 = vmax.f32 %v680, %v763
        %v796 = vmax.f32 %v729, %v764
        %v797 = vmax.f32 %v683, %v765
        %v798 = vmax.f32 %v732, %v766
        %v799 = vmax.f32 %v685, %v767
        %v800 = vmax.f32 %v734, %v768
        %v801 = vmax.f32 %v688, %v769
        %v802 = vmax.f32 %v737, %v770
        %v803 = vmax.f32 %v690, %v771
        %v804 = vmax.f32 %v739, %v772
        %v805 = vpack.c.bf16 %v775, %v773
        %v806 = vpack.c.bf16 %v776, %v774
        %v807 = vpack.c.bf16 %v779, %v777
        %v808 = vpack.c.bf16 %v780, %v778
        %v809 = vpack.c.bf16 %v783, %v781
        %v810 = vpack.c.bf16 %v784, %v782
        %v811 = vpack.c.bf16 %v787, %v785
        %v812 = vpack.c.bf16 %v788, %v786
        %v813 = vpack.c.bf16 %v791, %v789
        %v814 = vpack.c.bf16 %v792, %v790
        %v815 = vpack.c.bf16 %v795, %v793
        %v816 = vpack.c.bf16 %v796, %v794
        %v817 = vpack.c.bf16 %v799, %v797
        %v818 = vpack.c.bf16 %v800, %v798
        %v819 = vpack.c.bf16 %v803, %v801
        %v820 = vpack.c.bf16 %v804, %v802
        %v821 = vld [vmem:[#allocation8] sm:$0xff]
        %v822 = vld [vmem:[#allocation8 + $0x8] sm:$0xff]
        %v823 = vld [vmem:[#allocation8 + $0x10] sm:$0xff]
        %v824 = vld [vmem:[#allocation8 + $0x18] sm:$0xff]
        %v825 = vld [vmem:[#allocation8 + $0x20] sm:$0xff]
        %v826 = vld [vmem:[#allocation8 + $0x28] sm:$0xff]
        %v827 = vld [vmem:[#allocation8 + $0x30] sm:$0xff]
        %v828 = vld [vmem:[#allocation8 + $0x38] sm:$0xff]
        %v829 = vld [vmem:[#allocation8 + $0x40] sm:$0xff]
        %v830 = vld [vmem:[#allocation8 + $0x48] sm:$0xff]
        %v831 = vld [vmem:[#allocation8 + $0x50] sm:$0xff]
        %v832 = vld [vmem:[#allocation8 + $0x58] sm:$0xff]
        %v833 = vld [vmem:[#allocation8 + $0x60] sm:$0xff]
        %v834 = vld [vmem:[#allocation8 + $0x68] sm:$0xff]
        %v835 = vld [vmem:[#allocation8 + $0x70] sm:$0xff]
        %v836 = vld [vmem:[#allocation8 + $0x78] sm:$0xff]
        %v837 = vld [vmem:[#allocation8 + $0x80] sm:$0xff]
        %v838 = vld [vmem:[#allocation8 + $0x88] sm:$0xff]
        %v839 = vld [vmem:[#allocation8 + $0x90] sm:$0xff]
        %v840 = vld [vmem:[#allocation8 + $0x98] sm:$0xff]
        %v841 = vld [vmem:[#allocation8 + $0xa0] sm:$0xff]
        %v842 = vld [vmem:[#allocation8 + $0xa8] sm:$0xff]
        %v843 = vld [vmem:[#allocation8 + $0xb0] sm:$0xff]
        %v844 = vld [vmem:[#allocation8 + $0xb8] sm:$0xff]
        %v845 = vld [vmem:[#allocation8 + $0xc0] sm:$0xff]
        %v846 = vld [vmem:[#allocation8 + $0xc8] sm:$0xff]
        %v847 = vld [vmem:[#allocation8 + $0xd0] sm:$0xff]
        %v848 = vld [vmem:[#allocation8 + $0xd8] sm:$0xff]
        %v849 = vld [vmem:[#allocation8 + $0xe0] sm:$0xff]
        %v850 = vld [vmem:[#allocation8 + $0xe8] sm:$0xff]
        %v851 = vld [vmem:[#allocation8 + $0xf0] sm:$0xff]
        %v852 = vld [vmem:[#allocation8 + $0xf8] sm:$0xff]
        %v853 = vld [vmem:[%s4] sm:$0x3]
        %v855 = vperm.slane %v853, 0
        %v856 = vperm.slane %v853, 1
        %v891 = vunpack.c.l.b16 %v821
        %v892 = vunpack.c.h.b16 %v821
        %v893 = vunpack.c.l.b16 %v822
        %v894 = vunpack.c.h.b16 %v822
        %v895 = vunpack.c.l.b16 %v823
        %v896 = vunpack.c.h.b16 %v823
        %v897 = vunpack.c.l.b16 %v824
        %v898 = vunpack.c.h.b16 %v824
        %v899 = vunpack.c.l.b16 %v825
        %v900 = vunpack.c.h.b16 %v825
        %v901 = vunpack.c.l.b16 %v826
        %v902 = vunpack.c.h.b16 %v826
        %v903 = vunpack.c.l.b16 %v827
        %v904 = vunpack.c.h.b16 %v827
        %v905 = vunpack.c.l.b16 %v828
        %v906 = vunpack.c.h.b16 %v828
        %v907 = vunpack.c.l.b16 %v829
        %v908 = vunpack.c.h.b16 %v829
        %v909 = vunpack.c.l.b16 %v830
        %v910 = vunpack.c.h.b16 %v830
        %v911 = vunpack.c.l.b16 %v831
        %v912 = vunpack.c.h.b16 %v831
        %v913 = vunpack.c.l.b16 %v832
        %v914 = vunpack.c.h.b16 %v832
        %v915 = vunpack.c.l.b16 %v833
        %v916 = vunpack.c.h.b16 %v833
        %v917 = vunpack.c.l.b16 %v834
        %v918 = vunpack.c.h.b16 %v834
        %v919 = vunpack.c.l.b16 %v835
        %v920 = vunpack.c.h.b16 %v835
        %v921 = vunpack.c.l.b16 %v836
        %v922 = vunpack.c.h.b16 %v836
        %v923 = vunpack.c.l.b16 %v837
        %v924 = vunpack.c.h.b16 %v837
        %v925 = vunpack.c.l.b16 %v838
        %v926 = vunpack.c.h.b16 %v838
        %v927 = vunpack.c.l.b16 %v839
        %v928 = vunpack.c.h.b16 %v839
        %v929 = vunpack.c.l.b16 %v840
        %v930 = vunpack.c.h.b16 %v840
        %v931 = vunpack.c.l.b16 %v841
        %v932 = vunpack.c.h.b16 %v841
        %v933 = vunpack.c.l.b16 %v842
        %v934 = vunpack.c.h.b16 %v842
        %v935 = vunpack.c.l.b16 %v843
        %v936 = vunpack.c.h.b16 %v843
        %v937 = vunpack.c.l.b16 %v844
        %v938 = vunpack.c.h.b16 %v844
        %v939 = vunpack.c.l.b16 %v845
        %v940 = vunpack.c.h.b16 %v845
        %v941 = vunpack.c.l.b16 %v846
        %v942 = vunpack.c.h.b16 %v846
        %v943 = vunpack.c.l.b16 %v847
        %v944 = vunpack.c.h.b16 %v847
        %v945 = vunpack.c.l.b16 %v848
        %v946 = vunpack.c.h.b16 %v848
        %v947 = vunpack.c.l.b16 %v849
        %v948 = vunpack.c.h.b16 %v849
        %v949 = vunpack.c.l.b16 %v850
        %v950 = vunpack.c.h.b16 %v850
        %v951 = vunpack.c.l.b16 %v851
        %v952 = vunpack.c.h.b16 %v851
        %v953 = vunpack.c.l.b16 %v852
        %v954 = vunpack.c.h.b16 %v852
        %v955 = vpack.c.b16 %v893, %v891
        %v956 = vpack.c.b16 %v894, %v892
        %v957 = vpack.c.b16 %v897, %v895
        %v958 = vpack.c.b16 %v898, %v896
        %v959 = vpack.c.b16 %v901, %v899
        %v960 = vpack.c.b16 %v902, %v900
        %v961 = vpack.c.b16 %v905, %v903
        %v962 = vpack.c.b16 %v906, %v904
        %v963 = vpack.c.b16 %v909, %v907
        %v964 = vpack.c.b16 %v910, %v908
        %v965 = vpack.c.b16 %v913, %v911
        %v966 = vpack.c.b16 %v914, %v912
        %v967 = vpack.c.b16 %v917, %v915
        %v968 = vpack.c.b16 %v918, %v916
        %v969 = vpack.c.b16 %v921, %v919
        %v970 = vpack.c.b16 %v922, %v920
        %v971 = vpack.c.b16 %v925, %v923
        %v972 = vpack.c.b16 %v926, %v924
        %v973 = vpack.c.b16 %v929, %v927
        %v974 = vpack.c.b16 %v930, %v928
        %v975 = vpack.c.b16 %v933, %v931
        %v976 = vpack.c.b16 %v934, %v932
        %v977 = vpack.c.b16 %v937, %v935
        %v978 = vpack.c.b16 %v938, %v936
        %v979 = vpack.c.b16 %v941, %v939
        %v980 = vpack.c.b16 %v942, %v940
        %v981 = vpack.c.b16 %v945, %v943
        %v982 = vpack.c.b16 %v946, %v944
        %v983 = vpack.c.b16 %v949, %v947
        %v984 = vpack.c.b16 %v950, %v948
        %v985 = vpack.c.b16 %v953, %v951
        %v986 = vpack.c.b16 %v954, %v952
        %1019 = vmatpush.bf16.msra.mxu0 %v969
        %1020 = vmatpush.bf16.msra.mxu0 %v967
        %1021 = vmatpush.bf16.msra.mxu0 %v965
        %1022 = vmatpush.bf16.msra.mxu0 %v963
        %1023 = vmatpush.bf16.msra.mxu0 %v961
        %1024 = vmatpush.bf16.msra.mxu0 %v959
        %1025 = vmatpush.bf16.msra.mxu0 %v957
        %1026 = vmatpush.bf16.msra.mxu0 %v955
        %1027 = vmatmul.bf16.gmra.mxu0 %v805
        %v1028 = vpop.f32.mrf.mxu0
        %v1029 = vadd.f32 %v855, %v1028
        %v1030 = vpop.f32.mrf.mxu0
        %v1031 = vadd.f32 %v855, %v1030
        %1032 = vmatmul.bf16.gmra.mxu0 %v807
        %v1033 = vpop.f32.mrf.mxu0
        %v1034 = vadd.f32 %v855, %v1033
        %v1035 = vpop.f32.mrf.mxu0
        %v1036 = vadd.f32 %v855, %v1035
        %1037 = vmatmul.bf16.gmra.mxu0 %v809
        %v1038 = vpop.f32.mrf.mxu0
        %v1039 = vadd.f32 %v855, %v1038
        %v1040 = vpop.f32.mrf.mxu0
        %v1041 = vadd.f32 %v855, %v1040
        %1042 = vmatmul.bf16.gmra.mxu0 %v811
        %v1043 = vpop.f32.mrf.mxu0
        %v1044 = vadd.f32 %v855, %v1043
        %v1045 = vpop.f32.mrf.mxu0
        %v1046 = vadd.f32 %v855, %v1045
        %1047 = vmatmul.bf16.gmra.mxu0 %v813
        %v1048 = vpop.f32.mrf.mxu0
        %v1049 = vadd.f32 %v855, %v1048
        %v1050 = vpop.f32.mrf.mxu0
        %v1051 = vadd.f32 %v855, %v1050
        %1052 = vmatmul.bf16.gmra.mxu0 %v815
        %v1053 = vpop.f32.mrf.mxu0
        %v1054 = vadd.f32 %v855, %v1053
        %v1055 = vpop.f32.mrf.mxu0
        %v1056 = vadd.f32 %v855, %v1055
        %1057 = vmatmul.bf16.gmra.mxu0 %v817
        %v1058 = vpop.f32.mrf.mxu0
        %v1059 = vadd.f32 %v855, %v1058
        %v1060 = vpop.f32.mrf.mxu0
        %v1061 = vadd.f32 %v855, %v1060
        %1062 = vmatmul.bf16.gmra.mxu0 %v819
        %v1063 = vpop.f32.mrf.mxu0
        %v1064 = vadd.f32 %v855, %v1063
        %v1065 = vpop.f32.mrf.mxu0
        %v1066 = vadd.f32 %v855, %v1065
        %1067 = vdwg.mxu0
        %1068 = vmatpush.bf16.msra.mxu0 %v985
        %1069 = vmatpush.bf16.msra.mxu0 %v983
        %1070 = vmatpush.bf16.msra.mxu0 %v981
        %1071 = vmatpush.bf16.msra.mxu0 %v979
        %1072 = vmatpush.bf16.msra.mxu0 %v977
        %1073 = vmatpush.bf16.msra.mxu0 %v975
        %1074 = vmatpush.bf16.msra.mxu0 %v973
        %1075 = vmatpush.bf16.msra.mxu0 %v971
        %1076 = vmatmul.bf16.gmra.mxu0 %v806
        %v1077 = vpop.f32.mrf.mxu0
        %v1078 = vadd.f32 %v1029, %v1077
        %v1079 = vpop.f32.mrf.mxu0
        %v1080 = vadd.f32 %v1031, %v1079
        %1081 = vmatmul.bf16.gmra.mxu0 %v808
        %v1082 = vpop.f32.mrf.mxu0
        %v1083 = vadd.f32 %v1034, %v1082
        %v1084 = vpop.f32.mrf.mxu0
        %v1085 = vadd.f32 %v1036, %v1084
        %1086 = vmatmul.bf16.gmra.mxu0 %v810
        %v1087 = vpop.f32.mrf.mxu0
        %v1088 = vadd.f32 %v1039, %v1087
        %v1089 = vpop.f32.mrf.mxu0
        %v1090 = vadd.f32 %v1041, %v1089
        %1091 = vmatmul.bf16.gmra.mxu0 %v812
        %v1092 = vpop.f32.mrf.mxu0
        %v1093 = vadd.f32 %v1044, %v1092
        %v1094 = vpop.f32.mrf.mxu0
        %v1095 = vadd.f32 %v1046, %v1094
        %1096 = vmatmul.bf16.gmra.mxu0 %v814
        %v1097 = vpop.f32.mrf.mxu0
        %v1098 = vadd.f32 %v1049, %v1097
        %v1099 = vpop.f32.mrf.mxu0
        %v1100 = vadd.f32 %v1051, %v1099
        %1101 = vmatmul.bf16.gmra.mxu0 %v816
        %v1102 = vpop.f32.mrf.mxu0
        %v1103 = vadd.f32 %v1054, %v1102
        %v1104 = vpop.f32.mrf.mxu0
        %v1105 = vadd.f32 %v1056, %v1104
        %1106 = vmatmul.bf16.gmra.mxu0 %v818
        %v1107 = vpop.f32.mrf.mxu0
        %v1108 = vadd.f32 %v1059, %v1107
        %v1109 = vpop.f32.mrf.mxu0
        %v1110 = vadd.f32 %v1061, %v1109
        %1111 = vmatmul.bf16.gmra.mxu0 %v820
        %v1112 = vpop.f32.mrf.mxu0
        %v1113 = vadd.f32 %v1064, %v1112
        %v1114 = vpop.f32.mrf.mxu0
        %v1115 = vadd.f32 %v1066, %v1114
        %1116 = vdwg.mxu0
        %1117 = vmatpush.bf16.msra.mxu0 %v970
        %1118 = vmatpush.bf16.msra.mxu0 %v968
        %1119 = vmatpush.bf16.msra.mxu0 %v966
        %1120 = vmatpush.bf16.msra.mxu0 %v964
        %1121 = vmatpush.bf16.msra.mxu0 %v962
        %1122 = vmatpush.bf16.msra.mxu0 %v960
        %1123 = vmatpush.bf16.msra.mxu0 %v958
        %1124 = vmatpush.bf16.msra.mxu0 %v956
        %1125 = vmatmul.bf16.gmra.mxu0 %v805
        %v1126 = vpop.f32.mrf.mxu0
        %v1127 = vadd.f32 %v856, %v1126
        %v1128 = vpop.f32.mrf.mxu0
        %v1129 = vadd.f32 %v856, %v1128
        %1130 = vmatmul.bf16.gmra.mxu0 %v807
        %v1131 = vpop.f32.mrf.mxu0
        %v1132 = vadd.f32 %v856, %v1131
        %v1133 = vpop.f32.mrf.mxu0
        %v1134 = vadd.f32 %v856, %v1133
        %1135 = vmatmul.bf16.gmra.mxu0 %v809
        %v1136 = vpop.f32.mrf.mxu0
        %v1137 = vadd.f32 %v856, %v1136
        %v1138 = vpop.f32.mrf.mxu0
        %v1139 = vadd.f32 %v856, %v1138
        %1140 = vmatmul.bf16.gmra.mxu0 %v811
        %v1141 = vpop.f32.mrf.mxu0
        %v1142 = vadd.f32 %v856, %v1141
        %v1143 = vpop.f32.mrf.mxu0
        %v1144 = vadd.f32 %v856, %v1143
        %1145 = vmatmul.bf16.gmra.mxu0 %v813
        %v1146 = vpop.f32.mrf.mxu0
        %v1147 = vadd.f32 %v856, %v1146
        %v1148 = vpop.f32.mrf.mxu0
        %v1149 = vadd.f32 %v856, %v1148
        %1150 = vmatmul.bf16.gmra.mxu0 %v815
        %v1151 = vpop.f32.mrf.mxu0
        %v1152 = vadd.f32 %v856, %v1151
        %v1153 = vpop.f32.mrf.mxu0
        %v1154 = vadd.f32 %v856, %v1153
        %1155 = vmatmul.bf16.gmra.mxu0 %v817
        %v1156 = vpop.f32.mrf.mxu0
        %v1157 = vadd.f32 %v856, %v1156
        %v1158 = vpop.f32.mrf.mxu0
        %v1159 = vadd.f32 %v856, %v1158
        %1160 = vmatmul.bf16.gmra.mxu0 %v819
        %v1161 = vpop.f32.mrf.mxu0
        %v1162 = vadd.f32 %v856, %v1161
        %v1163 = vpop.f32.mrf.mxu0
        %v1164 = vadd.f32 %v856, %v1163
        %1165 = vdwg.mxu0
        %1166 = vmatpush.bf16.msra.mxu0 %v986
        %1167 = vmatpush.bf16.msra.mxu0 %v984
        %1168 = vmatpush.bf16.msra.mxu0 %v982
        %1169 = vmatpush.bf16.msra.mxu0 %v980
        %1170 = vmatpush.bf16.msra.mxu0 %v978
        %1171 = vmatpush.bf16.msra.mxu0 %v976
        %1172 = vmatpush.bf16.msra.mxu0 %v974
        %1173 = vmatpush.bf16.msra.mxu0 %v972
        %1174 = vmatmul.bf16.gmra.mxu0 %v806
        %v1175 = vpop.f32.mrf.mxu0
        %v1176 = vadd.f32 %v1127, %v1175
        %v1177 = vpop.f32.mrf.mxu0
        %v1178 = vadd.f32 %v1129, %v1177
        %1179 = vmatmul.bf16.gmra.mxu0 %v808
        %v1180 = vpop.f32.mrf.mxu0
        %v1181 = vadd.f32 %v1132, %v1180
        %v1182 = vpop.f32.mrf.mxu0
        %v1183 = vadd.f32 %v1134, %v1182
        %1184 = vmatmul.bf16.gmra.mxu0 %v810
        %v1185 = vpop.f32.mrf.mxu0
        %v1186 = vadd.f32 %v1137, %v1185
        %v1187 = vpop.f32.mrf.mxu0
        %v1188 = vadd.f32 %v1139, %v1187
        %1189 = vmatmul.bf16.gmra.mxu0 %v812
        %v1190 = vpop.f32.mrf.mxu0
        %v1191 = vadd.f32 %v1142, %v1190
        %v1192 = vpop.f32.mrf.mxu0
        %v1193 = vadd.f32 %v1144, %v1192
        %1194 = vmatmul.bf16.gmra.mxu0 %v814
        %v1195 = vpop.f32.mrf.mxu0
        %v1196 = vadd.f32 %v1147, %v1195
        %v1197 = vpop.f32.mrf.mxu0
        %v1198 = vadd.f32 %v1149, %v1197
        %1199 = vmatmul.bf16.gmra.mxu0 %v816
        %v1200 = vpop.f32.mrf.mxu0
        %v1201 = vadd.f32 %v1152, %v1200
        %v1202 = vpop.f32.mrf.mxu0
        %v1203 = vadd.f32 %v1154, %v1202
        %1204 = vmatmul.bf16.gmra.mxu0 %v818
        %v1205 = vpop.f32.mrf.mxu0
        %v1206 = vadd.f32 %v1157, %v1205
        %v1207 = vpop.f32.mrf.mxu0
        %v1208 = vadd.f32 %v1159, %v1207
        %1209 = vmatmul.bf16.gmra.mxu0 %v820
        %v1210 = vpop.f32.mrf.mxu0
        %v1211 = vadd.f32 %v1162, %v1210
        %v1212 = vpop.f32.mrf.mxu0
        %v1213 = vadd.f32 %v1164, %v1212
        %1214 = vdwg.mxu0
        %v1215 = vmul.f32 %v1078, 0.2
        %v1216 = vmul.f32 %v1176, 0.2
        %v1217 = vmul.f32 %v1080, 0.2
        %v1218 = vmul.f32 %v1178, 0.2
        %v1219 = vmul.f32 %v1083, 0.2
        %v1220 = vmul.f32 %v1181, 0.2
        %v1221 = vmul.f32 %v1085, 0.2
        %v1222 = vmul.f32 %v1183, 0.2
        %v1223 = vmul.f32 %v1088, 0.2
        %v1224 = vmul.f32 %v1186, 0.2
        %v1225 = vmul.f32 %v1090, 0.2
        %v1226 = vmul.f32 %v1188, 0.2
        %v1227 = vmul.f32 %v1093, 0.2
        %v1228 = vmul.f32 %v1191, 0.2
        %v1229 = vmul.f32 %v1095, 0.2
        %v1230 = vmul.f32 %v1193, 0.2
        %v1231 = vmul.f32 %v1098, 0.2
        %v1232 = vmul.f32 %v1196, 0.2
        %v1233 = vmul.f32 %v1100, 0.2
        %v1234 = vmul.f32 %v1198, 0.2
        %v1235 = vmul.f32 %v1103, 0.2
        %v1236 = vmul.f32 %v1201, 0.2
        %v1237 = vmul.f32 %v1105, 0.2
        %v1238 = vmul.f32 %v1203, 0.2
        %v1239 = vmul.f32 %v1108, 0.2
        %v1240 = vmul.f32 %v1206, 0.2
        %v1241 = vmul.f32 %v1110, 0.2
        %v1242 = vmul.f32 %v1208, 0.2
        %v1243 = vmul.f32 %v1113, 0.2
        %v1244 = vmul.f32 %v1211, 0.2
        %v1245 = vmul.f32 %v1115, 0.2
        %v1246 = vmul.f32 %v1213, 0.2
        %v1247 = vmax.f32 %v1078, %v1215
        %v1248 = vmax.f32 %v1176, %v1216
        %v1249 = vmax.f32 %v1080, %v1217
        %v1250 = vmax.f32 %v1178, %v1218
        %v1251 = vmax.f32 %v1083, %v1219
        %v1252 = vmax.f32 %v1181, %v1220
        %v1253 = vmax.f32 %v1085, %v1221
        %v1254 = vmax.f32 %v1183, %v1222
        %v1255 = vmax.f32 %v1088, %v1223
        %v1256 = vmax.f32 %v1186, %v1224
        %v1257 = vmax.f32 %v1090, %v1225
        %v1258 = vmax.f32 %v1188, %v1226
        %v1259 = vmax.f32 %v1093, %v1227
        %v1260 = vmax.f32 %v1191, %v1228
        %v1261 = vmax.f32 %v1095, %v1229
        %v1262 = vmax.f32 %v1193, %v1230
        %v1263 = vmax.f32 %v1098, %v1231
        %v1264 = vmax.f32 %v1196, %v1232
        %v1265 = vmax.f32 %v1100, %v1233
        %v1266 = vmax.f32 %v1198, %v1234
        %v1267 = vmax.f32 %v1103, %v1235
        %v1268 = vmax.f32 %v1201, %v1236
        %v1269 = vmax.f32 %v1105, %v1237
        %v1270 = vmax.f32 %v1203, %v1238
        %v1271 = vmax.f32 %v1108, %v1239
        %v1272 = vmax.f32 %v1206, %v1240
        %v1273 = vmax.f32 %v1110, %v1241
        %v1274 = vmax.f32 %v1208, %v1242
        %v1275 = vmax.f32 %v1113, %v1243
        %v1276 = vmax.f32 %v1211, %v1244
        %v1277 = vmax.f32 %v1115, %v1245
        %v1278 = vmax.f32 %v1213, %v1246
        %v1279 = vpack.c.bf16 %v1249, %v1247
        %v1280 = vpack.c.bf16 %v1250, %v1248
        %v1281 = vpack.c.bf16 %v1253, %v1251
        %v1282 = vpack.c.bf16 %v1254, %v1252
        %v1283 = vpack.c.bf16 %v1257, %v1255
        %v1284 = vpack.c.bf16 %v1258, %v1256
        %v1285 = vpack.c.bf16 %v1261, %v1259
        %v1286 = vpack.c.bf16 %v1262, %v1260
        %v1287 = vpack.c.bf16 %v1265, %v1263
        %v1288 = vpack.c.bf16 %v1266, %v1264
        %v1289 = vpack.c.bf16 %v1269, %v1267
        %v1290 = vpack.c.bf16 %v1270, %v1268
        %v1291 = vpack.c.bf16 %v1273, %v1271
        %v1292 = vpack.c.bf16 %v1274, %v1272
        %v1293 = vpack.c.bf16 %v1277, %v1275
        %v1294 = vpack.c.bf16 %v1278, %v1276
        %v1295 = vld [vmem:[#allocation9] sm:$0xff]
        %v1296 = vld [vmem:[#allocation9 + $0x8] sm:$0xff]
        %v1297 = vld [vmem:[#allocation9 + $0x10] sm:$0xff]
        %v1298 = vld [vmem:[#allocation9 + $0x18] sm:$0xff]
        %v1299 = vld [vmem:[#allocation9 + $0x20] sm:$0xff]
        %v1300 = vld [vmem:[#allocation9 + $0x28] sm:$0xff]
        %v1301 = vld [vmem:[#allocation9 + $0x30] sm:$0xff]
        %v1302 = vld [vmem:[#allocation9 + $0x38] sm:$0xff]
        %v1303 = vld [vmem:[#allocation9 + $0x40] sm:$0xff]
        %v1304 = vld [vmem:[#allocation9 + $0x48] sm:$0xff]
        %v1305 = vld [vmem:[#allocation9 + $0x50] sm:$0xff]
        %v1306 = vld [vmem:[#allocation9 + $0x58] sm:$0xff]
        %v1307 = vld [vmem:[#allocation9 + $0x60] sm:$0xff]
        %v1308 = vld [vmem:[#allocation9 + $0x68] sm:$0xff]
        %v1309 = vld [vmem:[#allocation9 + $0x70] sm:$0xff]
        %v1310 = vld [vmem:[#allocation9 + $0x78] sm:$0xff]
        %v1311 = vld [vmem:[#allocation9 + $0x80] sm:$0xff]
        %v1312 = vld [vmem:[#allocation9 + $0x88] sm:$0xff]
        %v1313 = vld [vmem:[#allocation9 + $0x90] sm:$0xff]
        %v1314 = vld [vmem:[#allocation9 + $0x98] sm:$0xff]
        %v1315 = vld [vmem:[#allocation9 + $0xa0] sm:$0xff]
        %v1316 = vld [vmem:[#allocation9 + $0xa8] sm:$0xff]
        %v1317 = vld [vmem:[#allocation9 + $0xb0] sm:$0xff]
        %v1318 = vld [vmem:[#allocation9 + $0xb8] sm:$0xff]
        %v1319 = vld [vmem:[#allocation9 + $0xc0] sm:$0xff]
        %v1320 = vld [vmem:[#allocation9 + $0xc8] sm:$0xff]
        %v1321 = vld [vmem:[#allocation9 + $0xd0] sm:$0xff]
        %v1322 = vld [vmem:[#allocation9 + $0xd8] sm:$0xff]
        %v1323 = vld [vmem:[#allocation9 + $0xe0] sm:$0xff]
        %v1324 = vld [vmem:[#allocation9 + $0xe8] sm:$0xff]
        %v1325 = vld [vmem:[#allocation9 + $0xf0] sm:$0xff]
        %v1326 = vld [vmem:[#allocation9 + $0xf8] sm:$0xff]
        %v1327 = vld [vmem:[%s6] sm:$0x3]
        %v1329 = vperm.slane %v1327, 0
        %v1330 = vperm.slane %v1327, 1
        %v1365 = vunpack.c.l.b16 %v1295
        %v1366 = vunpack.c.h.b16 %v1295
        %v1367 = vunpack.c.l.b16 %v1296
        %v1368 = vunpack.c.h.b16 %v1296
        %v1369 = vunpack.c.l.b16 %v1297
        %v1370 = vunpack.c.h.b16 %v1297
        %v1371 = vunpack.c.l.b16 %v1298
        %v1372 = vunpack.c.h.b16 %v1298
        %v1373 = vunpack.c.l.b16 %v1299
        %v1374 = vunpack.c.h.b16 %v1299
        %v1375 = vunpack.c.l.b16 %v1300
        %v1376 = vunpack.c.h.b16 %v1300
        %v1377 = vunpack.c.l.b16 %v1301
        %v1378 = vunpack.c.h.b16 %v1301
        %v1379 = vunpack.c.l.b16 %v1302
        %v1380 = vunpack.c.h.b16 %v1302
        %v1381 = vunpack.c.l.b16 %v1303
        %v1382 = vunpack.c.h.b16 %v1303
        %v1383 = vunpack.c.l.b16 %v1304
        %v1384 = vunpack.c.h.b16 %v1304
        %v1385 = vunpack.c.l.b16 %v1305
        %v1386 = vunpack.c.h.b16 %v1305
        %v1387 = vunpack.c.l.b16 %v1306
        %v1388 = vunpack.c.h.b16 %v1306
        %v1389 = vunpack.c.l.b16 %v1307
        %v1390 = vunpack.c.h.b16 %v1307
        %v1391 = vunpack.c.l.b16 %v1308
        %v1392 = vunpack.c.h.b16 %v1308
        %v1393 = vunpack.c.l.b16 %v1309
        %v1394 = vunpack.c.h.b16 %v1309
        %v1395 = vunpack.c.l.b16 %v1310
        %v1396 = vunpack.c.h.b16 %v1310
        %v1397 = vunpack.c.l.b16 %v1311
        %v1398 = vunpack.c.h.b16 %v1311
        %v1399 = vunpack.c.l.b16 %v1312
        %v1400 = vunpack.c.h.b16 %v1312
        %v1401 = vunpack.c.l.b16 %v1313
        %v1402 = vunpack.c.h.b16 %v1313
        %v1403 = vunpack.c.l.b16 %v1314
        %v1404 = vunpack.c.h.b16 %v1314
        %v1405 = vunpack.c.l.b16 %v1315
        %v1406 = vunpack.c.h.b16 %v1315
        %v1407 = vunpack.c.l.b16 %v1316
        %v1408 = vunpack.c.h.b16 %v1316
        %v1409 = vunpack.c.l.b16 %v1317
        %v1410 = vunpack.c.h.b16 %v1317
        %v1411 = vunpack.c.l.b16 %v1318
        %v1412 = vunpack.c.h.b16 %v1318
        %v1413 = vunpack.c.l.b16 %v1319
        %v1414 = vunpack.c.h.b16 %v1319
        %v1415 = vunpack.c.l.b16 %v1320
        %v1416 = vunpack.c.h.b16 %v1320
        %v1417 = vunpack.c.l.b16 %v1321
        %v1418 = vunpack.c.h.b16 %v1321
        %v1419 = vunpack.c.l.b16 %v1322
        %v1420 = vunpack.c.h.b16 %v1322
        %v1421 = vunpack.c.l.b16 %v1323
        %v1422 = vunpack.c.h.b16 %v1323
        %v1423 = vunpack.c.l.b16 %v1324
        %v1424 = vunpack.c.h.b16 %v1324
        %v1425 = vunpack.c.l.b16 %v1325
        %v1426 = vunpack.c.h.b16 %v1325
        %v1427 = vunpack.c.l.b16 %v1326
        %v1428 = vunpack.c.h.b16 %v1326
        %v1429 = vpack.c.b16 %v1367, %v1365
        %v1430 = vpack.c.b16 %v1368, %v1366
        %v1431 = vpack.c.b16 %v1371, %v1369
        %v1432 = vpack.c.b16 %v1372, %v1370
        %v1433 = vpack.c.b16 %v1375, %v1373
        %v1434 = vpack.c.b16 %v1376, %v1374
        %v1435 = vpack.c.b16 %v1379, %v1377
        %v1436 = vpack.c.b16 %v1380, %v1378
        %v1437 = vpack.c.b16 %v1383, %v1381
        %v1438 = vpack.c.b16 %v1384, %v1382
        %v1439 = vpack.c.b16 %v1387, %v1385
        %v1440 = vpack.c.b16 %v1388, %v1386
        %v1441 = vpack.c.b16 %v1391, %v1389
        %v1442 = vpack.c.b16 %v1392, %v1390
        %v1443 = vpack.c.b16 %v1395, %v1393
        %v1444 = vpack.c.b16 %v1396, %v1394
        %v1445 = vpack.c.b16 %v1399, %v1397
        %v1446 = vpack.c.b16 %v1400, %v1398
        %v1447 = vpack.c.b16 %v1403, %v1401
        %v1448 = vpack.c.b16 %v1404, %v1402
        %v1449 = vpack.c.b16 %v1407, %v1405
        %v1450 = vpack.c.b16 %v1408, %v1406
        %v1451 = vpack.c.b16 %v1411, %v1409
        %v1452 = vpack.c.b16 %v1412, %v1410
        %v1453 = vpack.c.b16 %v1415, %v1413
        %v1454 = vpack.c.b16 %v1416, %v1414
        %v1455 = vpack.c.b16 %v1419, %v1417
        %v1456 = vpack.c.b16 %v1420, %v1418
        %v1457 = vpack.c.b16 %v1423, %v1421
        %v1458 = vpack.c.b16 %v1424, %v1422
        %v1459 = vpack.c.b16 %v1427, %v1425
        %v1460 = vpack.c.b16 %v1428, %v1426
        %1493 = vmatpush.bf16.msra.mxu0 %v1443
        %1494 = vmatpush.bf16.msra.mxu0 %v1441
        %1495 = vmatpush.bf16.msra.mxu0 %v1439
        %1496 = vmatpush.bf16.msra.mxu0 %v1437
        %1497 = vmatpush.bf16.msra.mxu0 %v1435
        %1498 = vmatpush.bf16.msra.mxu0 %v1433
        %1499 = vmatpush.bf16.msra.mxu0 %v1431
        %1500 = vmatpush.bf16.msra.mxu0 %v1429
        %1501 = vmatmul.bf16.gmra.mxu0 %v1279
        %v1502 = vpop.f32.mrf.mxu0
        %v1503 = vadd.f32 %v1329, %v1502
        %v1504 = vpop.f32.mrf.mxu0
        %v1505 = vadd.f32 %v1329, %v1504
        %1506 = vmatmul.bf16.gmra.mxu0 %v1281
        %v1507 = vpop.f32.mrf.mxu0
        %v1508 = vadd.f32 %v1329, %v1507
        %v1509 = vpop.f32.mrf.mxu0
        %v1510 = vadd.f32 %v1329, %v1509
        %1511 = vmatmul.bf16.gmra.mxu0 %v1283
        %v1512 = vpop.f32.mrf.mxu0
        %v1513 = vadd.f32 %v1329, %v1512
        %v1514 = vpop.f32.mrf.mxu0
        %v1515 = vadd.f32 %v1329, %v1514
        %1516 = vmatmul.bf16.gmra.mxu0 %v1285
        %v1517 = vpop.f32.mrf.mxu0
        %v1518 = vadd.f32 %v1329, %v1517
        %v1519 = vpop.f32.mrf.mxu0
        %v1520 = vadd.f32 %v1329, %v1519
        %1521 = vmatmul.bf16.gmra.mxu0 %v1287
        %v1522 = vpop.f32.mrf.mxu0
        %v1523 = vadd.f32 %v1329, %v1522
        %v1524 = vpop.f32.mrf.mxu0
        %v1525 = vadd.f32 %v1329, %v1524
        %1526 = vmatmul.bf16.gmra.mxu0 %v1289
        %v1527 = vpop.f32.mrf.mxu0
        %v1528 = vadd.f32 %v1329, %v1527
        %v1529 = vpop.f32.mrf.mxu0
        %v1530 = vadd.f32 %v1329, %v1529
        %1531 = vmatmul.bf16.gmra.mxu0 %v1291
        %v1532 = vpop.f32.mrf.mxu0
        %v1533 = vadd.f32 %v1329, %v1532
        %v1534 = vpop.f32.mrf.mxu0
        %v1535 = vadd.f32 %v1329, %v1534
        %1536 = vmatmul.bf16.gmra.mxu0 %v1293
        %v1537 = vpop.f32.mrf.mxu0
        %v1538 = vadd.f32 %v1329, %v1537
        %v1539 = vpop.f32.mrf.mxu0
        %v1540 = vadd.f32 %v1329, %v1539
        %1541 = vdwg.mxu0
        %1542 = vmatpush.bf16.msra.mxu0 %v1459
        %1543 = vmatpush.bf16.msra.mxu0 %v1457
        %1544 = vmatpush.bf16.msra.mxu0 %v1455
        %1545 = vmatpush.bf16.msra.mxu0 %v1453
        %1546 = vmatpush.bf16.msra.mxu0 %v1451
        %1547 = vmatpush.bf16.msra.mxu0 %v1449
        %1548 = vmatpush.bf16.msra.mxu0 %v1447
        %1549 = vmatpush.bf16.msra.mxu0 %v1445
        %1550 = vmatmul.bf16.gmra.mxu0 %v1280
        %v1551 = vpop.f32.mrf.mxu0
        %v1552 = vadd.f32 %v1503, %v1551
        %v1553 = vpop.f32.mrf.mxu0
        %v1554 = vadd.f32 %v1505, %v1553
        %1555 = vmatmul.bf16.gmra.mxu0 %v1282
        %v1556 = vpop.f32.mrf.mxu0
        %v1557 = vadd.f32 %v1508, %v1556
        %v1558 = vpop.f32.mrf.mxu0
        %v1559 = vadd.f32 %v1510, %v1558
        %1560 = vmatmul.bf16.gmra.mxu0 %v1284
        %v1561 = vpop.f32.mrf.mxu0
        %v1562 = vadd.f32 %v1513, %v1561
        %v1563 = vpop.f32.mrf.mxu0
        %v1564 = vadd.f32 %v1515, %v1563
        %1565 = vmatmul.bf16.gmra.mxu0 %v1286
        %v1566 = vpop.f32.mrf.mxu0
        %v1567 = vadd.f32 %v1518, %v1566
        %v1568 = vpop.f32.mrf.mxu0
        %v1569 = vadd.f32 %v1520, %v1568
        %1570 = vmatmul.bf16.gmra.mxu0 %v1288
        %v1571 = vpop.f32.mrf.mxu0
        %v1572 = vadd.f32 %v1523, %v1571
        %v1573 = vpop.f32.mrf.mxu0
        %v1574 = vadd.f32 %v1525, %v1573
        %1575 = vmatmul.bf16.gmra.mxu0 %v1290
        %v1576 = vpop.f32.mrf.mxu0
        %v1577 = vadd.f32 %v1528, %v1576
        %v1578 = vpop.f32.mrf.mxu0
        %v1579 = vadd.f32 %v1530, %v1578
        %1580 = vmatmul.bf16.gmra.mxu0 %v1292
        %v1581 = vpop.f32.mrf.mxu0
        %v1582 = vadd.f32 %v1533, %v1581
        %v1583 = vpop.f32.mrf.mxu0
        %v1584 = vadd.f32 %v1535, %v1583
        %1585 = vmatmul.bf16.gmra.mxu0 %v1294
        %v1586 = vpop.f32.mrf.mxu0
        %v1587 = vadd.f32 %v1538, %v1586
        %v1588 = vpop.f32.mrf.mxu0
        %v1589 = vadd.f32 %v1540, %v1588
        %1590 = vdwg.mxu0
        %1591 = vmatpush.bf16.msra.mxu0 %v1444
        %1592 = vmatpush.bf16.msra.mxu0 %v1442
        %1593 = vmatpush.bf16.msra.mxu0 %v1440
        %1594 = vmatpush.bf16.msra.mxu0 %v1438
        %1595 = vmatpush.bf16.msra.mxu0 %v1436
        %1596 = vmatpush.bf16.msra.mxu0 %v1434
        %1597 = vmatpush.bf16.msra.mxu0 %v1432
        %1598 = vmatpush.bf16.msra.mxu0 %v1430
        %1599 = vmatmul.bf16.gmra.mxu0 %v1279
        %v1600 = vpop.f32.mrf.mxu0
        %v1601 = vadd.f32 %v1330, %v1600
        %v1602 = vpop.f32.mrf.mxu0
        %v1603 = vadd.f32 %v1330, %v1602
        %1604 = vmatmul.bf16.gmra.mxu0 %v1281
        %v1605 = vpop.f32.mrf.mxu0
        %v1606 = vadd.f32 %v1330, %v1605
        %v1607 = vpop.f32.mrf.mxu0
        %v1608 = vadd.f32 %v1330, %v1607
        %1609 = vmatmul.bf16.gmra.mxu0 %v1283
        %v1610 = vpop.f32.mrf.mxu0
        %v1611 = vadd.f32 %v1330, %v1610
        %v1612 = vpop.f32.mrf.mxu0
        %v1613 = vadd.f32 %v1330, %v1612
        %1614 = vmatmul.bf16.gmra.mxu0 %v1285
        %v1615 = vpop.f32.mrf.mxu0
        %v1616 = vadd.f32 %v1330, %v1615
        %v1617 = vpop.f32.mrf.mxu0
        %v1618 = vadd.f32 %v1330, %v1617
        %1619 = vmatmul.bf16.gmra.mxu0 %v1287
        %v1620 = vpop.f32.mrf.mxu0
        %v1621 = vadd.f32 %v1330, %v1620
        %v1622 = vpop.f32.mrf.mxu0
        %v1623 = vadd.f32 %v1330, %v1622
        %1624 = vmatmul.bf16.gmra.mxu0 %v1289
        %v1625 = vpop.f32.mrf.mxu0
        %v1626 = vadd.f32 %v1330, %v1625
        %v1627 = vpop.f32.mrf.mxu0
        %v1628 = vadd.f32 %v1330, %v1627
        %1629 = vmatmul.bf16.gmra.mxu0 %v1291
        %v1630 = vpop.f32.mrf.mxu0
        %v1631 = vadd.f32 %v1330, %v1630
        %v1632 = vpop.f32.mrf.mxu0
        %v1633 = vadd.f32 %v1330, %v1632
        %1634 = vmatmul.bf16.gmra.mxu0 %v1293
        %v1635 = vpop.f32.mrf.mxu0
        %v1636 = vadd.f32 %v1330, %v1635
        %v1637 = vpop.f32.mrf.mxu0
        %v1638 = vadd.f32 %v1330, %v1637
        %1639 = vdwg.mxu0
        %1640 = vmatpush.bf16.msra.mxu0 %v1460
        %1641 = vmatpush.bf16.msra.mxu0 %v1458
        %1642 = vmatpush.bf16.msra.mxu0 %v1456
        %1643 = vmatpush.bf16.msra.mxu0 %v1454
        %1644 = vmatpush.bf16.msra.mxu0 %v1452
        %1645 = vmatpush.bf16.msra.mxu0 %v1450
        %1646 = vmatpush.bf16.msra.mxu0 %v1448
        %1647 = vmatpush.bf16.msra.mxu0 %v1446
        %1648 = vmatmul.bf16.gmra.mxu0 %v1280
        %v1649 = vpop.f32.mrf.mxu0
        %v1650 = vadd.f32 %v1601, %v1649
        %v1651 = vpop.f32.mrf.mxu0
        %v1652 = vadd.f32 %v1603, %v1651
        %1653 = vmatmul.bf16.gmra.mxu0 %v1282
        %v1654 = vpop.f32.mrf.mxu0
        %v1655 = vadd.f32 %v1606, %v1654
        %v1656 = vpop.f32.mrf.mxu0
        %v1657 = vadd.f32 %v1608, %v1656
        %1658 = vmatmul.bf16.gmra.mxu0 %v1284
        %v1659 = vpop.f32.mrf.mxu0
        %v1660 = vadd.f32 %v1611, %v1659
        %v1661 = vpop.f32.mrf.mxu0
        %v1662 = vadd.f32 %v1613, %v1661
        %1663 = vmatmul.bf16.gmra.mxu0 %v1286
        %v1664 = vpop.f32.mrf.mxu0
        %v1665 = vadd.f32 %v1616, %v1664
        %v1666 = vpop.f32.mrf.mxu0
        %v1667 = vadd.f32 %v1618, %v1666
        %1668 = vmatmul.bf16.gmra.mxu0 %v1288
        %v1669 = vpop.f32.mrf.mxu0
        %v1670 = vadd.f32 %v1621, %v1669
        %v1671 = vpop.f32.mrf.mxu0
        %v1672 = vadd.f32 %v1623, %v1671
        %1673 = vmatmul.bf16.gmra.mxu0 %v1290
        %v1674 = vpop.f32.mrf.mxu0
        %v1675 = vadd.f32 %v1626, %v1674
        %v1676 = vpop.f32.mrf.mxu0
        %v1677 = vadd.f32 %v1628, %v1676
        %1678 = vmatmul.bf16.gmra.mxu0 %v1292
        %v1679 = vpop.f32.mrf.mxu0
        %v1680 = vadd.f32 %v1631, %v1679
        %v1681 = vpop.f32.mrf.mxu0
        %v1682 = vadd.f32 %v1633, %v1681
        %1683 = vmatmul.bf16.gmra.mxu0 %v1294
        %v1684 = vpop.f32.mrf.mxu0
        %v1685 = vadd.f32 %v1636, %v1684
        %v1686 = vpop.f32.mrf.mxu0
        %v1687 = vadd.f32 %v1638, %v1686
        %1688 = vdwg.mxu0
        %v1689 = vmul.f32 %v1552, 0.2
        %v1690 = vmul.f32 %v1650, 0.2
        %v1691 = vmul.f32 %v1554, 0.2
        %v1692 = vmul.f32 %v1652, 0.2
        %v1693 = vmul.f32 %v1557, 0.2
        %v1694 = vmul.f32 %v1655, 0.2
        %v1695 = vmul.f32 %v1559, 0.2
        %v1696 = vmul.f32 %v1657, 0.2
        %v1697 = vmul.f32 %v1562, 0.2
        %v1698 = vmul.f32 %v1660, 0.2
        %v1699 = vmul.f32 %v1564, 0.2
        %v1700 = vmul.f32 %v1662, 0.2
        %v1701 = vmul.f32 %v1567, 0.2
        %v1702 = vmul.f32 %v1665, 0.2
        %v1703 = vmul.f32 %v1569, 0.2
        %v1704 = vmul.f32 %v1667, 0.2
        %v1705 = vmul.f32 %v1572, 0.2
        %v1706 = vmul.f32 %v1670, 0.2
        %v1707 = vmul.f32 %v1574, 0.2
        %v1708 = vmul.f32 %v1672, 0.2
        %v1709 = vmul.f32 %v1577, 0.2
        %v1710 = vmul.f32 %v1675, 0.2
        %v1711 = vmul.f32 %v1579, 0.2
        %v1712 = vmul.f32 %v1677, 0.2
        %v1713 = vmul.f32 %v1582, 0.2
        %v1714 = vmul.f32 %v1680, 0.2
        %v1715 = vmul.f32 %v1584, 0.2
        %v1716 = vmul.f32 %v1682, 0.2
        %v1717 = vmul.f32 %v1587, 0.2
        %v1718 = vmul.f32 %v1685, 0.2
        %v1719 = vmul.f32 %v1589, 0.2
        %v1720 = vmul.f32 %v1687, 0.2
        %v1721 = vmax.f32 %v1552, %v1689
        %v1722 = vmax.f32 %v1650, %v1690
        %v1723 = vmax.f32 %v1554, %v1691
        %v1724 = vmax.f32 %v1652, %v1692
        %v1725 = vmax.f32 %v1557, %v1693
        %v1726 = vmax.f32 %v1655, %v1694
        %v1727 = vmax.f32 %v1559, %v1695
        %v1728 = vmax.f32 %v1657, %v1696
        %v1729 = vmax.f32 %v1562, %v1697
        %v1730 = vmax.f32 %v1660, %v1698
        %v1731 = vmax.f32 %v1564, %v1699
        %v1732 = vmax.f32 %v1662, %v1700
        %v1733 = vmax.f32 %v1567, %v1701
        %v1734 = vmax.f32 %v1665, %v1702
        %v1735 = vmax.f32 %v1569, %v1703
        %v1736 = vmax.f32 %v1667, %v1704
        %v1737 = vmax.f32 %v1572, %v1705
        %v1738 = vmax.f32 %v1670, %v1706
        %v1739 = vmax.f32 %v1574, %v1707
        %v1740 = vmax.f32 %v1672, %v1708
        %v1741 = vmax.f32 %v1577, %v1709
        %v1742 = vmax.f32 %v1675, %v1710
        %v1743 = vmax.f32 %v1579, %v1711
        %v1744 = vmax.f32 %v1677, %v1712
        %v1745 = vmax.f32 %v1582, %v1713
        %v1746 = vmax.f32 %v1680, %v1714
        %v1747 = vmax.f32 %v1584, %v1715
        %v1748 = vmax.f32 %v1682, %v1716
        %v1749 = vmax.f32 %v1587, %v1717
        %v1750 = vmax.f32 %v1685, %v1718
        %v1751 = vmax.f32 %v1589, %v1719
        %v1752 = vmax.f32 %v1687, %v1720
        %v1753 = vpack.c.bf16 %v1723, %v1721
        %v1754 = vpack.c.bf16 %v1724, %v1722
        %v1755 = vpack.c.bf16 %v1727, %v1725
        %v1756 = vpack.c.bf16 %v1728, %v1726
        %v1757 = vpack.c.bf16 %v1731, %v1729
        %v1758 = vpack.c.bf16 %v1732, %v1730
        %v1759 = vpack.c.bf16 %v1735, %v1733
        %v1760 = vpack.c.bf16 %v1736, %v1734
        %v1761 = vpack.c.bf16 %v1739, %v1737
        %v1762 = vpack.c.bf16 %v1740, %v1738
        %v1763 = vpack.c.bf16 %v1743, %v1741
        %v1764 = vpack.c.bf16 %v1744, %v1742
        %v1765 = vpack.c.bf16 %v1747, %v1745
        %v1766 = vpack.c.bf16 %v1748, %v1746
        %v1767 = vpack.c.bf16 %v1751, %v1749
        %v1768 = vpack.c.bf16 %v1752, %v1750
        %v1769 = vld [vmem:[#allocation11] sm:$0xff]
        %v1770 = vld [vmem:[#allocation11 + $0x8] sm:$0xff]
        %v1771 = vld [vmem:[#allocation11 + $0x10] sm:$0xff]
        %v1772 = vld [vmem:[#allocation11 + $0x18] sm:$0xff]
        %v1773 = vld [vmem:[#allocation11 + $0x20] sm:$0xff]
        %v1774 = vld [vmem:[#allocation11 + $0x28] sm:$0xff]
        %v1775 = vld [vmem:[#allocation11 + $0x30] sm:$0xff]
        %v1776 = vld [vmem:[#allocation11 + $0x38] sm:$0xff]
        %v1777 = vld [vmem:[#allocation11 + $0x40] sm:$0xff]
        %v1778 = vld [vmem:[#allocation11 + $0x48] sm:$0xff]
        %v1779 = vld [vmem:[#allocation11 + $0x50] sm:$0xff]
        %v1780 = vld [vmem:[#allocation11 + $0x58] sm:$0xff]
        %v1781 = vld [vmem:[#allocation11 + $0x60] sm:$0xff]
        %v1782 = vld [vmem:[#allocation11 + $0x68] sm:$0xff]
        %v1783 = vld [vmem:[#allocation11 + $0x70] sm:$0xff]
        %v1784 = vld [vmem:[#allocation11 + $0x78] sm:$0xff]
        %v1785 = vld [vmem:[#allocation11 + $0x80] sm:$0xff]
        %v1786 = vld [vmem:[#allocation11 + $0x88] sm:$0xff]
        %v1787 = vld [vmem:[#allocation11 + $0x90] sm:$0xff]
        %v1788 = vld [vmem:[#allocation11 + $0x98] sm:$0xff]
        %v1789 = vld [vmem:[#allocation11 + $0xa0] sm:$0xff]
        %v1790 = vld [vmem:[#allocation11 + $0xa8] sm:$0xff]
        %v1791 = vld [vmem:[#allocation11 + $0xb0] sm:$0xff]
        %v1792 = vld [vmem:[#allocation11 + $0xb8] sm:$0xff]
        %v1793 = vld [vmem:[#allocation11 + $0xc0] sm:$0xff]
        %v1794 = vld [vmem:[#allocation11 + $0xc8] sm:$0xff]
        %v1795 = vld [vmem:[#allocation11 + $0xd0] sm:$0xff]
        %v1796 = vld [vmem:[#allocation11 + $0xd8] sm:$0xff]
        %v1797 = vld [vmem:[#allocation11 + $0xe0] sm:$0xff]
        %v1798 = vld [vmem:[#allocation11 + $0xe8] sm:$0xff]
        %v1799 = vld [vmem:[#allocation11 + $0xf0] sm:$0xff]
        %v1800 = vld [vmem:[#allocation11 + $0xf8] sm:$0xff]
        %v1801 = vld [vmem:[%s8] sm:$0x3]
        %v1803 = vperm.slane %v1801, 0
        %v1804 = vperm.slane %v1801, 1
        %v1839 = vunpack.c.l.b16 %v1769
        %v1840 = vunpack.c.h.b16 %v1769
        %v1841 = vunpack.c.l.b16 %v1770
        %v1842 = vunpack.c.h.b16 %v1770
        %v1843 = vunpack.c.l.b16 %v1771
        %v1844 = vunpack.c.h.b16 %v1771
        %v1845 = vunpack.c.l.b16 %v1772
        %v1846 = vunpack.c.h.b16 %v1772
        %v1847 = vunpack.c.l.b16 %v1773
        %v1848 = vunpack.c.h.b16 %v1773
        %v1849 = vunpack.c.l.b16 %v1774
        %v1850 = vunpack.c.h.b16 %v1774
        %v1851 = vunpack.c.l.b16 %v1775
        %v1852 = vunpack.c.h.b16 %v1775
        %v1853 = vunpack.c.l.b16 %v1776
        %v1854 = vunpack.c.h.b16 %v1776
        %v1855 = vunpack.c.l.b16 %v1777
        %v1856 = vunpack.c.h.b16 %v1777
        %v1857 = vunpack.c.l.b16 %v1778
        %v1858 = vunpack.c.h.b16 %v1778
        %v1859 = vunpack.c.l.b16 %v1779
        %v1860 = vunpack.c.h.b16 %v1779
        %v1861 = vunpack.c.l.b16 %v1780
        %v1862 = vunpack.c.h.b16 %v1780
        %v1863 = vunpack.c.l.b16 %v1781
        %v1864 = vunpack.c.h.b16 %v1781
        %v1865 = vunpack.c.l.b16 %v1782
        %v1866 = vunpack.c.h.b16 %v1782
        %v1867 = vunpack.c.l.b16 %v1783
        %v1868 = vunpack.c.h.b16 %v1783
        %v1869 = vunpack.c.l.b16 %v1784
        %v1870 = vunpack.c.h.b16 %v1784
        %v1871 = vunpack.c.l.b16 %v1785
        %v1872 = vunpack.c.h.b16 %v1785
        %v1873 = vunpack.c.l.b16 %v1786
        %v1874 = vunpack.c.h.b16 %v1786
        %v1875 = vunpack.c.l.b16 %v1787
        %v1876 = vunpack.c.h.b16 %v1787
        %v1877 = vunpack.c.l.b16 %v1788
        %v1878 = vunpack.c.h.b16 %v1788
        %v1879 = vunpack.c.l.b16 %v1789
        %v1880 = vunpack.c.h.b16 %v1789
        %v1881 = vunpack.c.l.b16 %v1790
        %v1882 = vunpack.c.h.b16 %v1790
        %v1883 = vunpack.c.l.b16 %v1791
        %v1884 = vunpack.c.h.b16 %v1791
        %v1885 = vunpack.c.l.b16 %v1792
        %v1886 = vunpack.c.h.b16 %v1792
        %v1887 = vunpack.c.l.b16 %v1793
        %v1888 = vunpack.c.h.b16 %v1793
        %v1889 = vunpack.c.l.b16 %v1794
        %v1890 = vunpack.c.h.b16 %v1794
        %v1891 = vunpack.c.l.b16 %v1795
        %v1892 = vunpack.c.h.b16 %v1795
        %v1893 = vunpack.c.l.b16 %v1796
        %v1894 = vunpack.c.h.b16 %v1796
        %v1895 = vunpack.c.l.b16 %v1797
        %v1896 = vunpack.c.h.b16 %v1797
        %v1897 = vunpack.c.l.b16 %v1798
        %v1898 = vunpack.c.h.b16 %v1798
        %v1899 = vunpack.c.l.b16 %v1799
        %v1900 = vunpack.c.h.b16 %v1799
        %v1901 = vunpack.c.l.b16 %v1800
        %v1902 = vunpack.c.h.b16 %v1800
        %v1903 = vpack.c.b16 %v1841, %v1839
        %v1904 = vpack.c.b16 %v1842, %v1840
        %v1905 = vpack.c.b16 %v1845, %v1843
        %v1906 = vpack.c.b16 %v1846, %v1844
        %v1907 = vpack.c.b16 %v1849, %v1847
        %v1908 = vpack.c.b16 %v1850, %v1848
        %v1909 = vpack.c.b16 %v1853, %v1851
        %v1910 = vpack.c.b16 %v1854, %v1852
        %v1911 = vpack.c.b16 %v1857, %v1855
        %v1912 = vpack.c.b16 %v1858, %v1856
        %v1913 = vpack.c.b16 %v1861, %v1859
        %v1914 = vpack.c.b16 %v1862, %v1860
        %v1915 = vpack.c.b16 %v1865, %v1863
        %v1916 = vpack.c.b16 %v1866, %v1864
        %v1917 = vpack.c.b16 %v1869, %v1867
        %v1918 = vpack.c.b16 %v1870, %v1868
        %v1919 = vpack.c.b16 %v1873, %v1871
        %v1920 = vpack.c.b16 %v1874, %v1872
        %v1921 = vpack.c.b16 %v1877, %v1875
        %v1922 = vpack.c.b16 %v1878, %v1876
        %v1923 = vpack.c.b16 %v1881, %v1879
        %v1924 = vpack.c.b16 %v1882, %v1880
        %v1925 = vpack.c.b16 %v1885, %v1883
        %v1926 = vpack.c.b16 %v1886, %v1884
        %v1927 = vpack.c.b16 %v1889, %v1887
        %v1928 = vpack.c.b16 %v1890, %v1888
        %v1929 = vpack.c.b16 %v1893, %v1891
        %v1930 = vpack.c.b16 %v1894, %v1892
        %v1931 = vpack.c.b16 %v1897, %v1895
        %v1932 = vpack.c.b16 %v1898, %v1896
        %v1933 = vpack.c.b16 %v1901, %v1899
        %v1934 = vpack.c.b16 %v1902, %v1900
        %1967 = vmatpush.bf16.msra.mxu0 %v1917
        %1968 = vmatpush.bf16.msra.mxu0 %v1915
        %1969 = vmatpush.bf16.msra.mxu0 %v1913
        %1970 = vmatpush.bf16.msra.mxu0 %v1911
        %1971 = vmatpush.bf16.msra.mxu0 %v1909
        %1972 = vmatpush.bf16.msra.mxu0 %v1907
        %1973 = vmatpush.bf16.msra.mxu0 %v1905
        %1974 = vmatpush.bf16.msra.mxu0 %v1903
        %1975 = vmatmul.bf16.gmra.mxu0 %v1753
        %v1976 = vpop.f32.mrf.mxu0
        %v1977 = vadd.f32 %v1803, %v1976
        %v1978 = vpop.f32.mrf.mxu0
        %v1979 = vadd.f32 %v1803, %v1978
        %1980 = vmatmul.bf16.gmra.mxu0 %v1755
        %v1981 = vpop.f32.mrf.mxu0
        %v1982 = vadd.f32 %v1803, %v1981
        %v1983 = vpop.f32.mrf.mxu0
        %v1984 = vadd.f32 %v1803, %v1983
        %1985 = vmatmul.bf16.gmra.mxu0 %v1757
        %v1986 = vpop.f32.mrf.mxu0
        %v1987 = vadd.f32 %v1803, %v1986
        %v1988 = vpop.f32.mrf.mxu0
        %v1989 = vadd.f32 %v1803, %v1988
        %1990 = vmatmul.bf16.gmra.mxu0 %v1759
        %v1991 = vpop.f32.mrf.mxu0
        %v1992 = vadd.f32 %v1803, %v1991
        %v1993 = vpop.f32.mrf.mxu0
        %v1994 = vadd.f32 %v1803, %v1993
        %1995 = vmatmul.bf16.gmra.mxu0 %v1761
        %v1996 = vpop.f32.mrf.mxu0
        %v1997 = vadd.f32 %v1803, %v1996
        %v1998 = vpop.f32.mrf.mxu0
        %v1999 = vadd.f32 %v1803, %v1998
        %2000 = vmatmul.bf16.gmra.mxu0 %v1763
        %v2001 = vpop.f32.mrf.mxu0
        %v2002 = vadd.f32 %v1803, %v2001
        %v2003 = vpop.f32.mrf.mxu0
        %v2004 = vadd.f32 %v1803, %v2003
        %2005 = vmatmul.bf16.gmra.mxu0 %v1765
        %v2006 = vpop.f32.mrf.mxu0
        %v2007 = vadd.f32 %v1803, %v2006
        %v2008 = vpop.f32.mrf.mxu0
        %v2009 = vadd.f32 %v1803, %v2008
        %2010 = vmatmul.bf16.gmra.mxu0 %v1767
        %v2011 = vpop.f32.mrf.mxu0
        %v2012 = vadd.f32 %v1803, %v2011
        %v2013 = vpop.f32.mrf.mxu0
        %v2014 = vadd.f32 %v1803, %v2013
        %2015 = vdwg.mxu0
        %2016 = vmatpush.bf16.msra.mxu0 %v1933
        %2017 = vmatpush.bf16.msra.mxu0 %v1931
        %2018 = vmatpush.bf16.msra.mxu0 %v1929
        %2019 = vmatpush.bf16.msra.mxu0 %v1927
        %2020 = vmatpush.bf16.msra.mxu0 %v1925
        %2021 = vmatpush.bf16.msra.mxu0 %v1923
        %2022 = vmatpush.bf16.msra.mxu0 %v1921
        %2023 = vmatpush.bf16.msra.mxu0 %v1919
        %2024 = vmatmul.bf16.gmra.mxu0 %v1754
        %v2025 = vpop.f32.mrf.mxu0
        %v2026 = vadd.f32 %v1977, %v2025
        %v2027 = vpop.f32.mrf.mxu0
        %v2028 = vadd.f32 %v1979, %v2027
        %2029 = vmatmul.bf16.gmra.mxu0 %v1756
        %v2030 = vpop.f32.mrf.mxu0
        %v2031 = vadd.f32 %v1982, %v2030
        %v2032 = vpop.f32.mrf.mxu0
        %v2033 = vadd.f32 %v1984, %v2032
        %2034 = vmatmul.bf16.gmra.mxu0 %v1758
        %v2035 = vpop.f32.mrf.mxu0
        %v2036 = vadd.f32 %v1987, %v2035
        %v2037 = vpop.f32.mrf.mxu0
        %v2038 = vadd.f32 %v1989, %v2037
        %2039 = vmatmul.bf16.gmra.mxu0 %v1760
        %v2040 = vpop.f32.mrf.mxu0
        %v2041 = vadd.f32 %v1992, %v2040
        %v2042 = vpop.f32.mrf.mxu0
        %v2043 = vadd.f32 %v1994, %v2042
        %2044 = vmatmul.bf16.gmra.mxu0 %v1762
        %v2045 = vpop.f32.mrf.mxu0
        %v2046 = vadd.f32 %v1997, %v2045
        %v2047 = vpop.f32.mrf.mxu0
        %v2048 = vadd.f32 %v1999, %v2047
        %2049 = vmatmul.bf16.gmra.mxu0 %v1764
        %v2050 = vpop.f32.mrf.mxu0
        %v2051 = vadd.f32 %v2002, %v2050
        %v2052 = vpop.f32.mrf.mxu0
        %v2053 = vadd.f32 %v2004, %v2052
        %2054 = vmatmul.bf16.gmra.mxu0 %v1766
        %v2055 = vpop.f32.mrf.mxu0
        %v2056 = vadd.f32 %v2007, %v2055
        %v2057 = vpop.f32.mrf.mxu0
        %v2058 = vadd.f32 %v2009, %v2057
        %2059 = vmatmul.bf16.gmra.mxu0 %v1768
        %v2060 = vpop.f32.mrf.mxu0
        %v2061 = vadd.f32 %v2012, %v2060
        %v2062 = vpop.f32.mrf.mxu0
        %v2063 = vadd.f32 %v2014, %v2062
        %2064 = vdwg.mxu0
        %2065 = vmatpush.bf16.msra.mxu0 %v1918
        %2066 = vmatpush.bf16.msra.mxu0 %v1916
        %2067 = vmatpush.bf16.msra.mxu0 %v1914
        %2068 = vmatpush.bf16.msra.mxu0 %v1912
        %2069 = vmatpush.bf16.msra.mxu0 %v1910
        %2070 = vmatpush.bf16.msra.mxu0 %v1908
        %2071 = vmatpush.bf16.msra.mxu0 %v1906
        %2072 = vmatpush.bf16.msra.mxu0 %v1904
        %2073 = vmatmul.bf16.gmra.mxu0 %v1753
        %v2074 = vpop.f32.mrf.mxu0
        %v2075 = vadd.f32 %v1804, %v2074
        %v2076 = vpop.f32.mrf.mxu0
        %v2077 = vadd.f32 %v1804, %v2076
        %2078 = vmatmul.bf16.gmra.mxu0 %v1755
        %v2079 = vpop.f32.mrf.mxu0
        %v2080 = vadd.f32 %v1804, %v2079
        %v2081 = vpop.f32.mrf.mxu0
        %v2082 = vadd.f32 %v1804, %v2081
        %2083 = vmatmul.bf16.gmra.mxu0 %v1757
        %v2084 = vpop.f32.mrf.mxu0
        %v2085 = vadd.f32 %v1804, %v2084
        %v2086 = vpop.f32.mrf.mxu0
        %v2087 = vadd.f32 %v1804, %v2086
        %2088 = vmatmul.bf16.gmra.mxu0 %v1759
        %v2089 = vpop.f32.mrf.mxu0
        %v2090 = vadd.f32 %v1804, %v2089
        %v2091 = vpop.f32.mrf.mxu0
        %v2092 = vadd.f32 %v1804, %v2091
        %2093 = vmatmul.bf16.gmra.mxu0 %v1761
        %v2094 = vpop.f32.mrf.mxu0
        %v2095 = vadd.f32 %v1804, %v2094
        %v2096 = vpop.f32.mrf.mxu0
        %v2097 = vadd.f32 %v1804, %v2096
        %2098 = vmatmul.bf16.gmra.mxu0 %v1763
        %v2099 = vpop.f32.mrf.mxu0
        %v2100 = vadd.f32 %v1804, %v2099
        %v2101 = vpop.f32.mrf.mxu0
        %v2102 = vadd.f32 %v1804, %v2101
        %2103 = vmatmul.bf16.gmra.mxu0 %v1765
        %v2104 = vpop.f32.mrf.mxu0
        %v2105 = vadd.f32 %v1804, %v2104
        %v2106 = vpop.f32.mrf.mxu0
        %v2107 = vadd.f32 %v1804, %v2106
        %2108 = vmatmul.bf16.gmra.mxu0 %v1767
        %v2109 = vpop.f32.mrf.mxu0
        %v2110 = vadd.f32 %v1804, %v2109
        %v2111 = vpop.f32.mrf.mxu0
        %v2112 = vadd.f32 %v1804, %v2111
        %2113 = vdwg.mxu0
        %2114 = vmatpush.bf16.msra.mxu0 %v1934
        %2115 = vmatpush.bf16.msra.mxu0 %v1932
        %2116 = vmatpush.bf16.msra.mxu0 %v1930
        %2117 = vmatpush.bf16.msra.mxu0 %v1928
        %2118 = vmatpush.bf16.msra.mxu0 %v1926
        %2119 = vmatpush.bf16.msra.mxu0 %v1924
        %2120 = vmatpush.bf16.msra.mxu0 %v1922
        %2121 = vmatpush.bf16.msra.mxu0 %v1920
        %2122 = vmatmul.bf16.gmra.mxu0 %v1754
        %v2123 = vpop.f32.mrf.mxu0
        %v2124 = vadd.f32 %v2075, %v2123
        %v2125 = vpop.f32.mrf.mxu0
        %v2126 = vadd.f32 %v2077, %v2125
        %2127 = vmatmul.bf16.gmra.mxu0 %v1756
        %v2128 = vpop.f32.mrf.mxu0
        %v2129 = vadd.f32 %v2080, %v2128
        %v2130 = vpop.f32.mrf.mxu0
        %v2131 = vadd.f32 %v2082, %v2130
        %2132 = vmatmul.bf16.gmra.mxu0 %v1758
        %v2133 = vpop.f32.mrf.mxu0
        %v2134 = vadd.f32 %v2085, %v2133
        %v2135 = vpop.f32.mrf.mxu0
        %v2136 = vadd.f32 %v2087, %v2135
        %2137 = vmatmul.bf16.gmra.mxu0 %v1760
        %v2138 = vpop.f32.mrf.mxu0
        %v2139 = vadd.f32 %v2090, %v2138
        %v2140 = vpop.f32.mrf.mxu0
        %v2141 = vadd.f32 %v2092, %v2140
        %2142 = vmatmul.bf16.gmra.mxu0 %v1762
        %v2143 = vpop.f32.mrf.mxu0
        %v2144 = vadd.f32 %v2095, %v2143
        %v2145 = vpop.f32.mrf.mxu0
        %v2146 = vadd.f32 %v2097, %v2145
        %2147 = vmatmul.bf16.gmra.mxu0 %v1764
        %v2148 = vpop.f32.mrf.mxu0
        %v2149 = vadd.f32 %v2100, %v2148
        %v2150 = vpop.f32.mrf.mxu0
        %v2151 = vadd.f32 %v2102, %v2150
        %2152 = vmatmul.bf16.gmra.mxu0 %v1766
        %v2153 = vpop.f32.mrf.mxu0
        %v2154 = vadd.f32 %v2105, %v2153
        %v2155 = vpop.f32.mrf.mxu0
        %v2156 = vadd.f32 %v2107, %v2155
        %2157 = vmatmul.bf16.gmra.mxu0 %v1768
        %v2158 = vpop.f32.mrf.mxu0
        %v2159 = vadd.f32 %v2110, %v2158
        %v2160 = vpop.f32.mrf.mxu0
        %v2161 = vadd.f32 %v2112, %v2160
        %2162 = vdwg.mxu0
        %v2163 = vmul.f32 %v2026, 0.2
        %v2164 = vmul.f32 %v2124, 0.2
        %v2165 = vmul.f32 %v2028, 0.2
        %v2166 = vmul.f32 %v2126, 0.2
        %v2167 = vmul.f32 %v2031, 0.2
        %v2168 = vmul.f32 %v2129, 0.2
        %v2169 = vmul.f32 %v2033, 0.2
        %v2170 = vmul.f32 %v2131, 0.2
        %v2171 = vmul.f32 %v2036, 0.2
        %v2172 = vmul.f32 %v2134, 0.2
        %v2173 = vmul.f32 %v2038, 0.2
        %v2174 = vmul.f32 %v2136, 0.2
        %v2175 = vmul.f32 %v2041, 0.2
        %v2176 = vmul.f32 %v2139, 0.2
        %v2177 = vmul.f32 %v2043, 0.2
        %v2178 = vmul.f32 %v2141, 0.2
        %v2179 = vmul.f32 %v2046, 0.2
        %v2180 = vmul.f32 %v2144, 0.2
        %v2181 = vmul.f32 %v2048, 0.2
        %v2182 = vmul.f32 %v2146, 0.2
        %v2183 = vmul.f32 %v2051, 0.2
        %v2184 = vmul.f32 %v2149, 0.2
        %v2185 = vmul.f32 %v2053, 0.2
        %v2186 = vmul.f32 %v2151, 0.2
        %v2187 = vmul.f32 %v2056, 0.2
        %v2188 = vmul.f32 %v2154, 0.2
        %v2189 = vmul.f32 %v2058, 0.2
        %v2190 = vmul.f32 %v2156, 0.2
        %v2191 = vmul.f32 %v2061, 0.2
        %v2192 = vmul.f32 %v2159, 0.2
        %v2193 = vmul.f32 %v2063, 0.2
        %v2194 = vmul.f32 %v2161, 0.2
        %v2195 = vmax.f32 %v2026, %v2163
        %v2196 = vmax.f32 %v2124, %v2164
        %v2197 = vmax.f32 %v2028, %v2165
        %v2198 = vmax.f32 %v2126, %v2166
        %v2199 = vmax.f32 %v2031, %v2167
        %v2200 = vmax.f32 %v2129, %v2168
        %v2201 = vmax.f32 %v2033, %v2169
        %v2202 = vmax.f32 %v2131, %v2170
        %v2203 = vmax.f32 %v2036, %v2171
        %v2204 = vmax.f32 %v2134, %v2172
        %v2205 = vmax.f32 %v2038, %v2173
        %v2206 = vmax.f32 %v2136, %v2174
        %v2207 = vmax.f32 %v2041, %v2175
        %v2208 = vmax.f32 %v2139, %v2176
        %v2209 = vmax.f32 %v2043, %v2177
        %v2210 = vmax.f32 %v2141, %v2178
        %v2211 = vmax.f32 %v2046, %v2179
        %v2212 = vmax.f32 %v2144, %v2180
        %v2213 = vmax.f32 %v2048, %v2181
        %v2214 = vmax.f32 %v2146, %v2182
        %v2215 = vmax.f32 %v2051, %v2183
        %v2216 = vmax.f32 %v2149, %v2184
        %v2217 = vmax.f32 %v2053, %v2185
        %v2218 = vmax.f32 %v2151, %v2186
        %v2219 = vmax.f32 %v2056, %v2187
        %v2220 = vmax.f32 %v2154, %v2188
        %v2221 = vmax.f32 %v2058, %v2189
        %v2222 = vmax.f32 %v2156, %v2190
        %v2223 = vmax.f32 %v2061, %v2191
        %v2224 = vmax.f32 %v2159, %v2192
        %v2225 = vmax.f32 %v2063, %v2193
        %v2226 = vmax.f32 %v2161, %v2194
        %v2227 = vld [vmem:[%s9] sm:$0x3]
        %v2229 = vperm.slane %v2227, 0
        %v2230 = vperm.slane %v2227, 1
        %v2233 = vmul.f32 %v2195, %v2229
        %v2234 = vmul.f32 %v2196, %v2230
        %v2235 = vmul.f32 %v2197, %v2229
        %v2236 = vmul.f32 %v2198, %v2230
        %v2237 = vmul.f32 %v2199, %v2229
        %v2238 = vmul.f32 %v2200, %v2230
        %v2239 = vmul.f32 %v2201, %v2229
        %v2240 = vmul.f32 %v2202, %v2230
        %v2241 = vmul.f32 %v2203, %v2229
        %v2242 = vmul.f32 %v2204, %v2230
        %v2243 = vmul.f32 %v2205, %v2229
        %v2244 = vmul.f32 %v2206, %v2230
        %v2245 = vmul.f32 %v2207, %v2229
        %v2246 = vmul.f32 %v2208, %v2230
        %v2247 = vmul.f32 %v2209, %v2229
        %v2248 = vmul.f32 %v2210, %v2230
        %v2249 = vmul.f32 %v2211, %v2229
        %v2250 = vmul.f32 %v2212, %v2230
        %v2251 = vmul.f32 %v2213, %v2229
        %v2252 = vmul.f32 %v2214, %v2230
        %v2253 = vmul.f32 %v2215, %v2229
        %v2254 = vmul.f32 %v2216, %v2230
        %v2255 = vmul.f32 %v2217, %v2229
        %v2256 = vmul.f32 %v2218, %v2230
        %v2257 = vmul.f32 %v2219, %v2229
        %v2258 = vmul.f32 %v2220, %v2230
        %v2259 = vmul.f32 %v2221, %v2229
        %v2260 = vmul.f32 %v2222, %v2230
        %v2261 = vmul.f32 %v2223, %v2229
        %v2262 = vmul.f32 %v2224, %v2230
        %v2263 = vmul.f32 %v2225, %v2229
        %v2264 = vmul.f32 %v2226, %v2230
        %v2265 = vadd.f32 %v2233, %v2234
        %2266 = vadd.xlane.f32.xlu0 %v2265
        %v2267 = vpop.xlane.xlu0 %2266
        %v2268 = vadd.f32 %v2235, %v2236
        %2269 = vadd.xlane.f32.xlu0 %v2268
        %v2270 = vpop.xlane.xlu0 %2269
        %v2271 = vadd.f32 %v2237, %v2238
        %2272 = vadd.xlane.f32.xlu0 %v2271
        %v2273 = vpop.xlane.xlu0 %2272
        %v2274 = vadd.f32 %v2239, %v2240
        %2275 = vadd.xlane.f32.xlu0 %v2274
        %v2276 = vpop.xlane.xlu0 %2275
        %v2277 = vadd.f32 %v2241, %v2242
        %2278 = vadd.xlane.f32.xlu0 %v2277
        %v2279 = vpop.xlane.xlu0 %2278
        %v2280 = vadd.f32 %v2243, %v2244
        %2281 = vadd.xlane.f32.xlu0 %v2280
        %v2282 = vpop.xlane.xlu0 %2281
        %v2283 = vadd.f32 %v2245, %v2246
        %2284 = vadd.xlane.f32.xlu0 %v2283
        %v2285 = vpop.xlane.xlu0 %2284
        %v2286 = vadd.f32 %v2247, %v2248
        %2287 = vadd.xlane.f32.xlu0 %v2286
        %v2288 = vpop.xlane.xlu0 %2287
        %v2289 = vadd.f32 %v2249, %v2250
        %2290 = vadd.xlane.f32.xlu0 %v2289
        %v2291 = vpop.xlane.xlu0 %2290
        %v2292 = vadd.f32 %v2251, %v2252
        %2293 = vadd.xlane.f32.xlu0 %v2292
        %v2294 = vpop.xlane.xlu0 %2293
        %v2295 = vadd.f32 %v2253, %v2254
        %2296 = vadd.xlane.f32.xlu0 %v2295
        %v2297 = vpop.xlane.xlu0 %2296
        %v2298 = vadd.f32 %v2255, %v2256
        %2299 = vadd.xlane.f32.xlu0 %v2298
        %v2300 = vpop.xlane.xlu0 %2299
        %v2301 = vadd.f32 %v2257, %v2258
        %2302 = vadd.xlane.f32.xlu0 %v2301
        %v2303 = vpop.xlane.xlu0 %2302
        %v2304 = vadd.f32 %v2259, %v2260
        %2305 = vadd.xlane.f32.xlu0 %v2304
        %v2306 = vpop.xlane.xlu0 %2305
        %v2307 = vadd.f32 %v2261, %v2262
        %2308 = vadd.xlane.f32.xlu0 %v2307
        %v2309 = vpop.xlane.xlu0 %2308
        %v2310 = vadd.f32 %v2263, %v2264
        %2311 = vadd.xlane.f32.xlu0 %v2310
        %v2312 = vpop.xlane.xlu0 %2311
        %v2313 = vld [vmem:[#allocation2] sm:$0x1]
        %v2315 = vperm.slane %v2313, 0
        %v2317 = vadd.f32 %v2267, %v2315
        %v2318 = vadd.f32 %v2270, %v2315
        %v2319 = vadd.f32 %v2273, %v2315
        %v2320 = vadd.f32 %v2276, %v2315
        %v2321 = vadd.f32 %v2279, %v2315
        %v2322 = vadd.f32 %v2282, %v2315
        %v2323 = vadd.f32 %v2285, %v2315
        %v2324 = vadd.f32 %v2288, %v2315
        %v2325 = vadd.f32 %v2291, %v2315
        %v2326 = vadd.f32 %v2294, %v2315
        %v2327 = vadd.f32 %v2297, %v2315
        %v2328 = vadd.f32 %v2300, %v2315
        %v2329 = vadd.f32 %v2303, %v2315
        %v2330 = vadd.f32 %v2306, %v2315
        %v2331 = vadd.f32 %v2309, %v2315
        %v2332 = vadd.f32 %v2312, %v2315
        %2334 = vset.pattern.permute.xlu0 0
        %2335 = vperm.xlu0 %2334, %v2317
        %v2336 = vpop.permute.xlu0 %2335
        %2339 = vset.pattern.permute.xlu0 0
        %2340 = vperm.xlu0 %2339, %v2318
        %v2341 = vpop.permute.xlu0 %2340
        %2344 = vset.pattern.permute.xlu0 0
        %2345 = vperm.xlu0 %2344, %v2319
        %v2346 = vpop.permute.xlu0 %2345
        %2349 = vset.pattern.permute.xlu0 0
        %2350 = vperm.xlu0 %2349, %v2320
        %v2351 = vpop.permute.xlu0 %2350
        %2354 = vset.pattern.permute.xlu0 0
        %2355 = vperm.xlu0 %2354, %v2321
        %v2356 = vpop.permute.xlu0 %2355
        %2359 = vset.pattern.permute.xlu0 0
        %2360 = vperm.xlu0 %2359, %v2322
        %v2361 = vpop.permute.xlu0 %2360
        %2364 = vset.pattern.permute.xlu0 0
        %2365 = vperm.xlu0 %2364, %v2323
        %v2366 = vpop.permute.xlu0 %2365
        %2369 = vset.pattern.permute.xlu0 0
        %2370 = vperm.xlu0 %2369, %v2324
        %v2371 = vpop.permute.xlu0 %2370
        %2374 = vset.pattern.permute.xlu0 0
        %2375 = vperm.xlu0 %2374, %v2325
        %v2376 = vpop.permute.xlu0 %2375
        %2379 = vset.pattern.permute.xlu0 0
        %2380 = vperm.xlu0 %2379, %v2326
        %v2381 = vpop.permute.xlu0 %2380
        %2384 = vset.pattern.permute.xlu0 0
        %2385 = vperm.xlu0 %2384, %v2327
        %v2386 = vpop.permute.xlu0 %2385
        %2389 = vset.pattern.permute.xlu0 0
        %2390 = vperm.xlu0 %2389, %v2328
        %v2391 = vpop.permute.xlu0 %2390
        %2394 = vset.pattern.permute.xlu0 0
        %2395 = vperm.xlu0 %2394, %v2329
        %v2396 = vpop.permute.xlu0 %2395
        %2399 = vset.pattern.permute.xlu0 0
        %2400 = vperm.xlu0 %2399, %v2330
        %v2401 = vpop.permute.xlu0 %2400
        %2404 = vset.pattern.permute.xlu0 0
        %2405 = vperm.xlu0 %2404, %v2331
        %v2406 = vpop.permute.xlu0 %2405
        %2409 = vset.pattern.permute.xlu0 0
        %2410 = vperm.xlu0 %2409, %v2332
        %v2411 = vpop.permute.xlu0 %2410
        %2413 = vst [vmem:[%s474] sm:$0xff] %v2336
        %2414 = vst [vmem:[%s474 + $0x8] sm:$0xff] %v2341
        %2415 = vst [vmem:[%s474 + $0x10] sm:$0xff] %v2346
        %2416 = vst [vmem:[%s474 + $0x18] sm:$0xff] %v2351
        %2417 = vst [vmem:[%s474 + $0x20] sm:$0xff] %v2356
        %2418 = vst [vmem:[%s474 + $0x28] sm:$0xff] %v2361
        %2419 = vst [vmem:[%s474 + $0x30] sm:$0xff] %v2366
        %2420 = vst [vmem:[%s474 + $0x38] sm:$0xff] %v2371
        %2421 = vst [vmem:[%s474 + $0x40] sm:$0xff] %v2376
        %2422 = vst [vmem:[%s474 + $0x48] sm:$0xff] %v2381
        %2423 = vst [vmem:[%s474 + $0x50] sm:$0xff] %v2386
        %2424 = vst [vmem:[%s474 + $0x58] sm:$0xff] %v2391
        %2425 = vst [vmem:[%s474 + $0x60] sm:$0xff] %v2396
        %2426 = vst [vmem:[%s474 + $0x68] sm:$0xff] %v2401
        %2427 = vst [vmem:[%s474 + $0x70] sm:$0xff] %v2406
        %2428 = vst [vmem:[%s474 + $0x78] sm:$0xff] %v2411
        %s2429 = sand.u32 %s276, 1
        %s2430 = scalar_lea.sflag [#allocation5], %s2429
        %s2431 = sand.u32 %s276, 1
        %s2432 = smul.addr %s2431, 128
        %s2433 = scalar_lea.vmem [#allocation12], %s2432
        // Predicated region
        $region85: #{tpu_custom_call.1} parent=63 // pred_check
          %p2434 = pneg %p286
        $region86: #{tpu_custom_call.1} parent=63 // pred_check_branch
          %2436 = sbr.rel (%p2434) target = $region88
        $region87: #{tpu_custom_call.1} parent=63 // pred_region
          %s2437 = smul.u32 16, %s32
          %2439 = vsyncadd %s2430, 0
          %s2440 = smul.addr %s2437, 8
          %s2441 = scalar_lea.hbm %s11, %s2440
          %s2442 = sshll.u32 %s2433, 4
          %s2443 = int_to_ptr.vmem [resolvable:$true] %s2442
          %s2444 = sshll.u32 %s2441, 4
          %s2445 = int_to_ptr.hbm [resolvable:$true] %s2444
          %2450 = dma.vmem_to_hbm [thread:$0]  %s2443, 2048, %s2445, %s2430, 128, 128, 8
        $region88: #{tpu_custom_call.1} parent=63 // pred_fallthru
          _
      $region64: #{tpu_custom_call.1} parent=5 // pred_fallthru
        _
      %p2451 = scmp.le.s32.totalorder 2, %s27
      // Predicated region
      $region89: #{tpu_custom_call.1} parent=5 // pred_check
        %p2452 = pneg %p2451
      $region90: #{tpu_custom_call.1} parent=5 // pred_check_branch
        %2454 = sbr.rel (%p2452) target = $region92
      $region91: #{tpu_custom_call.1} parent=5 // pred_region
        %s2455 = ssub.s32 %s27, 2
        // Predicated region
        $region93: #{tpu_custom_call.1} parent=91 // pred_check
          %p2456 = pneg %p292
        $region94: #{tpu_custom_call.1} parent=91 // pred_check_branch
          %2458 = sbr.rel (%p2456) target = $region96
        $region95: #{tpu_custom_call.1} parent=91 // pred_region
          %s2459 = sand.u32 %s277, 1
          %s2460 = scalar_lea.sflag [#allocation5], %s2459
          %s2461 = sand.u32 %s277, 1
          %s2462 = smul.addr %s2461, 128
          %s2463 = scalar_lea.vmem [#allocation12], %s2462
          %2465 = dma.done %s2460, 2048
        $region96: #{tpu_custom_call.1} parent=91 // pred_fallthru
          _
      $region92: #{tpu_custom_call.1} parent=5 // pred_fallthru
        _
    $region6: #{tpu_custom_call.1} parent=1 // loop_footer
      %s31 = sadd.s32 1, %s27
    $region7: #{tpu_custom_call.1} parent=1 // loop_footer_branch
      %26 = sbr.rel target = $region3
    $region8: #{tpu_custom_call.1} parent=1 // loop_exit
      _
    %2466 = vsyncpa [#allocation4], 1
    %s2467 = scalar_lea.sflag [#allocation4], 1
    %2468 = vsyncpa %s2467, 1
    %2469 = vsyncpa [#allocation7], 1
    %2470 = vsyncpa [#allocation10], 1
    %2471 = vsyncpa [#allocation5], 1
    %s2472 = scalar_lea.sflag [#allocation5], 1
    %2473 = vsyncpa %s2472, 1

</llo_original>
